<compile_context>
chip_gen: v6e
topology: v6e:2x2x1
jax: 0.10.0
libtpu: 0.0.40
codegen_flags: <defaults>
</compile_context>

<pallas_src>
import jax
import jax.numpy as jnp
from jax.experimental import pallas as pl
from jax.experimental.pallas import tpu as pltpu

_FC_PAD = 128            # pad FC output dims (120 / 84 / 10) to full 128 lanes
_NUM_CLASSES = 10
_VMEM_LIMIT = 32 * 1024 * 1024   # well above the few-MiB working set; <64 MiB (v7x)
_NEG_BIG = -1e30         # bias for dead fc5 lanes: exp underflows to exactly 0


def _round_up(n, m):
    return ((n + m - 1) // m) * m


def _pick_tb(batch, target):
    # Lane-dense target TB when the batch is big enough; otherwise round the
    # (tiny) whole batch up to a sublane multiple and run a single grid step.
    return target if batch >= target else _round_up(batch, 8)


# --------------------------------------------------------------------------
# Fused conv (im2col matmul) + max-pool(2x2) + bias + ReLU kernel.
#
#   p_ref : (1, 4, K, L)   patches, grouped by position inside the 2x2 pool
#                          window; L = TB * NP lanes (batch folded into lanes,
#                          lane = b*NP + p), bf16.
#   w_ref : (OC, K)        PyTorch Conv2d weight flattened (C, KH, KW), bf16.
#   b_ref : (OC, 1)        f32 bias.
#   o_ref : (1, OC, L)     pooled, ReLU'd conv output (channel-major), f32.
#
# relu(max_g(W @ P_g) + b) == maxpool(relu(conv + b))   (bias same for all g).
# --------------------------------------------------------------------------
def _conv_relu_pool_kernel(p_ref, w_ref, b_ref, o_ref):
    w = w_ref[...]
    acc = jnp.dot(w, p_ref[0, 0], preferred_element_type=jnp.float32)
    for g in range(1, 4):
        acc = jnp.maximum(
            acc, jnp.dot(w, p_ref[0, g], preferred_element_type=jnp.float32))
    o_ref[0] = jnp.maximum(acc + b_ref[...], 0.0).astype(o_ref.dtype)


def conv_relu_pool(p_folded, w, b, *, oc):
    """p_folded: [nb, 4, K, TB*NP] (bf16); w: [OC, K] (bf16); b: [OC,1] (f32)."""
    nb, G, K, L = p_folded.shape
    return pl.pallas_call(
        _conv_relu_pool_kernel,
        out_shape=jax.ShapeDtypeStruct((nb, oc, L), jnp.float32),
        grid=(nb,),
        in_specs=[
            pl.BlockSpec((1, G, K, L), lambda i: (i, 0, 0, 0)),
            pl.BlockSpec((oc, K), lambda i: (0, 0)),
            pl.BlockSpec((oc, 1), lambda i: (0, 0)),
        ],
        out_specs=pl.BlockSpec((1, oc, L), lambda i: (i, 0, 0)),
        compiler_params=pltpu.CompilerParams(
            dimension_semantics=("parallel",),
            vmem_limit_bytes=_VMEM_LIMIT,
        ),
    )(p_folded, w, b)


# --------------------------------------------------------------------------
# Fused FC stack: fc3 + ReLU + fc4 + ReLU + fc5 + log_softmax.
# Weights zero-padded to 128 output lanes; fc5's dead lanes get a -1e30 bias so
# the plain full-lane max/exp/sum is already the masked log_softmax.
# --------------------------------------------------------------------------
def _fc_fused_kernel(x_ref, w3_ref, b3_ref, w4_ref, b4_ref, w5_ref, b5_ref,
                     o_ref):
    f32 = jnp.float32
    x = x_ref[...].astype(f32)                                            # (TB, 400)
    h = jnp.maximum(jnp.dot(x, w3_ref[...], preferred_element_type=f32)
                    + b3_ref[...], 0.0)                                   # (TB, 128)
    h = jnp.maximum(jnp.dot(h, w4_ref[...], preferred_element_type=f32)
                    + b4_ref[...], 0.0)                                   # (TB, 128)
    z = jnp.dot(h, w5_ref[...], preferred_element_type=f32) + b5_ref[...]  # (TB, 128)

    # Dead lanes hold ~-1e30: they never win the max and exp() underflows to 0,
    # so this is the masked log_softmax over the first 10 lanes.
    m = jnp.max(z, axis=-1, keepdims=True)
    lse = jnp.log(jnp.sum(jnp.exp(z - m), axis=-1, keepdims=True))
    o_ref[...] = (z - m - lse).astype(o_ref.dtype)


def fc_stack(x, fc3_w, fc3_b, fc4_w, fc4_b, fc5_w, fc5_b, *, block_b):
    Bp, K = x.shape
    assert Bp % block_b == 0
    f32 = jnp.float32

    def pad_w(w_t, rows, cols):
        return jnp.pad(w_t.astype(f32),
                       ((0, rows - w_t.shape[0]), (0, cols - w_t.shape[1])))

    def pad_b(bvec, cols, fill=0.0):
        return jnp.pad(bvec.astype(f32), (0, cols - bvec.shape[0]),
                       constant_values=fill).reshape(1, cols)

    w3 = pad_w(fc3_w.T, K, _FC_PAD)
    b3 = pad_b(fc3_b, _FC_PAD)
    w4 = pad_w(fc4_w.T, _FC_PAD, _FC_PAD)
    b4 = pad_b(fc4_b, _FC_PAD)
    w5 = pad_w(fc5_w.T, _FC_PAD, _FC_PAD)
    b5 = pad_b(fc5_b, _FC_PAD, fill=_NEG_BIG)     # dead logit lanes -> -1e30

    nb = Bp // block_b
    return pl.pallas_call(
        _fc_fused_kernel,
        out_shape=jax.ShapeDtypeStruct((Bp, _FC_PAD), f32),
        grid=(nb,),
        in_specs=[
            pl.BlockSpec((block_b, K), lambda i: (i, 0)),
            pl.BlockSpec((K, _FC_PAD), lambda i: (0, 0)),
            pl.BlockSpec((1, _FC_PAD), lambda i: (0, 0)),
            pl.BlockSpec((_FC_PAD, _FC_PAD), lambda i: (0, 0)),
            pl.BlockSpec((1, _FC_PAD), lambda i: (0, 0)),
            pl.BlockSpec((_FC_PAD, _FC_PAD), lambda i: (0, 0)),
            pl.BlockSpec((1, _FC_PAD), lambda i: (0, 0)),
        ],
        out_specs=pl.BlockSpec((block_b, _FC_PAD), lambda i: (i, 0)),
        compiler_params=pltpu.CompilerParams(
            dimension_semantics=("parallel",),
            vmem_limit_bytes=_VMEM_LIMIT,
        ),
    )(x.astype(f32), w3, b3, w4, b4, w5, b5)


# --------------------------------------------------------------------------
# Plain-XLA glue: im2col (single conv_general_dilated_patches op, feature order
# (C, KH, KW) matches PyTorch weight flatten), pool-window grouping, and
# folding/unfolding the batch into/out of the lane axis.
# --------------------------------------------------------------------------
def _patches_nchw(x, padding):
    return jax.lax.conv_general_dilated_patches(
        x, filter_shape=(5, 5), window_strides=(1, 1), padding=padding,
        dimension_numbers=("NCHW", "OIHW", "NCHW"))   # [B, C*25, OH, OW]


def _group_and_fold(p, tb):
    """[Bp, K, OH, OW] -> ([nb, 4, K, tb*(OH//2)*(OW//2)], OH//2, OW//2)."""
    Bp, K, OH, OW = p.shape
    ph, pw = OH // 2, OW // 2
    g = jnp.stack([p[:, :, 0::2, 0::2], p[:, :, 0::2, 1::2],
                   p[:, :, 1::2, 0::2], p[:, :, 1::2, 1::2]],
                  axis=1)                                 # [Bp, 4, K, ph, pw]
    g = g.reshape(Bp // tb, tb, 4, K, ph * pw)
    g = jnp.transpose(g, (0, 2, 3, 1, 4))                 # [nb, 4, K, tb, NP]
    return g.reshape(Bp // tb, 4, K, tb * ph * pw), ph, pw


def _unfold_batch(y, tb, np_):
    """[nb, OC, tb*np_] (lane = b*np_+p) -> [nb*tb, OC, np_]."""
    nb, OC, _ = y.shape
    y = y.reshape(nb, OC, tb, np_)
    y = jnp.transpose(y, (0, 2, 1, 3))
    return y.reshape(nb * tb, OC, np_)


# --------------------------------------------------------------------------
# Parameter init (deterministic, PyTorch-default-style uniform(+-1/sqrt(fan_in))).
# --------------------------------------------------------------------------
def init_params(key):
    keys = jax.random.split(key, 10)

    def uni(k, shape, fan_in):
        bound = float(1.0 / (fan_in ** 0.5))
        return jax.random.uniform(k, shape, jnp.float32, -bound, bound)

    return {
        "conv1_w": uni(keys[0], (6, 1, 5, 5), 1 * 5 * 5),
        "conv1_b": uni(keys[1], (6,), 1 * 5 * 5),
        "conv2_w": uni(keys[2], (16, 6, 5, 5), 6 * 5 * 5),
        "conv2_b": uni(keys[3], (16,), 6 * 5 * 5),
        "fc3_w": uni(keys[4], (120, 400), 400),
        "fc3_b": uni(keys[5], (120,), 400),
        "fc4_w": uni(keys[6], (84, 120), 120),
        "fc4_b": uni(keys[7], (84,), 120),
        "fc5_w": uni(keys[8], (10, 84), 84),
        "fc5_b": uni(keys[9], (10,), 84),
    }


# --------------------------------------------------------------------------
# LeNet-5 forward (mirrors the PyTorch module).
# --------------------------------------------------------------------------
def lenet5_forward(params, x, *, tb1=32, tb2=128):
    B = x.shape[0]
    bf16 = jnp.bfloat16
    f32 = jnp.float32

    tb1 = _pick_tb(B, tb1)              # 32*196 lanes = 49*128 when B >= 32
    tb2 = _pick_tb(B, tb2)              # 128*25 lanes = 25*128 when B >= 128
    Bp1 = _round_up(B, tb1)
    Bp2 = _round_up(B, tb2)

    # --- conv1 (1->6, 5x5, padding=2) + ReLU + max_pool2d(2), fused ---------
    xp = jnp.pad(x.astype(bf16), ((0, Bp1 - B), (0, 0), (0, 0), (0, 0)))
    p1 = _patches_nchw(xp, ((2, 2), (2, 2)))               # [Bp1, 25, 28, 28]
    p1g, ph1, pw1 = _group_and_fold(p1, tb1)               # [nb1, 4, 25, tb1*196]
    y1 = conv_relu_pool(p1g,
                        params["conv1_w"].reshape(6, -1).astype(bf16),
                        params["conv1_b"].reshape(6, 1).astype(f32),
                        oc=6)                              # [nb1, 6, tb1*196] f32
    y1 = _unfold_batch(y1, tb1, ph1 * pw1).reshape(Bp1, 6, ph1, pw1)

    # --- conv2 (6->16, 5x5) + ReLU + max_pool2d(2), fused -------------------
    y1 = jnp.pad(y1[:B], ((0, Bp2 - B), (0, 0), (0, 0), (0, 0))).astype(bf16)
    p2 = _patches_nchw(y1, ((0, 0), (0, 0)))               # [Bp2, 150, 10, 10]
    p2g, ph2, pw2 = _group_and_fold(p2, tb2)               # [nb2, 4, 150, tb2*25]
    y2 = conv_relu_pool(p2g,
                        params["conv2_w"].reshape(16, -1).astype(bf16),
                        params["conv2_b"].reshape(16, 1).astype(f32),
                        oc=16)                             # [nb2, 16, tb2*25] f32

    # --- flatten (PyTorch .view(-1, 16*5*5), (C,H,W) order) -----------------
    flat = _unfold_batch(y2, tb2, ph2 * pw2).reshape(Bp2, 16 * ph2 * pw2)

    # --- fc3 + ReLU + fc4 + ReLU + fc5 + log_softmax, fused -----------------
    out = fc_stack(flat,
                   params["fc3_w"], params["fc3_b"],
                   params["fc4_w"], params["fc4_b"],
                   params["fc5_w"], params["fc5_b"],
                   block_b=tb2)
    return out[:B, :_NUM_CLASSES]


# --------------------------------------------------------------------------
# Pure-JAX reference (for correctness check only).
# --------------------------------------------------------------------------
def _reference_forward(params, x):
    dn = ("NCHW", "OIHW", "NCHW")
    hi = jax.lax.Precision.HIGHEST
    y = jax.lax.conv_general_dilated(x, params["conv1_w"], (1, 1),
                                     ((2, 2), (2, 2)), dimension_numbers=dn,
                                     precision=hi)
    y = jax.nn.relu(y + params["conv1_b"].reshape(1, 6, 1, 1))
    y = jax.lax.reduce_window(y, -jnp.inf, jax.lax.max,
                              (1, 1, 2, 2), (1, 1, 2, 2), "VALID")
    y = jax.lax.conv_general_dilated(y, params["conv2_w"], (1, 1),
                                     ((0, 0), (0, 0)), dimension_numbers=dn,
                                     precision=hi)
    y = jax.nn.relu(y + params["conv2_b"].reshape(1, 16, 1, 1))
    y = jax.lax.reduce_window(y, -jnp.inf, jax.lax.max,
                              (1, 1, 2, 2), (1, 1, 2, 2), "VALID")
    y = y.reshape(x.shape[0], 16 * 5 * 5)
    y = jax.nn.relu(y @ params["fc3_w"].T + params["fc3_b"])
    y = jax.nn.relu(y @ params["fc4_w"].T + params["fc4_b"])
    y = y @ params["fc5_w"].T + params["fc5_b"]
    return jax.nn.log_softmax(y, axis=-1)


if __name__ == "__main__":
    key = jax.random.PRNGKey(0)
    pkey, xkey = jax.random.split(key)
    params = init_params(pkey)

    # LeNet-5's fc3 (16*5*5 -> 120) fixes the spatial size: input must be 28x28.
    x = jax.random.normal(xkey, (2, 1, 28, 28), jnp.float32)

    out = jax.block_until_ready(jax.jit(lenet5_forward)(params, x))

    assert out.shape == (2, 10), out.shape
    assert bool(jnp.all(jnp.isfinite(out)))
    # log_softmax rows should exponentiate-sum to ~1
    assert bool(jnp.allclose(jnp.sum(jnp.exp(out), axis=-1), 1.0, atol=1e-4))

    # cross-check against the pure-JAX reference (conv feeds are bf16, so allow
    # a slightly looser tolerance than a pure-f32 pipeline).
    ref = jax.block_until_ready(jax.jit(_reference_forward)(params, x))
    assert bool(jnp.allclose(out, ref, atol=5e-2, rtol=5e-2)), (
        float(jnp.max(jnp.abs(out - ref))))

    print("KERNEL_OK")
</pallas_src>

<mosaic_0001>
module attributes {stable_mosaic.version = 11 : i64} {
  func.func @_conv_relu_pool_kernel(%arg0: i32, %arg1: memref<1x4x25x1568xbf16, #tpu.memory_space<vmem>>, %arg2: memref<6x25xbf16, #tpu.memory_space<vmem>>, %arg3: memref<6x1xf32, #tpu.memory_space<vmem>>, %arg4: memref<1x6x1568xf32, #tpu.memory_space<vmem>>) attributes {dimension_semantics = [#tpu.dimension_semantics<parallel>], iteration_bounds = array<i64: 1>, scalar_prefetch = 0 : i64, scratch_operands = 0 : i64, tpu.core_type = #tpu.core_type<tc>, window_params = [{transform_indices = @transform_0, window_bounds = array<i64: 1, 4, 25, 1568>}, {pipeline_mode = #tpu.pipeline_mode<synchronous>, transform_indices = @transform_1, window_bounds = array<i64: 6, 25>}, {pipeline_mode = #tpu.pipeline_mode<synchronous>, transform_indices = @transform_2, window_bounds = array<i64: 6, 1>}, {transform_indices = @transform_3, window_bounds = array<i64: 1, 6, 1568>}]} {
    %c0 = arith.constant 0 : index
    %c0_0 = arith.constant 0 : index
    %0 = vector.load %arg2[%c0, %c0_0] : memref<6x25xbf16, #tpu.memory_space<vmem>>, vector<6x25xbf16>
    %c0_1 = arith.constant 0 : index
    %c0_2 = arith.constant 0 : index
    %c0_3 = arith.constant 0 : index
    %c0_4 = arith.constant 0 : index
    %1 = vector.load %arg1[%c0_1, %c0_2, %c0_3, %c0_4] : memref<1x4x25x1568xbf16, #tpu.memory_space<vmem>>, vector<1x1x25x1568xbf16>
    %2 = vector.shape_cast %1 : vector<1x1x25x1568xbf16> to vector<25x1568xbf16>
    %cst = arith.constant dense<0.000000e+00> : vector<6x1568xf32>
    %3 = tpu.matmul %0, %2, %cst {dimension_numbers = #tpu.dot_dimension_numbers<[1], [0], [0], [1], [0, 0, 1, 1], [], []>} : vector<6x25xbf16>, vector<25x1568xbf16>, vector<6x1568xf32> -> vector<6x1568xf32>
    %c0_5 = arith.constant 0 : index
    %c1 = arith.constant 1 : index
    %c0_6 = arith.constant 0 : index
    %c0_7 = arith.constant 0 : index
    %4 = vector.load %arg1[%c0_5, %c1, %c0_6, %c0_7] : memref<1x4x25x1568xbf16, #tpu.memory_space<vmem>>, vector<1x1x25x1568xbf16>
    %5 = vector.shape_cast %4 : vector<1x1x25x1568xbf16> to vector<25x1568xbf16>
    %cst_8 = arith.constant dense<0.000000e+00> : vector<6x1568xf32>
    %6 = tpu.matmul %0, %5, %cst_8 {dimension_numbers = #tpu.dot_dimension_numbers<[1], [0], [0], [1], [0, 0, 1, 1], [], []>} : vector<6x25xbf16>, vector<25x1568xbf16>, vector<6x1568xf32> -> vector<6x1568xf32>
    %7 = arith.maximumf %3, %6 : vector<6x1568xf32>
    %c0_9 = arith.constant 0 : index
    %c2 = arith.constant 2 : index
    %c0_10 = arith.constant 0 : index
    %c0_11 = arith.constant 0 : index
    %8 = vector.load %arg1[%c0_9, %c2, %c0_10, %c0_11] : memref<1x4x25x1568xbf16, #tpu.memory_space<vmem>>, vector<1x1x25x1568xbf16>
    %9 = vector.shape_cast %8 : vector<1x1x25x1568xbf16> to vector<25x1568xbf16>
    %cst_12 = arith.constant dense<0.000000e+00> : vector<6x1568xf32>
    %10 = tpu.matmul %0, %9, %cst_12 {dimension_numbers = #tpu.dot_dimension_numbers<[1], [0], [0], [1], [0, 0, 1, 1], [], []>} : vector<6x25xbf16>, vector<25x1568xbf16>, vector<6x1568xf32> -> vector<6x1568xf32>
    %11 = arith.maximumf %7, %10 : vector<6x1568xf32>
    %c0_13 = arith.constant 0 : index
    %c3 = arith.constant 3 : index
    %c0_14 = arith.constant 0 : index
    %c0_15 = arith.constant 0 : index
    %12 = vector.load %arg1[%c0_13, %c3, %c0_14, %c0_15] : memref<1x4x25x1568xbf16, #tpu.memory_space<vmem>>, vector<1x1x25x1568xbf16>
    %13 = vector.shape_cast %12 : vector<1x1x25x1568xbf16> to vector<25x1568xbf16>
    %cst_16 = arith.constant dense<0.000000e+00> : vector<6x1568xf32>
    %14 = tpu.matmul %0, %13, %cst_16 {dimension_numbers = #tpu.dot_dimension_numbers<[1], [0], [0], [1], [0, 0, 1, 1], [], []>} : vector<6x25xbf16>, vector<25x1568xbf16>, vector<6x1568xf32> -> vector<6x1568xf32>
    %15 = arith.maximumf %11, %14 : vector<6x1568xf32>
    %c0_17 = arith.constant 0 : index
    %c0_18 = arith.constant 0 : index
    %16 = vector.load %arg3[%c0_17, %c0_18] : memref<6x1xf32, #tpu.memory_space<vmem>>, vector<6x1xf32>
    %17 = vector.broadcast %16 : vector<6x1xf32> to vector<6x1568xf32>
    %18 = arith.addf %15, %17 : vector<6x1568xf32>
    %cst_19 = arith.constant 0.000000e+00 : f32
    %19 = vector.broadcast %cst_19 : f32 to vector<6x1568xf32>
    %20 = arith.maximumf %18, %19 : vector<6x1568xf32>
    %c0_20 = arith.constant 0 : index
    %c0_21 = arith.constant 0 : index
    %c0_22 = arith.constant 0 : index
    %21 = vector.load %arg4[%c0_20, %c0_21, %c0_22] : memref<1x6x1568xf32, #tpu.memory_space<vmem>>, vector<1x6x1568xf32>
    %22 = vector.shape_cast %21 : vector<1x6x1568xf32> to vector<6x1568xf32>
    %23 = vector.shape_cast %20 : vector<6x1568xf32> to vector<1x6x1568xf32>
    tpu.vector_store %arg4[%c0_20, %c0_21, %c0_22], %23 {strides = array<i32>} : memref<1x6x1568xf32, #tpu.memory_space<vmem>>, vector<1x6x1568xf32>,
    return
  }
  func.func @transform_0(%arg0: i32) -> (i32, i32, i32, i32) {
    %c0_i32 = arith.constant 0 : i32
    %c0_i32_0 = arith.constant 0 : i32
    %c0_i32_1 = arith.constant 0 : i32
    %c0_i32_2 = arith.constant 0 : i32
    return %arg0, %c0_i32, %c0_i32_0, %c0_i32_1 : i32, i32, i32, i32
  }
  func.func @transform_1(%arg0: i32) -> (i32, i32) {
    %c0_i32 = arith.constant 0 : i32
    %c0_i32_0 = arith.constant 0 : i32
    %c0_i32_1 = arith.constant 0 : i32
    return %c0_i32, %c0_i32_0 : i32, i32
  }
  func.func @transform_2(%arg0: i32) -> (i32, i32) {
    %c0_i32 = arith.constant 0 : i32
    %c0_i32_0 = arith.constant 0 : i32
    %c0_i32_1 = arith.constant 0 : i32
    return %c0_i32, %c0_i32_0 : i32, i32
  }
  func.func @transform_3(%arg0: i32) -> (i32, i32, i32) {
    %c0_i32 = arith.constant 0 : i32
    %c0_i32_0 = arith.constant 0 : i32
    %c0_i32_1 = arith.constant 0 : i32
    return %arg0, %c0_i32, %c0_i32_0 : i32, i32, i32
  }
}

module attributes {stable_mosaic.version = 11 : i64} {
  func.func @_conv_relu_pool_kernel(%arg0: i32, %arg1: memref<1x4x150x200xbf16, #tpu.memory_space<vmem>>, %arg2: memref<16x150xbf16, #tpu.memory_space<vmem>>, %arg3: memref<16x1xf32, #tpu.memory_space<vmem>>, %arg4: memref<1x16x200xf32, #tpu.memory_space<vmem>>) attributes {dimension_semantics = [#tpu.dimension_semantics<parallel>], iteration_bounds = array<i64: 1>, scalar_prefetch = 0 : i64, scratch_operands = 0 : i64, tpu.core_type = #tpu.core_type<tc>, window_params = [{transform_indices = @transform_0, window_bounds = array<i64: 1, 4, 150, 200>}, {pipeline_mode = #tpu.pipeline_mode<synchronous>, transform_indices = @transform_1, window_bounds = array<i64: 16, 150>}, {pipeline_mode = #tpu.pipeline_mode<synchronous>, transform_indices = @transform_2, window_bounds = array<i64: 16, 1>}, {transform_indices = @transform_3, window_bounds = array<i64: 1, 16, 200>}]} {
    %c0 = arith.constant 0 : index
    %c0_0 = arith.constant 0 : index
    %0 = vector.load %arg2[%c0, %c0_0] : memref<16x150xbf16, #tpu.memory_space<vmem>>, vector<16x150xbf16>
    %c0_1 = arith.constant 0 : index
    %c0_2 = arith.constant 0 : index
    %c0_3 = arith.constant 0 : index
    %c0_4 = arith.constant 0 : index
    %1 = vector.load %arg1[%c0_1, %c0_2, %c0_3, %c0_4] : memref<1x4x150x200xbf16, #tpu.memory_space<vmem>>, vector<1x1x150x200xbf16>
    %2 = vector.shape_cast %1 : vector<1x1x150x200xbf16> to vector<150x200xbf16>
    %cst = arith.constant dense<0.000000e+00> : vector<16x200xf32>
    %3 = tpu.matmul %0, %2, %cst {dimension_numbers = #tpu.dot_dimension_numbers<[1], [0], [0], [1], [0, 0, 1, 1], [], []>} : vector<16x150xbf16>, vector<150x200xbf16>, vector<16x200xf32> -> vector<16x200xf32>
    %c0_5 = arith.constant 0 : index
    %c1 = arith.constant 1 : index
    %c0_6 = arith.constant 0 : index
    %c0_7 = arith.constant 0 : index
    %4 = vector.load %arg1[%c0_5, %c1, %c0_6, %c0_7] : memref<1x4x150x200xbf16, #tpu.memory_space<vmem>>, vector<1x1x150x200xbf16>
    %5 = vector.shape_cast %4 : vector<1x1x150x200xbf16> to vector<150x200xbf16>
    %cst_8 = arith.constant dense<0.000000e+00> : vector<16x200xf32>
    %6 = tpu.matmul %0, %5, %cst_8 {dimension_numbers = #tpu.dot_dimension_numbers<[1], [0], [0], [1], [0, 0, 1, 1], [], []>} : vector<16x150xbf16>, vector<150x200xbf16>, vector<16x200xf32> -> vector<16x200xf32>
    %7 = arith.maximumf %3, %6 : vector<16x200xf32>
    %c0_9 = arith.constant 0 : index
    %c2 = arith.constant 2 : index
    %c0_10 = arith.constant 0 : index
    %c0_11 = arith.constant 0 : index
    %8 = vector.load %arg1[%c0_9, %c2, %c0_10, %c0_11] : memref<1x4x150x200xbf16, #tpu.memory_space<vmem>>, vector<1x1x150x200xbf16>
    %9 = vector.shape_cast %8 : vector<1x1x150x200xbf16> to vector<150x200xbf16>
    %cst_12 = arith.constant dense<0.000000e+00> : vector<16x200xf32>
    %10 = tpu.matmul %0, %9, %cst_12 {dimension_numbers = #tpu.dot_dimension_numbers<[1], [0], [0], [1], [0, 0, 1, 1], [], []>} : vector<16x150xbf16>, vector<150x200xbf16>, vector<16x200xf32> -> vector<16x200xf32>
    %11 = arith.maximumf %7, %10 : vector<16x200xf32>
    %c0_13 = arith.constant 0 : index
    %c3 = arith.constant 3 : index
    %c0_14 = arith.constant 0 : index
    %c0_15 = arith.constant 0 : index
    %12 = vector.load %arg1[%c0_13, %c3, %c0_14, %c0_15] : memref<1x4x150x200xbf16, #tpu.memory_space<vmem>>, vector<1x1x150x200xbf16>
    %13 = vector.shape_cast %12 : vector<1x1x150x200xbf16> to vector<150x200xbf16>
    %cst_16 = arith.constant dense<0.000000e+00> : vector<16x200xf32>
    %14 = tpu.matmul %0, %13, %cst_16 {dimension_numbers = #tpu.dot_dimension_numbers<[1], [0], [0], [1], [0, 0, 1, 1], [], []>} : vector<16x150xbf16>, vector<150x200xbf16>, vector<16x200xf32> -> vector<16x200xf32>
    %15 = arith.maximumf %11, %14 : vector<16x200xf32>
    %c0_17 = arith.constant 0 : index
    %c0_18 = arith.constant 0 : index
    %16 = vector.load %arg3[%c0_17, %c0_18] : memref<16x1xf32, #tpu.memory_space<vmem>>, vector<16x1xf32>
    %17 = vector.broadcast %16 : vector<16x1xf32> to vector<16x200xf32>
    %18 = arith.addf %15, %17 : vector<16x200xf32>
    %cst_19 = arith.constant 0.000000e+00 : f32
    %19 = vector.broadcast %cst_19 : f32 to vector<16x200xf32>
    %20 = arith.maximumf %18, %19 : vector<16x200xf32>
    %c0_20 = arith.constant 0 : index
    %c0_21 = arith.constant 0 : index
    %c0_22 = arith.constant 0 : index
    %21 = vector.load %arg4[%c0_20, %c0_21, %c0_22] : memref<1x16x200xf32, #tpu.memory_space<vmem>>, vector<1x16x200xf32>
    %22 = vector.shape_cast %21 : vector<1x16x200xf32> to vector<16x200xf32>
    %23 = vector.shape_cast %20 : vector<16x200xf32> to vector<1x16x200xf32>
    tpu.vector_store %arg4[%c0_20, %c0_21, %c0_22], %23 {strides = array<i32>} : memref<1x16x200xf32, #tpu.memory_space<vmem>>, vector<1x16x200xf32>,
    return
  }
  func.func @transform_0(%arg0: i32) -> (i32, i32, i32, i32) {
    %c0_i32 = arith.constant 0 : i32
    %c0_i32_0 = arith.constant 0 : i32
    %c0_i32_1 = arith.constant 0 : i32
    %c0_i32_2 = arith.constant 0 : i32
    return %arg0, %c0_i32, %c0_i32_0, %c0_i32_1 : i32, i32, i32, i32
  }
  func.func @transform_1(%arg0: i32) -> (i32, i32) {
    %c0_i32 = arith.constant 0 : i32
    %c0_i32_0 = arith.constant 0 : i32
    %c0_i32_1 = arith.constant 0 : i32
    return %c0_i32, %c0_i32_0 : i32, i32
  }
  func.func @transform_2(%arg0: i32) -> (i32, i32) {
    %c0_i32 = arith.constant 0 : i32
    %c0_i32_0 = arith.constant 0 : i32
    %c0_i32_1 = arith.constant 0 : i32
    return %c0_i32, %c0_i32_0 : i32, i32
  }
  func.func @transform_3(%arg0: i32) -> (i32, i32, i32) {
    %c0_i32 = arith.constant 0 : i32
    %c0_i32_0 = arith.constant 0 : i32
    %c0_i32_1 = arith.constant 0 : i32
    return %arg0, %c0_i32, %c0_i32_0 : i32, i32, i32
  }
}

module attributes {stable_mosaic.version = 11 : i64} {
  func.func @_fc_fused_kernel(%arg0: i32, %arg1: memref<8x400xf32, #tpu.memory_space<vmem>>, %arg2: memref<400x128xf32, #tpu.memory_space<vmem>>, %arg3: memref<1x128xf32, #tpu.memory_space<vmem>>, %arg4: memref<128x128xf32, #tpu.memory_space<vmem>>, %arg5: memref<1x128xf32, #tpu.memory_space<vmem>>, %arg6: memref<128x128xf32, #tpu.memory_space<vmem>>, %arg7: memref<1x128xf32, #tpu.memory_space<vmem>>, %arg8: memref<8x128xf32, #tpu.memory_space<vmem>>) attributes {dimension_semantics = [#tpu.dimension_semantics<parallel>], iteration_bounds = array<i64: 1>, scalar_prefetch = 0 : i64, scratch_operands = 0 : i64, tpu.core_type = #tpu.core_type<tc>, window_params = [{transform_indices = @transform_0, window_bounds = array<i64: 8, 400>}, {pipeline_mode = #tpu.pipeline_mode<synchronous>, transform_indices = @transform_1, window_bounds = array<i64: 400, 128>}, {pipeline_mode = #tpu.pipeline_mode<synchronous>, transform_indices = @transform_2, window_bounds = array<i64: 1, 128>}, {pipeline_mode = #tpu.pipeline_mode<synchronous>, transform_indices = @transform_3, window_bounds = array<i64: 128, 128>}, {pipeline_mode = #tpu.pipeline_mode<synchronous>, transform_indices = @transform_4, window_bounds = array<i64: 1, 128>}, {pipeline_mode = #tpu.pipeline_mode<synchronous>, transform_indices = @transform_5, window_bounds = array<i64: 128, 128>}, {pipeline_mode = #tpu.pipeline_mode<synchronous>, transform_indices = @transform_6, window_bounds = array<i64: 1, 128>}, {transform_indices = @transform_7, window_bounds = array<i64: 8, 128>}]} {
    %c0 = arith.constant 0 : index
    %c0_0 = arith.constant 0 : index
    %0 = vector.load %arg1[%c0, %c0_0] : memref<8x400xf32, #tpu.memory_space<vmem>>, vector<8x400xf32>
    %c0_1 = arith.constant 0 : index
    %c0_2 = arith.constant 0 : index
    %1 = vector.load %arg2[%c0_1, %c0_2] : memref<400x128xf32, #tpu.memory_space<vmem>>, vector<400x128xf32>
    %cst = arith.constant dense<0.000000e+00> : vector<8x128xf32>
    %2 = tpu.matmul %0, %1, %cst {dimension_numbers = #tpu.dot_dimension_numbers<[1], [0], [0], [1], [0, 0, 1, 1], [], []>} : vector<8x400xf32>, vector<400x128xf32>, vector<8x128xf32> -> vector<8x128xf32>
    %c0_3 = arith.constant 0 : index
    %c0_4 = arith.constant 0 : index
    %3 = vector.load %arg3[%c0_3, %c0_4] : memref<1x128xf32, #tpu.memory_space<vmem>>, vector<1x128xf32>
    %4 = vector.broadcast %3 : vector<1x128xf32> to vector<8x128xf32>
    %5 = arith.addf %2, %4 : vector<8x128xf32>
    %cst_5 = arith.constant 0.000000e+00 : f32
    %6 = vector.broadcast %cst_5 : f32 to vector<8x128xf32>
    %7 = arith.maximumf %5, %6 : vector<8x128xf32>
    %c0_6 = arith.constant 0 : index
    %c0_7 = arith.constant 0 : index
    %8 = vector.load %arg4[%c0_6, %c0_7] : memref<128x128xf32, #tpu.memory_space<vmem>>, vector<128x128xf32>
    %cst_8 = arith.constant dense<0.000000e+00> : vector<8x128xf32>
    %9 = tpu.matmul %7, %8, %cst_8 {dimension_numbers = #tpu.dot_dimension_numbers<[1], [0], [0], [1], [0, 0, 1, 1], [], []>} : vector<8x128xf32>, vector<128x128xf32>, vector<8x128xf32> -> vector<8x128xf32>
    %c0_9 = arith.constant 0 : index
    %c0_10 = arith.constant 0 : index
    %10 = vector.load %arg5[%c0_9, %c0_10] : memref<1x128xf32, #tpu.memory_space<vmem>>, vector<1x128xf32>
    %11 = vector.broadcast %10 : vector<1x128xf32> to vector<8x128xf32>
    %12 = arith.addf %9, %11 : vector<8x128xf32>
    %cst_11 = arith.constant 0.000000e+00 : f32
    %13 = vector.broadcast %cst_11 : f32 to vector<8x128xf32>
    %14 = arith.maximumf %12, %13 : vector<8x128xf32>
    %c0_12 = arith.constant 0 : index
    %c0_13 = arith.constant 0 : index
    %15 = vector.load %arg6[%c0_12, %c0_13] : memref<128x128xf32, #tpu.memory_space<vmem>>, vector<128x128xf32>
    %cst_14 = arith.constant dense<0.000000e+00> : vector<8x128xf32>
    %16 = tpu.matmul %14, %15, %cst_14 {dimension_numbers = #tpu.dot_dimension_numbers<[1], [0], [0], [1], [0, 0, 1, 1], [], []>} : vector<8x128xf32>, vector<128x128xf32>, vector<8x128xf32> -> vector<8x128xf32>
    %c0_15 = arith.constant 0 : index
    %c0_16 = arith.constant 0 : index
    %17 = vector.load %arg7[%c0_15, %c0_16] : memref<1x128xf32, #tpu.memory_space<vmem>>, vector<1x128xf32>
    %18 = vector.broadcast %17 : vector<1x128xf32> to vector<8x128xf32>
    %19 = arith.addf %16, %18 : vector<8x128xf32>
    %cst_17 = arith.constant dense<0xFF800000> : vector<8xf32>
    %20 = vector.multi_reduction <maximumf>, %19, %cst_17 [1] : vector<8x128xf32> to vector<8xf32>
    %21 = vector.shape_cast %20 : vector<8xf32> to vector<8x1xf32>
    %22 = vector.broadcast %21 : vector<8x1xf32> to vector<8x128xf32>
    %23 = arith.subf %19, %22 : vector<8x128xf32>
    %24 = math.exp %23 : vector<8x128xf32>
    %cst_18 = arith.constant dense<0.000000e+00> : vector<8xf32>
    %25 = vector.multi_reduction <add>, %24, %cst_18 [1] : vector<8x128xf32> to vector<8xf32>
    %26 = vector.shape_cast %25 : vector<8xf32> to vector<8x1xf32>
    %27 = math.log %26 : vector<8x1xf32>
    %28 = vector.broadcast %21 : vector<8x1xf32> to vector<8x128xf32>
    %29 = arith.subf %19, %28 : vector<8x128xf32>
    %30 = vector.broadcast %27 : vector<8x1xf32> to vector<8x128xf32>
    %31 = arith.subf %29, %30 : vector<8x128xf32>
    %c0_19 = arith.constant 0 : index
    %c0_20 = arith.constant 0 : index
    %32 = vector.load %arg8[%c0_19, %c0_20] : memref<8x128xf32, #tpu.memory_space<vmem>>, vector<8x128xf32>
    tpu.vector_store %arg8[%c0_19, %c0_20], %31 {strides = array<i32>} : memref<8x128xf32, #tpu.memory_space<vmem>>, vector<8x128xf32>,
    return
  }
  func.func @transform_0(%arg0: i32) -> (i32, i32) {
    %c0_i32 = arith.constant 0 : i32
    %c0_i32_0 = arith.constant 0 : i32
    return %arg0, %c0_i32 : i32, i32
  }
  func.func @transform_1(%arg0: i32) -> (i32, i32) {
    %c0_i32 = arith.constant 0 : i32
    %c0_i32_0 = arith.constant 0 : i32
    %c0_i32_1 = arith.constant 0 : i32
    return %c0_i32, %c0_i32_0 : i32, i32
  }
  func.func @transform_2(%arg0: i32) -> (i32, i32) {
    %c0_i32 = arith.constant 0 : i32
    %c0_i32_0 = arith.constant 0 : i32
    %c0_i32_1 = arith.constant 0 : i32
    return %c0_i32, %c0_i32_0 : i32, i32
  }
  func.func @transform_3(%arg0: i32) -> (i32, i32) {
    %c0_i32 = arith.constant 0 : i32
    %c0_i32_0 = arith.constant 0 : i32
    %c0_i32_1 = arith.constant 0 : i32
    return %c0_i32, %c0_i32_0 : i32, i32
  }
  func.func @transform_4(%arg0: i32) -> (i32, i32) {
    %c0_i32 = arith.constant 0 : i32
    %c0_i32_0 = arith.constant 0 : i32
    %c0_i32_1 = arith.constant 0 : i32
    return %c0_i32, %c0_i32_0 : i32, i32
  }
  func.func @transform_5(%arg0: i32) -> (i32, i32) {
    %c0_i32 = arith.constant 0 : i32
    %c0_i32_0 = arith.constant 0 : i32
    %c0_i32_1 = arith.constant 0 : i32
    return %c0_i32, %c0_i32_0 : i32, i32
  }
  func.func @transform_6(%arg0: i32) -> (i32, i32) {
    %c0_i32 = arith.constant 0 : i32
    %c0_i32_0 = arith.constant 0 : i32
    %c0_i32_1 = arith.constant 0 : i32
    return %c0_i32, %c0_i32_0 : i32, i32
  }
  func.func @transform_7(%arg0: i32) -> (i32, i32) {
    %c0_i32 = arith.constant 0 : i32
    %c0_i32_0 = arith.constant 0 : i32
    return %arg0, %c0_i32 : i32, i32
  }
}

</mosaic_0001>

<llo_original>
// kernel: lenet5_forward.3
$region0: #{lenet5_forward.3}
  #allocation0 [shape = 'u32[]', space=smem, size = 0x4, offset = 0x4, fixed_abs, tag = 'smem constant byte address 0x4 - core index']
  #allocation1 [shape = 'u32[144,128]{1,0:T(1,128)}', space=vmem, size = 0x12000, scoped, tag = 'internal scratch']
  %s0 = inlined_call_operand.vmem [shape: bf16[1,4,25,1568], index: 0, kind: input, shape index: {}]
  %s1 = inlined_call_operand.vmem [shape: bf16[6,25], index: 1, kind: input, shape index: {}]
  %s2 = inlined_call_operand.vmem [shape: f32[6,1], index: 2, kind: input, shape index: {}]
  %s3 = inlined_call_operand.vmem [shape: f32[1,6,1568], index: 3, kind: output, shape index: {}]
  %s4 = sld [smem:[#allocation0]]
  $region22: #{lenet5_forward.3} parent=0
    _
  %s6 = ssub.s32 1, %s4
  %s7 = scalar_select 0, %s6, %s4
  // Predicated region
  $region2: #{lenet5_forward.3} parent=0 // pred_check
    _
  $region3: #{lenet5_forward.3} parent=0 // pred_check_branch
    %9 = sbr.rel (0) target = $region5
  $region4: #{lenet5_forward.3} parent=0 // pred_region
    _
  $region5: #{lenet5_forward.3} parent=0 // pred_fallthru
    _
  // Predicated region
  $region6: #{lenet5_forward.3} parent=0 // pred_check
    _
  $region7: #{lenet5_forward.3} parent=0 // pred_check_branch
    %11 = sbr.rel (0) target = $region9
  $region8: #{lenet5_forward.3} parent=0 // pred_region
    _
  $region9: #{lenet5_forward.3} parent=0 // pred_fallthru
    _
  // Predicated region
  $region10: #{lenet5_forward.3} parent=0 // pred_check
    _
  $region11: #{lenet5_forward.3} parent=0 // pred_check_branch
    %13 = sbr.rel (0) target = $region13
  $region12: #{lenet5_forward.3} parent=0 // pred_region
    _
  $region13: #{lenet5_forward.3} parent=0 // pred_fallthru
    _
  %v15 = vld [vmem:[%s1] sm:$0x7]
  %v16 = vld [vmem:[%s0] sm:$0xff]
  %v17 = vld [vmem:[%s0 + $0x8] sm:$0xff]
  %v18 = vld [vmem:[%s0 + $0x10] sm:$0xff]
  %v19 = vld [vmem:[%s0 + $0x18] sm:$0xff]
  %v20 = vld [vmem:[%s0 + $0x20] sm:$0xff]
  %v21 = vld [vmem:[%s0 + $0x28] sm:$0xff]
  %v22 = vld [vmem:[%s0 + $0x30] sm:$0xf]
  %v23 = vld [vmem:[%s0 + $0x34] sm:$0xff]
  %v24 = vld [vmem:[%s0 + $0x3c] sm:$0xff]
  %v25 = vld [vmem:[%s0 + $0x44] sm:$0xff]
  %v26 = vld [vmem:[%s0 + $0x4c] sm:$0xff]
  %v27 = vld [vmem:[%s0 + $0x54] sm:$0xff]
  %v28 = vld [vmem:[%s0 + $0x5c] sm:$0xff]
  %v29 = vld [vmem:[%s0 + $0x64] sm:$0xf]
  %v30 = vld [vmem:[%s0 + $0x68] sm:$0xff]
  %v31 = vld [vmem:[%s0 + $0x70] sm:$0xff]
  %v32 = vld [vmem:[%s0 + $0x78] sm:$0xff]
  %v33 = vld [vmem:[%s0 + $0x80] sm:$0xff]
  %v34 = vld [vmem:[%s0 + $0x88] sm:$0xff]
  %v35 = vld [vmem:[%s0 + $0x90] sm:$0xff]
  %v36 = vld [vmem:[%s0 + $0x98] sm:$0xf]
  %v37 = vld [vmem:[%s0 + $0x9c] sm:$0x11]
  %v38 = vld [vmem:[%s0 + $0xa4] sm:$0x11]
  %v39 = vld [vmem:[%s0 + $0xac] sm:$0x11]
  %v40 = vld [vmem:[%s0 + $0xb4] sm:$0x11]
  %v41 = vld [vmem:[%s0 + $0xbc] sm:$0x11]
  %v42 = vld [vmem:[%s0 + $0xc4] sm:$0x11]
  %v43 = vld [vmem:[%s0 + $0xcc] sm:$0x1]
  %v72 = vunpack.c.l.b16 %v16
  %v73 = vunpack.c.h.b16 %v16
  %v74 = vunpack.c.l.b16 %v17
  %v75 = vunpack.c.h.b16 %v17
  %v76 = vunpack.c.l.b16 %v18
  %v77 = vunpack.c.h.b16 %v18
  %v78 = vunpack.c.l.b16 %v19
  %v79 = vunpack.c.h.b16 %v19
  %v80 = vunpack.c.l.b16 %v20
  %v81 = vunpack.c.h.b16 %v20
  %v82 = vunpack.c.l.b16 %v21
  %v83 = vunpack.c.h.b16 %v21
  %v84 = vunpack.c.l.b16 %v22
  %v85 = vunpack.c.l.b16 %v23
  %v86 = vunpack.c.h.b16 %v23
  %v87 = vunpack.c.l.b16 %v24
  %v88 = vunpack.c.h.b16 %v24
  %v89 = vunpack.c.l.b16 %v25
  %v90 = vunpack.c.h.b16 %v25
  %v91 = vunpack.c.l.b16 %v26
  %v92 = vunpack.c.h.b16 %v26
  %v93 = vunpack.c.l.b16 %v27
  %v94 = vunpack.c.h.b16 %v27
  %v95 = vunpack.c.l.b16 %v28
  %v96 = vunpack.c.h.b16 %v28
  %v97 = vunpack.c.l.b16 %v29
  %v98 = vunpack.c.l.b16 %v30
  %v99 = vunpack.c.h.b16 %v30
  %v100 = vunpack.c.l.b16 %v31
  %v101 = vunpack.c.h.b16 %v31
  %v102 = vunpack.c.l.b16 %v32
  %v103 = vunpack.c.h.b16 %v32
  %v104 = vunpack.c.l.b16 %v33
  %v105 = vunpack.c.h.b16 %v33
  %v106 = vunpack.c.l.b16 %v34
  %v107 = vunpack.c.h.b16 %v34
  %v108 = vunpack.c.l.b16 %v35
  %v109 = vunpack.c.h.b16 %v35
  %v110 = vunpack.c.l.b16 %v36
  %v111 = vunpack.c.l.b16 %v37
  %v112 = vunpack.c.h.b16 %v37
  %v113 = vunpack.c.l.b16 %v38
  %v114 = vunpack.c.h.b16 %v38
  %v115 = vunpack.c.l.b16 %v39
  %v116 = vunpack.c.h.b16 %v39
  %v117 = vunpack.c.l.b16 %v40
  %v118 = vunpack.c.h.b16 %v40
  %v119 = vunpack.c.l.b16 %v41
  %v120 = vunpack.c.h.b16 %v41
  %v121 = vunpack.c.l.b16 %v42
  %v122 = vunpack.c.h.b16 %v42
  %v123 = vunpack.c.l.b16 %v43
  %v124 = vpack.c.b16 %v85, %v72
  %v125 = vpack.c.b16 %v86, %v73
  %v126 = vpack.c.b16 %v87, %v74
  %v127 = vpack.c.b16 %v88, %v75
  %v128 = vpack.c.b16 %v89, %v76
  %v129 = vpack.c.b16 %v90, %v77
  %v130 = vpack.c.b16 %v91, %v78
  %v131 = vpack.c.b16 %v92, %v79
  %v132 = vpack.c.b16 %v93, %v80
  %v133 = vpack.c.b16 %v94, %v81
  %v134 = vpack.c.b16 %v95, %v82
  %v135 = vpack.c.b16 %v96, %v83
  %v136 = vpack.c.b16 %v97, %v84
  %v137 = vpack.c.b16 %v111, %v98
  %v138 = vpack.c.b16 %v112, %v99
  %v139 = vpack.c.b16 %v113, %v100
  %v140 = vpack.c.b16 %v114, %v101
  %v141 = vpack.c.b16 %v115, %v102
  %v142 = vpack.c.b16 %v116, %v103
  %v143 = vpack.c.b16 %v117, %v104
  %v144 = vpack.c.b16 %v118, %v105
  %v145 = vpack.c.b16 %v119, %v106
  %v146 = vpack.c.b16 %v120, %v107
  %v147 = vpack.c.b16 %v121, %v108
  %v148 = vpack.c.b16 %v122, %v109
  %v149 = vpack.c.b16 %v123, %v110
  %vm163 = vcmask 203776
  %v165 = vsel %vm163, %v15, 0
  %vm167 = vcmask 1043456
  %vm168 = vcmask 1044480
  %v169 = vsel %vm167, 4294967295, 65535
  %v170 = vsel %vm168, %v169, 0
  %v172 = vand.u32 %v137, %v170
  %v175 = vand.u32 %v138, %v170
  %v178 = vand.u32 %v139, %v170
  %v181 = vand.u32 %v140, %v170
  %v184 = vand.u32 %v141, %v170
  %v187 = vand.u32 %v142, %v170
  %v190 = vand.u32 %v143, %v170
  %v193 = vand.u32 %v144, %v170
  %v196 = vand.u32 %v145, %v170
  %v199 = vand.u32 %v146, %v170
  %v202 = vand.u32 %v147, %v170
  %v205 = vand.u32 %v148, %v170
  %v208 = vand.u32 %v149, %v170
  %210 = vmatprep.subr.bf16.mxu0 0
  %211 = vmatpush1.bf16.msra.mxu0 0
  %212 = vmatprep.subr.bf16.mxu0 0
  %213 = vmatpush1.bf16.msra.mxu0 0
  %214 = vmatprep.subr.bf16.mxu0 0
  %215 = vmatpush1.bf16.msra.mxu0 0
  %216 = vmatprep.subr.bf16.mxu0 0
  %217 = vmatpush1.bf16.msra.mxu0 0
  %218 = vmatprep.subr.bf16.mxu0 0
  %219 = vmatpush1.bf16.msra.mxu0 0
  %220 = vmatprep.subr.bf16.mxu0 0
  %221 = vmatpush1.bf16.msra.mxu0 0
  %222 = vmatprep.subr.bf16.mxu0 %v175
  %223 = vmatpush1.bf16.msra.mxu0 %v172
  %224 = vmatprep.subr.bf16.mxu0 %v125
  %225 = vmatpush1.bf16.msra.mxu0 %v124
  %226 = vmatprep.subr.bf16.mxu0 0
  %227 = vmatpush2.bf16.msra.mxu0 0
  %228 = vmatprep.subr.bf16.mxu0 0
  %229 = vmatpush2.bf16.msra.mxu0 0
  %230 = vmatprep.subr.bf16.mxu0 0
  %231 = vmatpush2.bf16.msra.mxu0 0
  %232 = vmatprep.subr.bf16.mxu0 0
  %233 = vmatpush2.bf16.msra.mxu0 0
  %234 = vmatprep.subr.bf16.mxu0 0
  %235 = vmatpush2.bf16.msra.mxu0 0
  %236 = vmatprep.subr.bf16.mxu0 0
  %237 = vmatpush2.bf16.msra.mxu0 0
  %238 = vmatprep.subr.bf16.mxu0 0
  %239 = vmatpush2.bf16.msra.mxu0 0
  %240 = vmatprep.subr.bf16.mxu0 0
  %241 = vmatpush2.bf16.msra.mxu0 0
  %242 = vmatprep.mubr.bf16.mxu0 0
  %243 = vmatmul.mubr.bf16.gmra.mxu0 %v165
  %v244 = vpop.f32.mrf.mxu0
  %v245 = vadd.f32 0.0, %v244
  %v246 = vpop.f32.mrf.mxu0
  %v247 = vadd.f32 0.0, %v246
  %v248 = vpop.f32.mrf.mxu0
  %v249 = vpop.f32.mrf.mxu0
  %250 = vdwg.mxu0
  %251 = vmatprep.subr.bf16.mxu0 0
  %252 = vmatpush1.bf16.msra.mxu0 0
  %253 = vmatprep.subr.bf16.mxu0 0
  %254 = vmatpush1.bf16.msra.mxu0 0
  %255 = vmatprep.subr.bf16.mxu0 0
  %256 = vmatpush1.bf16.msra.mxu0 0
  %257 = vmatprep.subr.bf16.mxu0 0
  %258 = vmatpush1.bf16.msra.mxu0 0
  %259 = vmatprep.subr.bf16.mxu0 0
  %260 = vmatpush1.bf16.msra.mxu0 0
  %261 = vmatprep.subr.bf16.mxu0 0
  %262 = vmatpush1.bf16.msra.mxu0 0
  %263 = vmatprep.subr.bf16.mxu0 %v181
  %264 = vmatpush1.bf16.msra.mxu0 %v178
  %265 = vmatprep.subr.bf16.mxu0 %v127
  %266 = vmatpush1.bf16.msra.mxu0 %v126
  %267 = vmatprep.subr.bf16.mxu0 0
  %268 = vmatpush2.bf16.msra.mxu0 0
  %269 = vmatprep.subr.bf16.mxu0 0
  %270 = vmatpush2.bf16.msra.mxu0 0
  %271 = vmatprep.subr.bf16.mxu0 0
  %272 = vmatpush2.bf16.msra.mxu0 0
  %273 = vmatprep.subr.bf16.mxu0 0
  %274 = vmatpush2.bf16.msra.mxu0 0
  %275 = vmatprep.subr.bf16.mxu0 0
  %276 = vmatpush2.bf16.msra.mxu0 0
  %277 = vmatprep.subr.bf16.mxu0 0
  %278 = vmatpush2.bf16.msra.mxu0 0
  %279 = vmatprep.subr.bf16.mxu0 0
  %280 = vmatpush2.bf16.msra.mxu0 0
  %281 = vmatprep.subr.bf16.mxu0 0
  %282 = vmatpush2.bf16.msra.mxu0 0
  %283 = vmatprep.mubr.bf16.mxu0 0
  %284 = vmatmul.mubr.bf16.gmra.mxu0 %v165
  %v285 = vpop.f32.mrf.mxu0
  %v286 = vadd.f32 0.0, %v285
  %v287 = vpop.f32.mrf.mxu0
  %v288 = vadd.f32 0.0, %v287
  %v289 = vpop.f32.mrf.mxu0
  %v290 = vpop.f32.mrf.mxu0
  %291 = vdwg.mxu0
  %292 = vmatprep.subr.bf16.mxu0 0
  %293 = vmatpush1.bf16.msra.mxu0 0
  %294 = vmatprep.subr.bf16.mxu0 0
  %295 = vmatpush1.bf16.msra.mxu0 0
  %296 = vmatprep.subr.bf16.mxu0 0
  %297 = vmatpush1.bf16.msra.mxu0 0
  %298 = vmatprep.subr.bf16.mxu0 0
  %299 = vmatpush1.bf16.msra.mxu0 0
  %300 = vmatprep.subr.bf16.mxu0 0
  %301 = vmatpush1.bf16.msra.mxu0 0
  %302 = vmatprep.subr.bf16.mxu0 0
  %303 = vmatpush1.bf16.msra.mxu0 0
  %304 = vmatprep.subr.bf16.mxu0 %v187
  %305 = vmatpush1.bf16.msra.mxu0 %v184
  %306 = vmatprep.subr.bf16.mxu0 %v129
  %307 = vmatpush1.bf16.msra.mxu0 %v128
  %308 = vmatprep.subr.bf16.mxu0 0
  %309 = vmatpush2.bf16.msra.mxu0 0
  %310 = vmatprep.subr.bf16.mxu0 0
  %311 = vmatpush2.bf16.msra.mxu0 0
  %312 = vmatprep.subr.bf16.mxu0 0
  %313 = vmatpush2.bf16.msra.mxu0 0
  %314 = vmatprep.subr.bf16.mxu0 0
  %315 = vmatpush2.bf16.msra.mxu0 0
  %316 = vmatprep.subr.bf16.mxu0 0
  %317 = vmatpush2.bf16.msra.mxu0 0
  %318 = vmatprep.subr.bf16.mxu0 0
  %319 = vmatpush2.bf16.msra.mxu0 0
  %320 = vmatprep.subr.bf16.mxu0 0
  %321 = vmatpush2.bf16.msra.mxu0 0
  %322 = vmatprep.subr.bf16.mxu0 0
  %323 = vmatpush2.bf16.msra.mxu0 0
  %324 = vmatprep.mubr.bf16.mxu0 0
  %325 = vmatmul.mubr.bf16.gmra.mxu0 %v165
  %v326 = vpop.f32.mrf.mxu0
  %v327 = vadd.f32 0.0, %v326
  %v328 = vpop.f32.mrf.mxu0
  %v329 = vadd.f32 0.0, %v328
  %v330 = vpop.f32.mrf.mxu0
  %v331 = vpop.f32.mrf.mxu0
  %332 = vdwg.mxu0
  %333 = vmatprep.subr.bf16.mxu0 0
  %334 = vmatpush1.bf16.msra.mxu0 0
  %335 = vmatprep.subr.bf16.mxu0 0
  %336 = vmatpush1.bf16.msra.mxu0 0
  %337 = vmatprep.subr.bf16.mxu0 0
  %338 = vmatpush1.bf16.msra.mxu0 0
  %339 = vmatprep.subr.bf16.mxu0 0
  %340 = vmatpush1.bf16.msra.mxu0 0
  %341 = vmatprep.subr.bf16.mxu0 0
  %342 = vmatpush1.bf16.msra.mxu0 0
  %343 = vmatprep.subr.bf16.mxu0 0
  %344 = vmatpush1.bf16.msra.mxu0 0
  %345 = vmatprep.subr.bf16.mxu0 %v193
  %346 = vmatpush1.bf16.msra.mxu0 %v190
  %347 = vmatprep.subr.bf16.mxu0 %v131
  %348 = vmatpush1.bf16.msra.mxu0 %v130
  %349 = vmatprep.subr.bf16.mxu0 0
  %350 = vmatpush2.bf16.msra.mxu0 0
  %351 = vmatprep.subr.bf16.mxu0 0
  %352 = vmatpush2.bf16.msra.mxu0 0
  %353 = vmatprep.subr.bf16.mxu0 0
  %354 = vmatpush2.bf16.msra.mxu0 0
  %355 = vmatprep.subr.bf16.mxu0 0
  %356 = vmatpush2.bf16.msra.mxu0 0
  %357 = vmatprep.subr.bf16.mxu0 0
  %358 = vmatpush2.bf16.msra.mxu0 0
  %359 = vmatprep.subr.bf16.mxu0 0
  %360 = vmatpush2.bf16.msra.mxu0 0
  %361 = vmatprep.subr.bf16.mxu0 0
  %362 = vmatpush2.bf16.msra.mxu0 0
  %363 = vmatprep.subr.bf16.mxu0 0
  %364 = vmatpush2.bf16.msra.mxu0 0
  %365 = vmatprep.mubr.bf16.mxu0 0
  %366 = vmatmul.mubr.bf16.gmra.mxu0 %v165
  %v367 = vpop.f32.mrf.mxu0
  %v368 = vadd.f32 0.0, %v367
  %v369 = vpop.f32.mrf.mxu0
  %v370 = vadd.f32 0.0, %v369
  %v371 = vpop.f32.mrf.mxu0
  %v372 = vpop.f32.mrf.mxu0
  %373 = vdwg.mxu0
  %374 = vmatprep.subr.bf16.mxu0 0
  %375 = vmatpush1.bf16.msra.mxu0 0
  %376 = vmatprep.subr.bf16.mxu0 0
  %377 = vmatpush1.bf16.msra.mxu0 0
  %378 = vmatprep.subr.bf16.mxu0 0
  %379 = vmatpush1.bf16.msra.mxu0 0
  %380 = vmatprep.subr.bf16.mxu0 0
  %381 = vmatpush1.bf16.msra.mxu0 0
  %382 = vmatprep.subr.bf16.mxu0 0
  %383 = vmatpush1.bf16.msra.mxu0 0
  %384 = vmatprep.subr.bf16.mxu0 0
  %385 = vmatpush1.bf16.msra.mxu0 0
  %386 = vmatprep.subr.bf16.mxu0 %v199
  %387 = vmatpush1.bf16.msra.mxu0 %v196
  %388 = vmatprep.subr.bf16.mxu0 %v133
  %389 = vmatpush1.bf16.msra.mxu0 %v132
  %390 = vmatprep.subr.bf16.mxu0 0
  %391 = vmatpush2.bf16.msra.mxu0 0
  %392 = vmatprep.subr.bf16.mxu0 0
  %393 = vmatpush2.bf16.msra.mxu0 0
  %394 = vmatprep.subr.bf16.mxu0 0
  %395 = vmatpush2.bf16.msra.mxu0 0
  %396 = vmatprep.subr.bf16.mxu0 0
  %397 = vmatpush2.bf16.msra.mxu0 0
  %398 = vmatprep.subr.bf16.mxu0 0
  %399 = vmatpush2.bf16.msra.mxu0 0
  %400 = vmatprep.subr.bf16.mxu0 0
  %401 = vmatpush2.bf16.msra.mxu0 0
  %402 = vmatprep.subr.bf16.mxu0 0
  %403 = vmatpush2.bf16.msra.mxu0 0
  %404 = vmatprep.subr.bf16.mxu0 0
  %405 = vmatpush2.bf16.msra.mxu0 0
  %406 = vmatprep.mubr.bf16.mxu0 0
  %407 = vmatmul.mubr.bf16.gmra.mxu0 %v165
  %v408 = vpop.f32.mrf.mxu0
  %v409 = vadd.f32 0.0, %v408
  %v410 = vpop.f32.mrf.mxu0
  %v411 = vadd.f32 0.0, %v410
  %v412 = vpop.f32.mrf.mxu0
  %v413 = vpop.f32.mrf.mxu0
  %414 = vdwg.mxu0
  %415 = vmatprep.subr.bf16.mxu0 0
  %416 = vmatpush1.bf16.msra.mxu0 0
  %417 = vmatprep.subr.bf16.mxu0 0
  %418 = vmatpush1.bf16.msra.mxu0 0
  %419 = vmatprep.subr.bf16.mxu0 0
  %420 = vmatpush1.bf16.msra.mxu0 0
  %421 = vmatprep.subr.bf16.mxu0 0
  %422 = vmatpush1.bf16.msra.mxu0 0
  %423 = vmatprep.subr.bf16.mxu0 0
  %424 = vmatpush1.bf16.msra.mxu0 0
  %425 = vmatprep.subr.bf16.mxu0 0
  %426 = vmatpush1.bf16.msra.mxu0 0
  %427 = vmatprep.subr.bf16.mxu0 %v205
  %428 = vmatpush1.bf16.msra.mxu0 %v202
  %429 = vmatprep.subr.bf16.mxu0 %v135
  %430 = vmatpush1.bf16.msra.mxu0 %v134
  %431 = vmatprep.subr.bf16.mxu0 0
  %432 = vmatpush2.bf16.msra.mxu0 0
  %433 = vmatprep.subr.bf16.mxu0 0
  %434 = vmatpush2.bf16.msra.mxu0 0
  %435 = vmatprep.subr.bf16.mxu0 0
  %436 = vmatpush2.bf16.msra.mxu0 0
  %437 = vmatprep.subr.bf16.mxu0 0
  %438 = vmatpush2.bf16.msra.mxu0 0
  %439 = vmatprep.subr.bf16.mxu0 0
  %440 = vmatpush2.bf16.msra.mxu0 0
  %441 = vmatprep.subr.bf16.mxu0 0
  %442 = vmatpush2.bf16.msra.mxu0 0
  %443 = vmatprep.subr.bf16.mxu0 0
  %444 = vmatpush2.bf16.msra.mxu0 0
  %445 = vmatprep.subr.bf16.mxu0 0
  %446 = vmatpush2.bf16.msra.mxu0 0
  %447 = vmatprep.mubr.bf16.mxu0 0
  %448 = vmatmul.mubr.bf16.gmra.mxu0 %v165
  %v449 = vpop.f32.mrf.mxu0
  %v450 = vadd.f32 0.0, %v449
  %v451 = vpop.f32.mrf.mxu0
  %v452 = vadd.f32 0.0, %v451
  %v453 = vpop.f32.mrf.mxu0
  %v454 = vpop.f32.mrf.mxu0
  %455 = vdwg.mxu0
  %456 = vmatprep.subr.bf16.mxu0 0
  %457 = vmatpush1.bf16.msra.mxu0 0
  %458 = vmatprep.subr.bf16.mxu0 0
  %459 = vmatpush1.bf16.msra.mxu0 0
  %460 = vmatprep.subr.bf16.mxu0 0
  %461 = vmatpush1.bf16.msra.mxu0 0
  %462 = vmatprep.subr.bf16.mxu0 0
  %463 = vmatpush1.bf16.msra.mxu0 0
  %464 = vmatprep.subr.bf16.mxu0 0
  %465 = vmatpush1.bf16.msra.mxu0 0
  %466 = vmatprep.subr.bf16.mxu0 0
  %467 = vmatpush1.bf16.msra.mxu0 0
  %468 = vmatprep.subr.bf16.mxu0 0
  %469 = vmatpush1.bf16.msra.mxu0 %v208
  %470 = vmatprep.subr.bf16.mxu0 0
  %471 = vmatpush1.bf16.msra.mxu0 %v136
  %472 = vmatprep.subr.bf16.mxu0 0
  %473 = vmatpush2.bf16.msra.mxu0 0
  %474 = vmatprep.subr.bf16.mxu0 0
  %475 = vmatpush2.bf16.msra.mxu0 0
  %476 = vmatprep.subr.bf16.mxu0 0
  %477 = vmatpush2.bf16.msra.mxu0 0
  %478 = vmatprep.subr.bf16.mxu0 0
  %479 = vmatpush2.bf16.msra.mxu0 0
  %480 = vmatprep.subr.bf16.mxu0 0
  %481 = vmatpush2.bf16.msra.mxu0 0
  %482 = vmatprep.subr.bf16.mxu0 0
  %483 = vmatpush2.bf16.msra.mxu0 0
  %484 = vmatprep.subr.bf16.mxu0 0
  %485 = vmatpush2.bf16.msra.mxu0 0
  %486 = vmatprep.subr.bf16.mxu0 0
  %487 = vmatpush2.bf16.msra.mxu0 0
  %488 = vmatprep.mubr.bf16.mxu0 0
  %489 = vmatmul.mubr.bf16.gmra.mxu0 %v165
  %v490 = vpop.f32.mrf.mxu0
  %v491 = vadd.f32 0.0, %v490
  %v492 = vpop.f32.mrf.mxu0
  %v493 = vpop.f32.mrf.mxu0
  %v494 = vpop.f32.mrf.mxu0
  %495 = vdwg.mxu0
  %s496 = scalar_lea.vmem %s0, 208
  %v497 = vld [vmem:[%s496] sm:$0xff]
  %v498 = vld [vmem:[%s496 + $0x8] sm:$0xff]
  %v499 = vld [vmem:[%s496 + $0x10] sm:$0xff]
  %v500 = vld [vmem:[%s496 + $0x18] sm:$0xff]
  %v501 = vld [vmem:[%s496 + $0x20] sm:$0xff]
  %v502 = vld [vmem:[%s496 + $0x28] sm:$0xff]
  %v503 = vld [vmem:[%s496 + $0x30] sm:$0xf]
  %v504 = vld [vmem:[%s496 + $0x34] sm:$0xff]
  %v505 = vld [vmem:[%s496 + $0x3c] sm:$0xff]
  %v506 = vld [vmem:[%s496 + $0x44] sm:$0xff]
  %v507 = vld [vmem:[%s496 + $0x4c] sm:$0xff]
  %v508 = vld [vmem:[%s496 + $0x54] sm:$0xff]
  %v509 = vld [vmem:[%s496 + $0x5c] sm:$0xff]
  %v510 = vld [vmem:[%s496 + $0x64] sm:$0xf]
  %v511 = vld [vmem:[%s496 + $0x68] sm:$0xff]
  %v512 = vld [vmem:[%s496 + $0x70] sm:$0xff]
  %v513 = vld [vmem:[%s496 + $0x78] sm:$0xff]
  %v514 = vld [vmem:[%s496 + $0x80] sm:$0xff]
  %v515 = vld [vmem:[%s496 + $0x88] sm:$0xff]
  %v516 = vld [vmem:[%s496 + $0x90] sm:$0xff]
  %v517 = vld [vmem:[%s496 + $0x98] sm:$0xf]
  %v518 = vld [vmem:[%s496 + $0x9c] sm:$0x11]
  %v519 = vld [vmem:[%s496 + $0xa4] sm:$0x11]
  %v520 = vld [vmem:[%s496 + $0xac] sm:$0x11]
  %v521 = vld [vmem:[%s496 + $0xb4] sm:$0x11]
  %v522 = vld [vmem:[%s496 + $0xbc] sm:$0x11]
  %v523 = vld [vmem:[%s496 + $0xc4] sm:$0x11]
  %v524 = vld [vmem:[%s496 + $0xcc] sm:$0x1]
  %v553 = vunpack.c.l.b16 %v497
  %v554 = vunpack.c.h.b16 %v497
  %v555 = vunpack.c.l.b16 %v498
  %v556 = vunpack.c.h.b16 %v498
  %v557 = vunpack.c.l.b16 %v499
  %v558 = vunpack.c.h.b16 %v499
  %v559 = vunpack.c.l.b16 %v500
  %v560 = vunpack.c.h.b16 %v500
  %v561 = vunpack.c.l.b16 %v501
  %v562 = vunpack.c.h.b16 %v501
  %v563 = vunpack.c.l.b16 %v502
  %v564 = vunpack.c.h.b16 %v502
  %v565 = vunpack.c.l.b16 %v503
  %v566 = vunpack.c.l.b16 %v504
  %v567 = vunpack.c.h.b16 %v504
  %v568 = vunpack.c.l.b16 %v505
  %v569 = vunpack.c.h.b16 %v505
  %v570 = vunpack.c.l.b16 %v506
  %v571 = vunpack.c.h.b16 %v506
  %v572 = vunpack.c.l.b16 %v507
  %v573 = vunpack.c.h.b16 %v507
  %v574 = vunpack.c.l.b16 %v508
  %v575 = vunpack.c.h.b16 %v508
  %v576 = vunpack.c.l.b16 %v509
  %v577 = vunpack.c.h.b16 %v509
  %v578 = vunpack.c.l.b16 %v510
  %v579 = vunpack.c.l.b16 %v511
  %v580 = vunpack.c.h.b16 %v511
  %v581 = vunpack.c.l.b16 %v512
  %v582 = vunpack.c.h.b16 %v512
  %v583 = vunpack.c.l.b16 %v513
  %v584 = vunpack.c.h.b16 %v513
  %v585 = vunpack.c.l.b16 %v514
  %v586 = vunpack.c.h.b16 %v514
  %v587 = vunpack.c.l.b16 %v515
  %v588 = vunpack.c.h.b16 %v515
  %v589 = vunpack.c.l.b16 %v516
  %v590 = vunpack.c.h.b16 %v516
  %v591 = vunpack.c.l.b16 %v517
  %v592 = vunpack.c.l.b16 %v518
  %v593 = vunpack.c.h.b16 %v518
  %v594 = vunpack.c.l.b16 %v519
  %v595 = vunpack.c.h.b16 %v519
  %v596 = vunpack.c.l.b16 %v520
  %v597 = vunpack.c.h.b16 %v520
  %v598 = vunpack.c.l.b16 %v521
  %v599 = vunpack.c.h.b16 %v521
  %v600 = vunpack.c.l.b16 %v522
  %v601 = vunpack.c.h.b16 %v522
  %v602 = vunpack.c.l.b16 %v523
  %v603 = vunpack.c.h.b16 %v523
  %v604 = vunpack.c.l.b16 %v524
  %v605 = vpack.c.b16 %v566, %v553
  %v606 = vpack.c.b16 %v567, %v554
  %v607 = vpack.c.b16 %v568, %v555
  %v608 = vpack.c.b16 %v569, %v556
  %v609 = vpack.c.b16 %v570, %v557
  %v610 = vpack.c.b16 %v571, %v558
  %v611 = vpack.c.b16 %v572, %v559
  %v612 = vpack.c.b16 %v573, %v560
  %v613 = vpack.c.b16 %v574, %v561
  %v614 = vpack.c.b16 %v575, %v562
  %v615 = vpack.c.b16 %v576, %v563
  %v616 = vpack.c.b16 %v577, %v564
  %v617 = vpack.c.b16 %v578, %v565
  %v618 = vpack.c.b16 %v592, %v579
  %v619 = vpack.c.b16 %v593, %v580
  %v620 = vpack.c.b16 %v594, %v581
  %v621 = vpack.c.b16 %v595, %v582
  %v622 = vpack.c.b16 %v596, %v583
  %v623 = vpack.c.b16 %v597, %v584
  %v624 = vpack.c.b16 %v598, %v585
  %v625 = vpack.c.b16 %v599, %v586
  %v626 = vpack.c.b16 %v600, %v587
  %v627 = vpack.c.b16 %v601, %v588
  %v628 = vpack.c.b16 %v602, %v589
  %v629 = vpack.c.b16 %v603, %v590
  %v630 = vpack.c.b16 %v604, %v591
  %v645 = vand.u32 %v618, %v170
  %v648 = vand.u32 %v619, %v170
  %v651 = vand.u32 %v620, %v170
  %v654 = vand.u32 %v621, %v170
  %v657 = vand.u32 %v622, %v170
  %v660 = vand.u32 %v623, %v170
  %v663 = vand.u32 %v624, %v170
  %v666 = vand.u32 %v625, %v170
  %v669 = vand.u32 %v626, %v170
  %v672 = vand.u32 %v627, %v170
  %v675 = vand.u32 %v628, %v170
  %v678 = vand.u32 %v629, %v170
  %v681 = vand.u32 %v630, %v170
  %683 = vmatprep.subr.bf16.mxu0 0
  %684 = vmatpush1.bf16.msra.mxu0 0
  %685 = vmatprep.subr.bf16.mxu0 0
  %686 = vmatpush1.bf16.msra.mxu0 0
  %687 = vmatprep.subr.bf16.mxu0 0
  %688 = vmatpush1.bf16.msra.mxu0 0
  %689 = vmatprep.subr.bf16.mxu0 0
  %690 = vmatpush1.bf16.msra.mxu0 0
  %691 = vmatprep.subr.bf16.mxu0 0
  %692 = vmatpush1.bf16.msra.mxu0 0
  %693 = vmatprep.subr.bf16.mxu0 0
  %694 = vmatpush1.bf16.msra.mxu0 0
  %695 = vmatprep.subr.bf16.mxu0 %v648
  %696 = vmatpush1.bf16.msra.mxu0 %v645
  %697 = vmatprep.subr.bf16.mxu0 %v606
  %698 = vmatpush1.bf16.msra.mxu0 %v605
  %699 = vmatprep.subr.bf16.mxu0 0
  %700 = vmatpush2.bf16.msra.mxu0 0
  %701 = vmatprep.subr.bf16.mxu0 0
  %702 = vmatpush2.bf16.msra.mxu0 0
  %703 = vmatprep.subr.bf16.mxu0 0
  %704 = vmatpush2.bf16.msra.mxu0 0
  %705 = vmatprep.subr.bf16.mxu0 0
  %706 = vmatpush2.bf16.msra.mxu0 0
  %707 = vmatprep.subr.bf16.mxu0 0
  %708 = vmatpush2.bf16.msra.mxu0 0
  %709 = vmatprep.subr.bf16.mxu0 0
  %710 = vmatpush2.bf16.msra.mxu0 0
  %711 = vmatprep.subr.bf16.mxu0 0
  %712 = vmatpush2.bf16.msra.mxu0 0
  %713 = vmatprep.subr.bf16.mxu0 0
  %714 = vmatpush2.bf16.msra.mxu0 0
  %715 = vmatprep.mubr.bf16.mxu0 0
  %716 = vmatmul.mubr.bf16.gmra.mxu0 %v165
  %v717 = vpop.f32.mrf.mxu0
  %v718 = vadd.f32 0.0, %v717
  %v719 = vpop.f32.mrf.mxu0
  %v720 = vadd.f32 0.0, %v719
  %v721 = vpop.f32.mrf.mxu0
  %v722 = vpop.f32.mrf.mxu0
  %723 = vdwg.mxu0
  %724 = vmatprep.subr.bf16.mxu0 0
  %725 = vmatpush1.bf16.msra.mxu0 0
  %726 = vmatprep.subr.bf16.mxu0 0
  %727 = vmatpush1.bf16.msra.mxu0 0
  %728 = vmatprep.subr.bf16.mxu0 0
  %729 = vmatpush1.bf16.msra.mxu0 0
  %730 = vmatprep.subr.bf16.mxu0 0
  %731 = vmatpush1.bf16.msra.mxu0 0
  %732 = vmatprep.subr.bf16.mxu0 0
  %733 = vmatpush1.bf16.msra.mxu0 0
  %734 = vmatprep.subr.bf16.mxu0 0
  %735 = vmatpush1.bf16.msra.mxu0 0
  %736 = vmatprep.subr.bf16.mxu0 %v654
  %737 = vmatpush1.bf16.msra.mxu0 %v651
  %738 = vmatprep.subr.bf16.mxu0 %v608
  %739 = vmatpush1.bf16.msra.mxu0 %v607
  %740 = vmatprep.subr.bf16.mxu0 0
  %741 = vmatpush2.bf16.msra.mxu0 0
  %742 = vmatprep.subr.bf16.mxu0 0
  %743 = vmatpush2.bf16.msra.mxu0 0
  %744 = vmatprep.subr.bf16.mxu0 0
  %745 = vmatpush2.bf16.msra.mxu0 0
  %746 = vmatprep.subr.bf16.mxu0 0
  %747 = vmatpush2.bf16.msra.mxu0 0
  %748 = vmatprep.subr.bf16.mxu0 0
  %749 = vmatpush2.bf16.msra.mxu0 0
  %750 = vmatprep.subr.bf16.mxu0 0
  %751 = vmatpush2.bf16.msra.mxu0 0
  %752 = vmatprep.subr.bf16.mxu0 0
  %753 = vmatpush2.bf16.msra.mxu0 0
  %754 = vmatprep.subr.bf16.mxu0 0
  %755 = vmatpush2.bf16.msra.mxu0 0
  %756 = vmatprep.mubr.bf16.mxu0 0
  %757 = vmatmul.mubr.bf16.gmra.mxu0 %v165
  %v758 = vpop.f32.mrf.mxu0
  %v759 = vadd.f32 0.0, %v758
  %v760 = vpop.f32.mrf.mxu0
  %v761 = vadd.f32 0.0, %v760
  %v762 = vpop.f32.mrf.mxu0
  %v763 = vpop.f32.mrf.mxu0
  %764 = vdwg.mxu0
  %765 = vmatprep.subr.bf16.mxu0 0
  %766 = vmatpush1.bf16.msra.mxu0 0
  %767 = vmatprep.subr.bf16.mxu0 0
  %768 = vmatpush1.bf16.msra.mxu0 0
  %769 = vmatprep.subr.bf16.mxu0 0
  %770 = vmatpush1.bf16.msra.mxu0 0
  %771 = vmatprep.subr.bf16.mxu0 0
  %772 = vmatpush1.bf16.msra.mxu0 0
  %773 = vmatprep.subr.bf16.mxu0 0
  %774 = vmatpush1.bf16.msra.mxu0 0
  %775 = vmatprep.subr.bf16.mxu0 0
  %776 = vmatpush1.bf16.msra.mxu0 0
  %777 = vmatprep.subr.bf16.mxu0 %v660
  %778 = vmatpush1.bf16.msra.mxu0 %v657
  %779 = vmatprep.subr.bf16.mxu0 %v610
  %780 = vmatpush1.bf16.msra.mxu0 %v609
  %781 = vmatprep.subr.bf16.mxu0 0
  %782 = vmatpush2.bf16.msra.mxu0 0
  %783 = vmatprep.subr.bf16.mxu0 0
  %784 = vmatpush2.bf16.msra.mxu0 0
  %785 = vmatprep.subr.bf16.mxu0 0
  %786 = vmatpush2.bf16.msra.mxu0 0
  %787 = vmatprep.subr.bf16.mxu0 0
  %788 = vmatpush2.bf16.msra.mxu0 0
  %789 = vmatprep.subr.bf16.mxu0 0
  %790 = vmatpush2.bf16.msra.mxu0 0
  %791 = vmatprep.subr.bf16.mxu0 0
  %792 = vmatpush2.bf16.msra.mxu0 0
  %793 = vmatprep.subr.bf16.mxu0 0
  %794 = vmatpush2.bf16.msra.mxu0 0
  %795 = vmatprep.subr.bf16.mxu0 0
  %796 = vmatpush2.bf16.msra.mxu0 0
  %797 = vmatprep.mubr.bf16.mxu0 0
  %798 = vmatmul.mubr.bf16.gmra.mxu0 %v165
  %v799 = vpop.f32.mrf.mxu0
  %v800 = vadd.f32 0.0, %v799
  %v801 = vpop.f32.mrf.mxu0
  %v802 = vadd.f32 0.0, %v801
  %v803 = vpop.f32.mrf.mxu0
  %v804 = vpop.f32.mrf.mxu0
  %805 = vdwg.mxu0
  %806 = vmatprep.subr.bf16.mxu0 0
  %807 = vmatpush1.bf16.msra.mxu0 0
  %808 = vmatprep.subr.bf16.mxu0 0
  %809 = vmatpush1.bf16.msra.mxu0 0
  %810 = vmatprep.subr.bf16.mxu0 0
  %811 = vmatpush1.bf16.msra.mxu0 0
  %812 = vmatprep.subr.bf16.mxu0 0
  %813 = vmatpush1.bf16.msra.mxu0 0
  %814 = vmatprep.subr.bf16.mxu0 0
  %815 = vmatpush1.bf16.msra.mxu0 0
  %816 = vmatprep.subr.bf16.mxu0 0
  %817 = vmatpush1.bf16.msra.mxu0 0
  %818 = vmatprep.subr.bf16.mxu0 %v666
  %819 = vmatpush1.bf16.msra.mxu0 %v663
  %820 = vmatprep.subr.bf16.mxu0 %v612
  %821 = vmatpush1.bf16.msra.mxu0 %v611
  %822 = vmatprep.subr.bf16.mxu0 0
  %823 = vmatpush2.bf16.msra.mxu0 0
  %824 = vmatprep.subr.bf16.mxu0 0
  %825 = vmatpush2.bf16.msra.mxu0 0
  %826 = vmatprep.subr.bf16.mxu0 0
  %827 = vmatpush2.bf16.msra.mxu0 0
  %828 = vmatprep.subr.bf16.mxu0 0
  %829 = vmatpush2.bf16.msra.mxu0 0
  %830 = vmatprep.subr.bf16.mxu0 0
  %831 = vmatpush2.bf16.msra.mxu0 0
  %832 = vmatprep.subr.bf16.mxu0 0
  %833 = vmatpush2.bf16.msra.mxu0 0
  %834 = vmatprep.subr.bf16.mxu0 0
  %835 = vmatpush2.bf16.msra.mxu0 0
  %836 = vmatprep.subr.bf16.mxu0 0
  %837 = vmatpush2.bf16.msra.mxu0 0
  %838 = vmatprep.mubr.bf16.mxu0 0
  %839 = vmatmul.mubr.bf16.gmra.mxu0 %v165
  %v840 = vpop.f32.mrf.mxu0
  %v841 = vadd.f32 0.0, %v840
  %v842 = vpop.f32.mrf.mxu0
  %v843 = vadd.f32 0.0, %v842
  %v844 = vpop.f32.mrf.mxu0
  %v845 = vpop.f32.mrf.mxu0
  %846 = vdwg.mxu0
  %847 = vmatprep.subr.bf16.mxu0 0
  %848 = vmatpush1.bf16.msra.mxu0 0
  %849 = vmatprep.subr.bf16.mxu0 0
  %850 = vmatpush1.bf16.msra.mxu0 0
  %851 = vmatprep.subr.bf16.mxu0 0
  %852 = vmatpush1.bf16.msra.mxu0 0
  %853 = vmatprep.subr.bf16.mxu0 0
  %854 = vmatpush1.bf16.msra.mxu0 0
  %855 = vmatprep.subr.bf16.mxu0 0
  %856 = vmatpush1.bf16.msra.mxu0 0
  %857 = vmatprep.subr.bf16.mxu0 0
  %858 = vmatpush1.bf16.msra.mxu0 0
  %859 = vmatprep.subr.bf16.mxu0 %v672
  %860 = vmatpush1.bf16.msra.mxu0 %v669
  %861 = vmatprep.subr.bf16.mxu0 %v614
  %862 = vmatpush1.bf16.msra.mxu0 %v613
  %863 = vmatprep.subr.bf16.mxu0 0
  %864 = vmatpush2.bf16.msra.mxu0 0
  %865 = vmatprep.subr.bf16.mxu0 0
  %866 = vmatpush2.bf16.msra.mxu0 0
  %867 = vmatprep.subr.bf16.mxu0 0
  %868 = vmatpush2.bf16.msra.mxu0 0
  %869 = vmatprep.subr.bf16.mxu0 0
  %870 = vmatpush2.bf16.msra.mxu0 0
  %871 = vmatprep.subr.bf16.mxu0 0
  %872 = vmatpush2.bf16.msra.mxu0 0
  %873 = vmatprep.subr.bf16.mxu0 0
  %874 = vmatpush2.bf16.msra.mxu0 0
  %875 = vmatprep.subr.bf16.mxu0 0
  %876 = vmatpush2.bf16.msra.mxu0 0
  %877 = vmatprep.subr.bf16.mxu0 0
  %878 = vmatpush2.bf16.msra.mxu0 0
  %879 = vmatprep.mubr.bf16.mxu0 0
  %880 = vmatmul.mubr.bf16.gmra.mxu0 %v165
  %v881 = vpop.f32.mrf.mxu0
  %v882 = vadd.f32 0.0, %v881
  %v883 = vpop.f32.mrf.mxu0
  %v884 = vadd.f32 0.0, %v883
  %v885 = vpop.f32.mrf.mxu0
  %v886 = vpop.f32.mrf.mxu0
  %887 = vdwg.mxu0
  %888 = vmatprep.subr.bf16.mxu0 0
  %889 = vmatpush1.bf16.msra.mxu0 0
  %890 = vmatprep.subr.bf16.mxu0 0
  %891 = vmatpush1.bf16.msra.mxu0 0
  %892 = vmatprep.subr.bf16.mxu0 0
  %893 = vmatpush1.bf16.msra.mxu0 0
  %894 = vmatprep.subr.bf16.mxu0 0
  %895 = vmatpush1.bf16.msra.mxu0 0
  %896 = vmatprep.subr.bf16.mxu0 0
  %897 = vmatpush1.bf16.msra.mxu0 0
  %898 = vmatprep.subr.bf16.mxu0 0
  %899 = vmatpush1.bf16.msra.mxu0 0
  %900 = vmatprep.subr.bf16.mxu0 %v678
  %901 = vmatpush1.bf16.msra.mxu0 %v675
  %902 = vmatprep.subr.bf16.mxu0 %v616
  %903 = vmatpush1.bf16.msra.mxu0 %v615
  %904 = vmatprep.subr.bf16.mxu0 0
  %905 = vmatpush2.bf16.msra.mxu0 0
  %906 = vmatprep.subr.bf16.mxu0 0
  %907 = vmatpush2.bf16.msra.mxu0 0
  %908 = vmatprep.subr.bf16.mxu0 0
  %909 = vmatpush2.bf16.msra.mxu0 0
  %910 = vmatprep.subr.bf16.mxu0 0
  %911 = vmatpush2.bf16.msra.mxu0 0
  %912 = vmatprep.subr.bf16.mxu0 0
  %913 = vmatpush2.bf16.msra.mxu0 0
  %914 = vmatprep.subr.bf16.mxu0 0
  %915 = vmatpush2.bf16.msra.mxu0 0
  %916 = vmatprep.subr.bf16.mxu0 0
  %917 = vmatpush2.bf16.msra.mxu0 0
  %918 = vmatprep.subr.bf16.mxu0 0
  %919 = vmatpush2.bf16.msra.mxu0 0
  %920 = vmatprep.mubr.bf16.mxu0 0
  %921 = vmatmul.mubr.bf16.gmra.mxu0 %v165
  %v922 = vpop.f32.mrf.mxu0
  %v923 = vadd.f32 0.0, %v922
  %v924 = vpop.f32.mrf.mxu0
  %v925 = vadd.f32 0.0, %v924
  %v926 = vpop.f32.mrf.mxu0
  %v927 = vpop.f32.mrf.mxu0
  %928 = vdwg.mxu0
  %929 = vmatprep.subr.bf16.mxu0 0
  %930 = vmatpush1.bf16.msra.mxu0 0
  %931 = vmatprep.subr.bf16.mxu0 0
  %932 = vmatpush1.bf16.msra.mxu0 0
  %933 = vmatprep.subr.bf16.mxu0 0
  %934 = vmatpush1.bf16.msra.mxu0 0
  %935 = vmatprep.subr.bf16.mxu0 0
  %936 = vmatpush1.bf16.msra.mxu0 0
  %937 = vmatprep.subr.bf16.mxu0 0
  %938 = vmatpush1.bf16.msra.mxu0 0
  %939 = vmatprep.subr.bf16.mxu0 0
  %940 = vmatpush1.bf16.msra.mxu0 0
  %941 = vmatprep.subr.bf16.mxu0 0
  %942 = vmatpush1.bf16.msra.mxu0 %v681
  %943 = vmatprep.subr.bf16.mxu0 0
  %944 = vmatpush1.bf16.msra.mxu0 %v617
  %945 = vmatprep.subr.bf16.mxu0 0
  %946 = vmatpush2.bf16.msra.mxu0 0
  %947 = vmatprep.subr.bf16.mxu0 0
  %948 = vmatpush2.bf16.msra.mxu0 0
  %949 = vmatprep.subr.bf16.mxu0 0
  %950 = vmatpush2.bf16.msra.mxu0 0
  %951 = vmatprep.subr.bf16.mxu0 0
  %952 = vmatpush2.bf16.msra.mxu0 0
  %953 = vmatprep.subr.bf16.mxu0 0
  %954 = vmatpush2.bf16.msra.mxu0 0
  %955 = vmatprep.subr.bf16.mxu0 0
  %956 = vmatpush2.bf16.msra.mxu0 0
  %957 = vmatprep.subr.bf16.mxu0 0
  %958 = vmatpush2.bf16.msra.mxu0 0
  %959 = vmatprep.subr.bf16.mxu0 0
  %960 = vmatpush2.bf16.msra.mxu0 0
  %961 = vmatprep.mubr.bf16.mxu0 0
  %962 = vmatmul.mubr.bf16.gmra.mxu0 %v165
  %v963 = vpop.f32.mrf.mxu0
  %v964 = vadd.f32 0.0, %v963
  %v965 = vpop.f32.mrf.mxu0
  %v966 = vpop.f32.mrf.mxu0
  %v967 = vpop.f32.mrf.mxu0
  %968 = vdwg.mxu0
  %v969 = vmax.f32 %v245, %v718
  %v970 = vmax.f32 %v247, %v720
  %v971 = vmax.f32 %v286, %v759
  %v972 = vmax.f32 %v288, %v761
  %v973 = vmax.f32 %v327, %v800
  %v974 = vmax.f32 %v329, %v802
  %v975 = vmax.f32 %v368, %v841
  %v976 = vmax.f32 %v370, %v843
  %v977 = vmax.f32 %v409, %v882
  %v978 = vmax.f32 %v411, %v884
  %v979 = vmax.f32 %v450, %v923
  %v980 = vmax.f32 %v452, %v925
  %v981 = vmax.f32 %v491, %v964
  %s982 = scalar_lea.vmem %s0, 416
  %v983 = vld [vmem:[%s982] sm:$0xff]
  %v984 = vld [vmem:[%s982 + $0x8] sm:$0xff]
  %v985 = vld [vmem:[%s982 + $0x10] sm:$0xff]
  %v986 = vld [vmem:[%s982 + $0x18] sm:$0xff]
  %v987 = vld [vmem:[%s982 + $0x20] sm:$0xff]
  %v988 = vld [vmem:[%s982 + $0x28] sm:$0xff]
  %v989 = vld [vmem:[%s982 + $0x30] sm:$0xf]
  %v990 = vld [vmem:[%s982 + $0x34] sm:$0xff]
  %v991 = vld [vmem:[%s982 + $0x3c] sm:$0xff]
  %v992 = vld [vmem:[%s982 + $0x44] sm:$0xff]
  %v993 = vld [vmem:[%s982 + $0x4c] sm:$0xff]
  %v994 = vld [vmem:[%s982 + $0x54] sm:$0xff]
  %v995 = vld [vmem:[%s982 + $0x5c] sm:$0xff]
  %v996 = vld [vmem:[%s982 + $0x64] sm:$0xf]
  %v997 = vld [vmem:[%s982 + $0x68] sm:$0xff]
  %v998 = vld [vmem:[%s982 + $0x70] sm:$0xff]
  %v999 = vld [vmem:[%s982 + $0x78] sm:$0xff]
  %v1000 = vld [vmem:[%s982 + $0x80] sm:$0xff]
  %v1001 = vld [vmem:[%s982 + $0x88] sm:$0xff]
  %v1002 = vld [vmem:[%s982 + $0x90] sm:$0xff]
  %v1003 = vld [vmem:[%s982 + $0x98] sm:$0xf]
  %v1004 = vld [vmem:[%s982 + $0x9c] sm:$0x11]
  %v1005 = vld [vmem:[%s982 + $0xa4] sm:$0x11]
  %v1006 = vld [vmem:[%s982 + $0xac] sm:$0x11]
  %v1007 = vld [vmem:[%s982 + $0xb4] sm:$0x11]
  %v1008 = vld [vmem:[%s982 + $0xbc] sm:$0x11]
  %v1009 = vld [vmem:[%s982 + $0xc4] sm:$0x11]
  %v1010 = vld [vmem:[%s982 + $0xcc] sm:$0x1]
  %v1039 = vunpack.c.l.b16 %v983
  %v1040 = vunpack.c.h.b16 %v983
  %v1041 = vunpack.c.l.b16 %v984
  %v1042 = vunpack.c.h.b16 %v984
  %v1043 = vunpack.c.l.b16 %v985
  %v1044 = vunpack.c.h.b16 %v985
  %v1045 = vunpack.c.l.b16 %v986
  %v1046 = vunpack.c.h.b16 %v986
  %v1047 = vunpack.c.l.b16 %v987
  %v1048 = vunpack.c.h.b16 %v987
  %v1049 = vunpack.c.l.b16 %v988
  %v1050 = vunpack.c.h.b16 %v988
  %v1051 = vunpack.c.l.b16 %v989
  %v1052 = vunpack.c.l.b16 %v990
  %v1053 = vunpack.c.h.b16 %v990
  %v1054 = vunpack.c.l.b16 %v991
  %v1055 = vunpack.c.h.b16 %v991
  %v1056 = vunpack.c.l.b16 %v992
  %v1057 = vunpack.c.h.b16 %v992
  %v1058 = vunpack.c.l.b16 %v993
  %v1059 = vunpack.c.h.b16 %v993
  %v1060 = vunpack.c.l.b16 %v994
  %v1061 = vunpack.c.h.b16 %v994
  %v1062 = vunpack.c.l.b16 %v995
  %v1063 = vunpack.c.h.b16 %v995
  %v1064 = vunpack.c.l.b16 %v996
  %v1065 = vunpack.c.l.b16 %v997
  %v1066 = vunpack.c.h.b16 %v997
  %v1067 = vunpack.c.l.b16 %v998
  %v1068 = vunpack.c.h.b16 %v998
  %v1069 = vunpack.c.l.b16 %v999
  %v1070 = vunpack.c.h.b16 %v999
  %v1071 = vunpack.c.l.b16 %v1000
  %v1072 = vunpack.c.h.b16 %v1000
  %v1073 = vunpack.c.l.b16 %v1001
  %v1074 = vunpack.c.h.b16 %v1001
  %v1075 = vunpack.c.l.b16 %v1002
  %v1076 = vunpack.c.h.b16 %v1002
  %v1077 = vunpack.c.l.b16 %v1003
  %v1078 = vunpack.c.l.b16 %v1004
  %v1079 = vunpack.c.h.b16 %v1004
  %v1080 = vunpack.c.l.b16 %v1005
  %v1081 = vunpack.c.h.b16 %v1005
  %v1082 = vunpack.c.l.b16 %v1006
  %v1083 = vunpack.c.h.b16 %v1006
  %v1084 = vunpack.c.l.b16 %v1007
  %v1085 = vunpack.c.h.b16 %v1007
  %v1086 = vunpack.c.l.b16 %v1008
  %v1087 = vunpack.c.h.b16 %v1008
  %v1088 = vunpack.c.l.b16 %v1009
  %v1089 = vunpack.c.h.b16 %v1009
  %v1090 = vunpack.c.l.b16 %v1010
  %v1091 = vpack.c.b16 %v1052, %v1039
  %v1092 = vpack.c.b16 %v1053, %v1040
  %v1093 = vpack.c.b16 %v1054, %v1041
  %v1094 = vpack.c.b16 %v1055, %v1042
  %v1095 = vpack.c.b16 %v1056, %v1043
  %v1096 = vpack.c.b16 %v1057, %v1044
  %v1097 = vpack.c.b16 %v1058, %v1045
  %v1098 = vpack.c.b16 %v1059, %v1046
  %v1099 = vpack.c.b16 %v1060, %v1047
  %v1100 = vpack.c.b16 %v1061, %v1048
  %v1101 = vpack.c.b16 %v1062, %v1049
  %v1102 = vpack.c.b16 %v1063, %v1050
  %v1103 = vpack.c.b16 %v1064, %v1051
  %v1104 = vpack.c.b16 %v1078, %v1065
  %v1105 = vpack.c.b16 %v1079, %v1066
  %v1106 = vpack.c.b16 %v1080, %v1067
  %v1107 = vpack.c.b16 %v1081, %v1068
  %v1108 = vpack.c.b16 %v1082, %v1069
  %v1109 = vpack.c.b16 %v1083, %v1070
  %v1110 = vpack.c.b16 %v1084, %v1071
  %v1111 = vpack.c.b16 %v1085, %v1072
  %v1112 = vpack.c.b16 %v1086, %v1073
  %v1113 = vpack.c.b16 %v1087, %v1074
  %v1114 = vpack.c.b16 %v1088, %v1075
  %v1115 = vpack.c.b16 %v1089, %v1076
  %v1116 = vpack.c.b16 %v1090, %v1077
  %v1131 = vand.u32 %v1104, %v170
  %v1134 = vand.u32 %v1105, %v170
  %v1137 = vand.u32 %v1106, %v170
  %v1140 = vand.u32 %v1107, %v170
  %v1143 = vand.u32 %v1108, %v170
  %v1146 = vand.u32 %v1109, %v170
  %v1149 = vand.u32 %v1110, %v170
  %v1152 = vand.u32 %v1111, %v170
  %v1155 = vand.u32 %v1112, %v170
  %v1158 = vand.u32 %v1113, %v170
  %v1161 = vand.u32 %v1114, %v170
  %v1164 = vand.u32 %v1115, %v170
  %v1167 = vand.u32 %v1116, %v170
  %1169 = vmatprep.subr.bf16.mxu0 0
  %1170 = vmatpush1.bf16.msra.mxu0 0
  %1171 = vmatprep.subr.bf16.mxu0 0
  %1172 = vmatpush1.bf16.msra.mxu0 0
  %1173 = vmatprep.subr.bf16.mxu0 0
  %1174 = vmatpush1.bf16.msra.mxu0 0
  %1175 = vmatprep.subr.bf16.mxu0 0
  %1176 = vmatpush1.bf16.msra.mxu0 0
  %1177 = vmatprep.subr.bf16.mxu0 0
  %1178 = vmatpush1.bf16.msra.mxu0 0
  %1179 = vmatprep.subr.bf16.mxu0 0
  %1180 = vmatpush1.bf16.msra.mxu0 0
  %1181 = vmatprep.subr.bf16.mxu0 %v1134
  %1182 = vmatpush1.bf16.msra.mxu0 %v1131
  %1183 = vmatprep.subr.bf16.mxu0 %v1092
  %1184 = vmatpush1.bf16.msra.mxu0 %v1091
  %1185 = vmatprep.subr.bf16.mxu0 0
  %1186 = vmatpush2.bf16.msra.mxu0 0
  %1187 = vmatprep.subr.bf16.mxu0 0
  %1188 = vmatpush2.bf16.msra.mxu0 0
  %1189 = vmatprep.subr.bf16.mxu0 0
  %1190 = vmatpush2.bf16.msra.mxu0 0
  %1191 = vmatprep.subr.bf16.mxu0 0
  %1192 = vmatpush2.bf16.msra.mxu0 0
  %1193 = vmatprep.subr.bf16.mxu0 0
  %1194 = vmatpush2.bf16.msra.mxu0 0
  %1195 = vmatprep.subr.bf16.mxu0 0
  %1196 = vmatpush2.bf16.msra.mxu0 0
  %1197 = vmatprep.subr.bf16.mxu0 0
  %1198 = vmatpush2.bf16.msra.mxu0 0
  %1199 = vmatprep.subr.bf16.mxu0 0
  %1200 = vmatpush2.bf16.msra.mxu0 0
  %1201 = vmatprep.mubr.bf16.mxu0 0
  %1202 = vmatmul.mubr.bf16.gmra.mxu0 %v165
  %v1203 = vpop.f32.mrf.mxu0
  %v1204 = vadd.f32 0.0, %v1203
  %v1205 = vpop.f32.mrf.mxu0
  %v1206 = vadd.f32 0.0, %v1205
  %v1207 = vpop.f32.mrf.mxu0
  %v1208 = vpop.f32.mrf.mxu0
  %1209 = vdwg.mxu0
  %1210 = vmatprep.subr.bf16.mxu0 0
  %1211 = vmatpush1.bf16.msra.mxu0 0
  %1212 = vmatprep.subr.bf16.mxu0 0
  %1213 = vmatpush1.bf16.msra.mxu0 0
  %1214 = vmatprep.subr.bf16.mxu0 0
  %1215 = vmatpush1.bf16.msra.mxu0 0
  %1216 = vmatprep.subr.bf16.mxu0 0
  %1217 = vmatpush1.bf16.msra.mxu0 0
  %1218 = vmatprep.subr.bf16.mxu0 0
  %1219 = vmatpush1.bf16.msra.mxu0 0
  %1220 = vmatprep.subr.bf16.mxu0 0
  %1221 = vmatpush1.bf16.msra.mxu0 0
  %1222 = vmatprep.subr.bf16.mxu0 %v1140
  %1223 = vmatpush1.bf16.msra.mxu0 %v1137
  %1224 = vmatprep.subr.bf16.mxu0 %v1094
  %1225 = vmatpush1.bf16.msra.mxu0 %v1093
  %1226 = vmatprep.subr.bf16.mxu0 0
  %1227 = vmatpush2.bf16.msra.mxu0 0
  %1228 = vmatprep.subr.bf16.mxu0 0
  %1229 = vmatpush2.bf16.msra.mxu0 0
  %1230 = vmatprep.subr.bf16.mxu0 0
  %1231 = vmatpush2.bf16.msra.mxu0 0
  %1232 = vmatprep.subr.bf16.mxu0 0
  %1233 = vmatpush2.bf16.msra.mxu0 0
  %1234 = vmatprep.subr.bf16.mxu0 0
  %1235 = vmatpush2.bf16.msra.mxu0 0
  %1236 = vmatprep.subr.bf16.mxu0 0
  %1237 = vmatpush2.bf16.msra.mxu0 0
  %1238 = vmatprep.subr.bf16.mxu0 0
  %1239 = vmatpush2.bf16.msra.mxu0 0
  %1240 = vmatprep.subr.bf16.mxu0 0
  %1241 = vmatpush2.bf16.msra.mxu0 0
  %1242 = vmatprep.mubr.bf16.mxu0 0
  %1243 = vmatmul.mubr.bf16.gmra.mxu0 %v165
  %v1244 = vpop.f32.mrf.mxu0
  %v1245 = vadd.f32 0.0, %v1244
  %v1246 = vpop.f32.mrf.mxu0
  %v1247 = vadd.f32 0.0, %v1246
  %v1248 = vpop.f32.mrf.mxu0
  %v1249 = vpop.f32.mrf.mxu0
  %1250 = vdwg.mxu0
  %1251 = vmatprep.subr.bf16.mxu0 0
  %1252 = vmatpush1.bf16.msra.mxu0 0
  %1253 = vmatprep.subr.bf16.mxu0 0
  %1254 = vmatpush1.bf16.msra.mxu0 0
  %1255 = vmatprep.subr.bf16.mxu0 0
  %1256 = vmatpush1.bf16.msra.mxu0 0
  %1257 = vmatprep.subr.bf16.mxu0 0
  %1258 = vmatpush1.bf16.msra.mxu0 0
  %1259 = vmatprep.subr.bf16.mxu0 0
  %1260 = vmatpush1.bf16.msra.mxu0 0
  %1261 = vmatprep.subr.bf16.mxu0 0
  %1262 = vmatpush1.bf16.msra.mxu0 0
  %1263 = vmatprep.subr.bf16.mxu0 %v1146
  %1264 = vmatpush1.bf16.msra.mxu0 %v1143
  %1265 = vmatprep.subr.bf16.mxu0 %v1096
  %1266 = vmatpush1.bf16.msra.mxu0 %v1095
  %1267 = vmatprep.subr.bf16.mxu0 0
  %1268 = vmatpush2.bf16.msra.mxu0 0
  %1269 = vmatprep.subr.bf16.mxu0 0
  %1270 = vmatpush2.bf16.msra.mxu0 0
  %1271 = vmatprep.subr.bf16.mxu0 0
  %1272 = vmatpush2.bf16.msra.mxu0 0
  %1273 = vmatprep.subr.bf16.mxu0 0
  %1274 = vmatpush2.bf16.msra.mxu0 0
  %1275 = vmatprep.subr.bf16.mxu0 0
  %1276 = vmatpush2.bf16.msra.mxu0 0
  %1277 = vmatprep.subr.bf16.mxu0 0
  %1278 = vmatpush2.bf16.msra.mxu0 0
  %1279 = vmatprep.subr.bf16.mxu0 0
  %1280 = vmatpush2.bf16.msra.mxu0 0
  %1281 = vmatprep.subr.bf16.mxu0 0
  %1282 = vmatpush2.bf16.msra.mxu0 0
  %1283 = vmatprep.mubr.bf16.mxu0 0
  %1284 = vmatmul.mubr.bf16.gmra.mxu0 %v165
  %v1285 = vpop.f32.mrf.mxu0
  %v1286 = vadd.f32 0.0, %v1285
  %v1287 = vpop.f32.mrf.mxu0
  %v1288 = vadd.f32 0.0, %v1287
  %v1289 = vpop.f32.mrf.mxu0
  %v1290 = vpop.f32.mrf.mxu0
  %1291 = vdwg.mxu0
  %1292 = vmatprep.subr.bf16.mxu0 0
  %1293 = vmatpush1.bf16.msra.mxu0 0
  %1294 = vmatprep.subr.bf16.mxu0 0
  %1295 = vmatpush1.bf16.msra.mxu0 0
  %1296 = vmatprep.subr.bf16.mxu0 0
  %1297 = vmatpush1.bf16.msra.mxu0 0
  %1298 = vmatprep.subr.bf16.mxu0 0
  %1299 = vmatpush1.bf16.msra.mxu0 0
  %1300 = vmatprep.subr.bf16.mxu0 0
  %1301 = vmatpush1.bf16.msra.mxu0 0
  %1302 = vmatprep.subr.bf16.mxu0 0
  %1303 = vmatpush1.bf16.msra.mxu0 0
  %1304 = vmatprep.subr.bf16.mxu0 %v1152
  %1305 = vmatpush1.bf16.msra.mxu0 %v1149
  %1306 = vmatprep.subr.bf16.mxu0 %v1098
  %1307 = vmatpush1.bf16.msra.mxu0 %v1097
  %1308 = vmatprep.subr.bf16.mxu0 0
  %1309 = vmatpush2.bf16.msra.mxu0 0
  %1310 = vmatprep.subr.bf16.mxu0 0
  %1311 = vmatpush2.bf16.msra.mxu0 0
  %1312 = vmatprep.subr.bf16.mxu0 0
  %1313 = vmatpush2.bf16.msra.mxu0 0
  %1314 = vmatprep.subr.bf16.mxu0 0
  %1315 = vmatpush2.bf16.msra.mxu0 0
  %1316 = vmatprep.subr.bf16.mxu0 0
  %1317 = vmatpush2.bf16.msra.mxu0 0
  %1318 = vmatprep.subr.bf16.mxu0 0
  %1319 = vmatpush2.bf16.msra.mxu0 0
  %1320 = vmatprep.subr.bf16.mxu0 0
  %1321 = vmatpush2.bf16.msra.mxu0 0
  %1322 = vmatprep.subr.bf16.mxu0 0
  %1323 = vmatpush2.bf16.msra.mxu0 0
  %1324 = vmatprep.mubr.bf16.mxu0 0
  %1325 = vmatmul.mubr.bf16.gmra.mxu0 %v165
  %v1326 = vpop.f32.mrf.mxu0
  %v1327 = vadd.f32 0.0, %v1326
  %v1328 = vpop.f32.mrf.mxu0
  %v1329 = vadd.f32 0.0, %v1328
  %v1330 = vpop.f32.mrf.mxu0
  %v1331 = vpop.f32.mrf.mxu0
  %1332 = vdwg.mxu0
  %1333 = vmatprep.subr.bf16.mxu0 0
  %1334 = vmatpush1.bf16.msra.mxu0 0
  %1335 = vmatprep.subr.bf16.mxu0 0
  %1336 = vmatpush1.bf16.msra.mxu0 0
  %1337 = vmatprep.subr.bf16.mxu0 0
  %1338 = vmatpush1.bf16.msra.mxu0 0
  %1339 = vmatprep.subr.bf16.mxu0 0
  %1340 = vmatpush1.bf16.msra.mxu0 0
  %1341 = vmatprep.subr.bf16.mxu0 0
  %1342 = vmatpush1.bf16.msra.mxu0 0
  %1343 = vmatprep.subr.bf16.mxu0 0
  %1344 = vmatpush1.bf16.msra.mxu0 0
  %1345 = vmatprep.subr.bf16.mxu0 %v1158
  %1346 = vmatpush1.bf16.msra.mxu0 %v1155
  %1347 = vmatprep.subr.bf16.mxu0 %v1100
  %1348 = vmatpush1.bf16.msra.mxu0 %v1099
  %1349 = vmatprep.subr.bf16.mxu0 0
  %1350 = vmatpush2.bf16.msra.mxu0 0
  %1351 = vmatprep.subr.bf16.mxu0 0
  %1352 = vmatpush2.bf16.msra.mxu0 0
  %1353 = vmatprep.subr.bf16.mxu0 0
  %1354 = vmatpush2.bf16.msra.mxu0 0
  %1355 = vmatprep.subr.bf16.mxu0 0
  %1356 = vmatpush2.bf16.msra.mxu0 0
  %1357 = vmatprep.subr.bf16.mxu0 0
  %1358 = vmatpush2.bf16.msra.mxu0 0
  %1359 = vmatprep.subr.bf16.mxu0 0
  %1360 = vmatpush2.bf16.msra.mxu0 0
  %1361 = vmatprep.subr.bf16.mxu0 0
  %1362 = vmatpush2.bf16.msra.mxu0 0
  %1363 = vmatprep.subr.bf16.mxu0 0
  %1364 = vmatpush2.bf16.msra.mxu0 0
  %1365 = vmatprep.mubr.bf16.mxu0 0
  %1366 = vmatmul.mubr.bf16.gmra.mxu0 %v165
  %v1367 = vpop.f32.mrf.mxu0
  %v1368 = vadd.f32 0.0, %v1367
  %v1369 = vpop.f32.mrf.mxu0
  %v1370 = vadd.f32 0.0, %v1369
  %v1371 = vpop.f32.mrf.mxu0
  %v1372 = vpop.f32.mrf.mxu0
  %1373 = vdwg.mxu0
  %1374 = vmatprep.subr.bf16.mxu0 0
  %1375 = vmatpush1.bf16.msra.mxu0 0
  %1376 = vmatprep.subr.bf16.mxu0 0
  %1377 = vmatpush1.bf16.msra.mxu0 0
  %1378 = vmatprep.subr.bf16.mxu0 0
  %1379 = vmatpush1.bf16.msra.mxu0 0
  %1380 = vmatprep.subr.bf16.mxu0 0
  %1381 = vmatpush1.bf16.msra.mxu0 0
  %1382 = vmatprep.subr.bf16.mxu0 0
  %1383 = vmatpush1.bf16.msra.mxu0 0
  %1384 = vmatprep.subr.bf16.mxu0 0
  %1385 = vmatpush1.bf16.msra.mxu0 0
  %1386 = vmatprep.subr.bf16.mxu0 %v1164
  %1387 = vmatpush1.bf16.msra.mxu0 %v1161
  %1388 = vmatprep.subr.bf16.mxu0 %v1102
  %1389 = vmatpush1.bf16.msra.mxu0 %v1101
  %1390 = vmatprep.subr.bf16.mxu0 0
  %1391 = vmatpush2.bf16.msra.mxu0 0
  %1392 = vmatprep.subr.bf16.mxu0 0
  %1393 = vmatpush2.bf16.msra.mxu0 0
  %1394 = vmatprep.subr.bf16.mxu0 0
  %1395 = vmatpush2.bf16.msra.mxu0 0
  %1396 = vmatprep.subr.bf16.mxu0 0
  %1397 = vmatpush2.bf16.msra.mxu0 0
  %1398 = vmatprep.subr.bf16.mxu0 0
  %1399 = vmatpush2.bf16.msra.mxu0 0
  %1400 = vmatprep.subr.bf16.mxu0 0
  %1401 = vmatpush2.bf16.msra.mxu0 0
  %1402 = vmatprep.subr.bf16.mxu0 0
  %1403 = vmatpush2.bf16.msra.mxu0 0
  %1404 = vmatprep.subr.bf16.mxu0 0
  %1405 = vmatpush2.bf16.msra.mxu0 0
  %1406 = vmatprep.mubr.bf16.mxu0 0
  %1407 = vmatmul.mubr.bf16.gmra.mxu0 %v165
  %v1408 = vpop.f32.mrf.mxu0
  %v1409 = vadd.f32 0.0, %v1408
  %v1410 = vpop.f32.mrf.mxu0
  %v1411 = vadd.f32 0.0, %v1410
  %v1412 = vpop.f32.mrf.mxu0
  %v1413 = vpop.f32.mrf.mxu0
  %1414 = vdwg.mxu0
  %1415 = vmatprep.subr.bf16.mxu0 0
  %1416 = vmatpush1.bf16.msra.mxu0 0
  %1417 = vmatprep.subr.bf16.mxu0 0
  %1418 = vmatpush1.bf16.msra.mxu0 0
  %1419 = vmatprep.subr.bf16.mxu0 0
  %1420 = vmatpush1.bf16.msra.mxu0 0
  %1421 = vmatprep.subr.bf16.mxu0 0
  %1422 = vmatpush1.bf16.msra.mxu0 0
  %1423 = vmatprep.subr.bf16.mxu0 0
  %1424 = vmatpush1.bf16.msra.mxu0 0
  %1425 = vmatprep.subr.bf16.mxu0 0
  %1426 = vmatpush1.bf16.msra.mxu0 0
  %1427 = vmatprep.subr.bf16.mxu0 0
  %1428 = vmatpush1.bf16.msra.mxu0 %v1167
  %1429 = vmatprep.subr.bf16.mxu0 0
  %1430 = vmatpush1.bf16.msra.mxu0 %v1103
  %1431 = vmatprep.subr.bf16.mxu0 0
  %1432 = vmatpush2.bf16.msra.mxu0 0
  %1433 = vmatprep.subr.bf16.mxu0 0
  %1434 = vmatpush2.bf16.msra.mxu0 0
  %1435 = vmatprep.subr.bf16.mxu0 0
  %1436 = vmatpush2.bf16.msra.mxu0 0
  %1437 = vmatprep.subr.bf16.mxu0 0
  %1438 = vmatpush2.bf16.msra.mxu0 0
  %1439 = vmatprep.subr.bf16.mxu0 0
  %1440 = vmatpush2.bf16.msra.mxu0 0
  %1441 = vmatprep.subr.bf16.mxu0 0
  %1442 = vmatpush2.bf16.msra.mxu0 0
  %1443 = vmatprep.subr.bf16.mxu0 0
  %1444 = vmatpush2.bf16.msra.mxu0 0
  %1445 = vmatprep.subr.bf16.mxu0 0
  %1446 = vmatpush2.bf16.msra.mxu0 0
  %1447 = vmatprep.mubr.bf16.mxu0 0
  %1448 = vmatmul.mubr.bf16.gmra.mxu0 %v165
  %v1449 = vpop.f32.mrf.mxu0
  %v1450 = vadd.f32 0.0, %v1449
  %v1451 = vpop.f32.mrf.mxu0
  %v1452 = vpop.f32.mrf.mxu0
  %v1453 = vpop.f32.mrf.mxu0
  %1454 = vdwg.mxu0
  %v1455 = vmax.f32 %v969, %v1204
  %v1456 = vmax.f32 %v970, %v1206
  %v1457 = vmax.f32 %v971, %v1245
  %v1458 = vmax.f32 %v972, %v1247
  %v1459 = vmax.f32 %v973, %v1286
  %v1460 = vmax.f32 %v974, %v1288
  %v1461 = vmax.f32 %v975, %v1327
  %v1462 = vmax.f32 %v976, %v1329
  %v1463 = vmax.f32 %v977, %v1368
  %v1464 = vmax.f32 %v978, %v1370
  %v1465 = vmax.f32 %v979, %v1409
  %v1466 = vmax.f32 %v980, %v1411
  %v1467 = vmax.f32 %v981, %v1450
  %s1468 = scalar_lea.vmem %s0, 624
  %v1469 = vld [vmem:[%s1468] sm:$0xff]
  %v1470 = vld [vmem:[%s1468 + $0x8] sm:$0xff]
  %v1471 = vld [vmem:[%s1468 + $0x10] sm:$0xff]
  %v1472 = vld [vmem:[%s1468 + $0x18] sm:$0xff]
  %v1473 = vld [vmem:[%s1468 + $0x20] sm:$0xff]
  %v1474 = vld [vmem:[%s1468 + $0x28] sm:$0xff]
  %v1475 = vld [vmem:[%s1468 + $0x30] sm:$0xf]
  %v1476 = vld [vmem:[%s1468 + $0x34] sm:$0xff]
  %v1477 = vld [vmem:[%s1468 + $0x3c] sm:$0xff]
  %v1478 = vld [vmem:[%s1468 + $0x44] sm:$0xff]
  %v1479 = vld [vmem:[%s1468 + $0x4c] sm:$0xff]
  %v1480 = vld [vmem:[%s1468 + $0x54] sm:$0xff]
  %v1481 = vld [vmem:[%s1468 + $0x5c] sm:$0xff]
  %v1482 = vld [vmem:[%s1468 + $0x64] sm:$0xf]
  %v1483 = vld [vmem:[%s1468 + $0x68] sm:$0xff]
  %v1484 = vld [vmem:[%s1468 + $0x70] sm:$0xff]
  %v1485 = vld [vmem:[%s1468 + $0x78] sm:$0xff]
  %v1486 = vld [vmem:[%s1468 + $0x80] sm:$0xff]
  %v1487 = vld [vmem:[%s1468 + $0x88] sm:$0xff]
  %v1488 = vld [vmem:[%s1468 + $0x90] sm:$0xff]
  %v1489 = vld [vmem:[%s1468 + $0x98] sm:$0xf]
  %v1490 = vld [vmem:[%s1468 + $0x9c] sm:$0x11]
  %v1491 = vld [vmem:[%s1468 + $0xa4] sm:$0x11]
  %v1492 = vld [vmem:[%s1468 + $0xac] sm:$0x11]
  %v1493 = vld [vmem:[%s1468 + $0xb4] sm:$0x11]
  %v1494 = vld [vmem:[%s1468 + $0xbc] sm:$0x11]
  %v1495 = vld [vmem:[%s1468 + $0xc4] sm:$0x11]
  %v1496 = vld [vmem:[%s1468 + $0xcc] sm:$0x1]
  %v1525 = vunpack.c.l.b16 %v1469
  %v1526 = vunpack.c.h.b16 %v1469
  %v1527 = vunpack.c.l.b16 %v1470
  %v1528 = vunpack.c.h.b16 %v1470
  %v1529 = vunpack.c.l.b16 %v1471
  %v1530 = vunpack.c.h.b16 %v1471
  %v1531 = vunpack.c.l.b16 %v1472
  %v1532 = vunpack.c.h.b16 %v1472
  %v1533 = vunpack.c.l.b16 %v1473
  %v1534 = vunpack.c.h.b16 %v1473
  %v1535 = vunpack.c.l.b16 %v1474
  %v1536 = vunpack.c.h.b16 %v1474
  %v1537 = vunpack.c.l.b16 %v1475
  %v1538 = vunpack.c.l.b16 %v1476
  %v1539 = vunpack.c.h.b16 %v1476
  %v1540 = vunpack.c.l.b16 %v1477
  %v1541 = vunpack.c.h.b16 %v1477
  %v1542 = vunpack.c.l.b16 %v1478
  %v1543 = vunpack.c.h.b16 %v1478
  %v1544 = vunpack.c.l.b16 %v1479
  %v1545 = vunpack.c.h.b16 %v1479
  %v1546 = vunpack.c.l.b16 %v1480
  %v1547 = vunpack.c.h.b16 %v1480
  %v1548 = vunpack.c.l.b16 %v1481
  %v1549 = vunpack.c.h.b16 %v1481
  %v1550 = vunpack.c.l.b16 %v1482
  %v1551 = vunpack.c.l.b16 %v1483
  %v1552 = vunpack.c.h.b16 %v1483
  %v1553 = vunpack.c.l.b16 %v1484
  %v1554 = vunpack.c.h.b16 %v1484
  %v1555 = vunpack.c.l.b16 %v1485
  %v1556 = vunpack.c.h.b16 %v1485
  %v1557 = vunpack.c.l.b16 %v1486
  %v1558 = vunpack.c.h.b16 %v1486
  %v1559 = vunpack.c.l.b16 %v1487
  %v1560 = vunpack.c.h.b16 %v1487
  %v1561 = vunpack.c.l.b16 %v1488
  %v1562 = vunpack.c.h.b16 %v1488
  %v1563 = vunpack.c.l.b16 %v1489
  %v1564 = vunpack.c.l.b16 %v1490
  %v1565 = vunpack.c.h.b16 %v1490
  %v1566 = vunpack.c.l.b16 %v1491
  %v1567 = vunpack.c.h.b16 %v1491
  %v1568 = vunpack.c.l.b16 %v1492
  %v1569 = vunpack.c.h.b16 %v1492
  %v1570 = vunpack.c.l.b16 %v1493
  %v1571 = vunpack.c.h.b16 %v1493
  %v1572 = vunpack.c.l.b16 %v1494
  %v1573 = vunpack.c.h.b16 %v1494
  %v1574 = vunpack.c.l.b16 %v1495
  %v1575 = vunpack.c.h.b16 %v1495
  %v1576 = vunpack.c.l.b16 %v1496
  %v1577 = vpack.c.b16 %v1538, %v1525
  %v1578 = vpack.c.b16 %v1539, %v1526
  %v1579 = vpack.c.b16 %v1540, %v1527
  %v1580 = vpack.c.b16 %v1541, %v1528
  %v1581 = vpack.c.b16 %v1542, %v1529
  %v1582 = vpack.c.b16 %v1543, %v1530
  %v1583 = vpack.c.b16 %v1544, %v1531
  %v1584 = vpack.c.b16 %v1545, %v1532
  %v1585 = vpack.c.b16 %v1546, %v1533
  %v1586 = vpack.c.b16 %v1547, %v1534
  %v1587 = vpack.c.b16 %v1548, %v1535
  %v1588 = vpack.c.b16 %v1549, %v1536
  %v1589 = vpack.c.b16 %v1550, %v1537
  %v1590 = vpack.c.b16 %v1564, %v1551
  %v1591 = vpack.c.b16 %v1565, %v1552
  %v1592 = vpack.c.b16 %v1566, %v1553
  %v1593 = vpack.c.b16 %v1567, %v1554
  %v1594 = vpack.c.b16 %v1568, %v1555
  %v1595 = vpack.c.b16 %v1569, %v1556
  %v1596 = vpack.c.b16 %v1570, %v1557
  %v1597 = vpack.c.b16 %v1571, %v1558
  %v1598 = vpack.c.b16 %v1572, %v1559
  %v1599 = vpack.c.b16 %v1573, %v1560
  %v1600 = vpack.c.b16 %v1574, %v1561
  %v1601 = vpack.c.b16 %v1575, %v1562
  %v1602 = vpack.c.b16 %v1576, %v1563
  %v1617 = vand.u32 %v1590, %v170
  %v1620 = vand.u32 %v1591, %v170
  %v1623 = vand.u32 %v1592, %v170
  %v1626 = vand.u32 %v1593, %v170
  %v1629 = vand.u32 %v1594, %v170
  %v1632 = vand.u32 %v1595, %v170
  %v1635 = vand.u32 %v1596, %v170
  %v1638 = vand.u32 %v1597, %v170
  %v1641 = vand.u32 %v1598, %v170
  %v1644 = vand.u32 %v1599, %v170
  %v1647 = vand.u32 %v1600, %v170
  %v1650 = vand.u32 %v1601, %v170
  %v1653 = vand.u32 %v1602, %v170
  %1655 = vmatprep.subr.bf16.mxu0 0
  %1656 = vmatpush1.bf16.msra.mxu0 0
  %1657 = vmatprep.subr.bf16.mxu0 0
  %1658 = vmatpush1.bf16.msra.mxu0 0
  %1659 = vmatprep.subr.bf16.mxu0 0
  %1660 = vmatpush1.bf16.msra.mxu0 0
  %1661 = vmatprep.subr.bf16.mxu0 0
  %1662 = vmatpush1.bf16.msra.mxu0 0
  %1663 = vmatprep.subr.bf16.mxu0 0
  %1664 = vmatpush1.bf16.msra.mxu0 0
  %1665 = vmatprep.subr.bf16.mxu0 0
  %1666 = vmatpush1.bf16.msra.mxu0 0
  %1667 = vmatprep.subr.bf16.mxu0 %v1620
  %1668 = vmatpush1.bf16.msra.mxu0 %v1617
  %1669 = vmatprep.subr.bf16.mxu0 %v1578
  %1670 = vmatpush1.bf16.msra.mxu0 %v1577
  %1671 = vmatprep.subr.bf16.mxu0 0
  %1672 = vmatpush2.bf16.msra.mxu0 0
  %1673 = vmatprep.subr.bf16.mxu0 0
  %1674 = vmatpush2.bf16.msra.mxu0 0
  %1675 = vmatprep.subr.bf16.mxu0 0
  %1676 = vmatpush2.bf16.msra.mxu0 0
  %1677 = vmatprep.subr.bf16.mxu0 0
  %1678 = vmatpush2.bf16.msra.mxu0 0
  %1679 = vmatprep.subr.bf16.mxu0 0
  %1680 = vmatpush2.bf16.msra.mxu0 0
  %1681 = vmatprep.subr.bf16.mxu0 0
  %1682 = vmatpush2.bf16.msra.mxu0 0
  %1683 = vmatprep.subr.bf16.mxu0 0
  %1684 = vmatpush2.bf16.msra.mxu0 0
  %1685 = vmatprep.subr.bf16.mxu0 0
  %1686 = vmatpush2.bf16.msra.mxu0 0
  %1687 = vmatprep.mubr.bf16.mxu0 0
  %1688 = vmatmul.mubr.bf16.gmra.mxu0 %v165
  %v1689 = vpop.f32.mrf.mxu0
  %v1690 = vadd.f32 0.0, %v1689
  %v1691 = vpop.f32.mrf.mxu0
  %v1692 = vadd.f32 0.0, %v1691
  %v1693 = vpop.f32.mrf.mxu0
  %v1694 = vpop.f32.mrf.mxu0
  %1695 = vdwg.mxu0
  %1696 = vmatprep.subr.bf16.mxu0 0
  %1697 = vmatpush1.bf16.msra.mxu0 0
  %1698 = vmatprep.subr.bf16.mxu0 0
  %1699 = vmatpush1.bf16.msra.mxu0 0
  %1700 = vmatprep.subr.bf16.mxu0 0
  %1701 = vmatpush1.bf16.msra.mxu0 0
  %1702 = vmatprep.subr.bf16.mxu0 0
  %1703 = vmatpush1.bf16.msra.mxu0 0
  %1704 = vmatprep.subr.bf16.mxu0 0
  %1705 = vmatpush1.bf16.msra.mxu0 0
  %1706 = vmatprep.subr.bf16.mxu0 0
  %1707 = vmatpush1.bf16.msra.mxu0 0
  %1708 = vmatprep.subr.bf16.mxu0 %v1626
  %1709 = vmatpush1.bf16.msra.mxu0 %v1623
  %1710 = vmatprep.subr.bf16.mxu0 %v1580
  %1711 = vmatpush1.bf16.msra.mxu0 %v1579
  %1712 = vmatprep.subr.bf16.mxu0 0
  %1713 = vmatpush2.bf16.msra.mxu0 0
  %1714 = vmatprep.subr.bf16.mxu0 0
  %1715 = vmatpush2.bf16.msra.mxu0 0
  %1716 = vmatprep.subr.bf16.mxu0 0
  %1717 = vmatpush2.bf16.msra.mxu0 0
  %1718 = vmatprep.subr.bf16.mxu0 0
  %1719 = vmatpush2.bf16.msra.mxu0 0
  %1720 = vmatprep.subr.bf16.mxu0 0
  %1721 = vmatpush2.bf16.msra.mxu0 0
  %1722 = vmatprep.subr.bf16.mxu0 0
  %1723 = vmatpush2.bf16.msra.mxu0 0
  %1724 = vmatprep.subr.bf16.mxu0 0
  %1725 = vmatpush2.bf16.msra.mxu0 0
  %1726 = vmatprep.subr.bf16.mxu0 0
  %1727 = vmatpush2.bf16.msra.mxu0 0
  %1728 = vmatprep.mubr.bf16.mxu0 0
  %1729 = vmatmul.mubr.bf16.gmra.mxu0 %v165
  %v1730 = vpop.f32.mrf.mxu0
  %v1731 = vadd.f32 0.0, %v1730
  %v1732 = vpop.f32.mrf.mxu0
  %v1733 = vadd.f32 0.0, %v1732
  %v1734 = vpop.f32.mrf.mxu0
  %v1735 = vpop.f32.mrf.mxu0
  %1736 = vdwg.mxu0
  %1737 = vmatprep.subr.bf16.mxu0 0
  %1738 = vmatpush1.bf16.msra.mxu0 0
  %1739 = vmatprep.subr.bf16.mxu0 0
  %1740 = vmatpush1.bf16.msra.mxu0 0
  %1741 = vmatprep.subr.bf16.mxu0 0
  %1742 = vmatpush1.bf16.msra.mxu0 0
  %1743 = vmatprep.subr.bf16.mxu0 0
  %1744 = vmatpush1.bf16.msra.mxu0 0
  %1745 = vmatprep.subr.bf16.mxu0 0
  %1746 = vmatpush1.bf16.msra.mxu0 0
  %1747 = vmatprep.subr.bf16.mxu0 0
  %1748 = vmatpush1.bf16.msra.mxu0 0
  %1749 = vmatprep.subr.bf16.mxu0 %v1632
  %1750 = vmatpush1.bf16.msra.mxu0 %v1629
  %1751 = vmatprep.subr.bf16.mxu0 %v1582
  %1752 = vmatpush1.bf16.msra.mxu0 %v1581
  %1753 = vmatprep.subr.bf16.mxu0 0
  %1754 = vmatpush2.bf16.msra.mxu0 0
  %1755 = vmatprep.subr.bf16.mxu0 0
  %1756 = vmatpush2.bf16.msra.mxu0 0
  %1757 = vmatprep.subr.bf16.mxu0 0
  %1758 = vmatpush2.bf16.msra.mxu0 0
  %1759 = vmatprep.subr.bf16.mxu0 0
  %1760 = vmatpush2.bf16.msra.mxu0 0
  %1761 = vmatprep.subr.bf16.mxu0 0
  %1762 = vmatpush2.bf16.msra.mxu0 0
  %1763 = vmatprep.subr.bf16.mxu0 0
  %1764 = vmatpush2.bf16.msra.mxu0 0
  %1765 = vmatprep.subr.bf16.mxu0 0
  %1766 = vmatpush2.bf16.msra.mxu0 0
  %1767 = vmatprep.subr.bf16.mxu0 0
  %1768 = vmatpush2.bf16.msra.mxu0 0
  %1769 = vmatprep.mubr.bf16.mxu0 0
  %1770 = vmatmul.mubr.bf16.gmra.mxu0 %v165
  %v1771 = vpop.f32.mrf.mxu0
  %v1772 = vadd.f32 0.0, %v1771
  %v1773 = vpop.f32.mrf.mxu0
  %v1774 = vadd.f32 0.0, %v1773
  %v1775 = vpop.f32.mrf.mxu0
  %v1776 = vpop.f32.mrf.mxu0
  %1777 = vdwg.mxu0
  %1778 = vmatprep.subr.bf16.mxu0 0
  %1779 = vmatpush1.bf16.msra.mxu0 0
  %1780 = vmatprep.subr.bf16.mxu0 0
  %1781 = vmatpush1.bf16.msra.mxu0 0
  %1782 = vmatprep.subr.bf16.mxu0 0
  %1783 = vmatpush1.bf16.msra.mxu0 0
  %1784 = vmatprep.subr.bf16.mxu0 0
  %1785 = vmatpush1.bf16.msra.mxu0 0
  %1786 = vmatprep.subr.bf16.mxu0 0
  %1787 = vmatpush1.bf16.msra.mxu0 0
  %1788 = vmatprep.subr.bf16.mxu0 0
  %1789 = vmatpush1.bf16.msra.mxu0 0
  %1790 = vmatprep.subr.bf16.mxu0 %v1638
  %1791 = vmatpush1.bf16.msra.mxu0 %v1635
  %1792 = vmatprep.subr.bf16.mxu0 %v1584
  %1793 = vmatpush1.bf16.msra.mxu0 %v1583
  %1794 = vmatprep.subr.bf16.mxu0 0
  %1795 = vmatpush2.bf16.msra.mxu0 0
  %1796 = vmatprep.subr.bf16.mxu0 0
  %1797 = vmatpush2.bf16.msra.mxu0 0
  %1798 = vmatprep.subr.bf16.mxu0 0
  %1799 = vmatpush2.bf16.msra.mxu0 0
  %1800 = vmatprep.subr.bf16.mxu0 0
  %1801 = vmatpush2.bf16.msra.mxu0 0
  %1802 = vmatprep.subr.bf16.mxu0 0
  %1803 = vmatpush2.bf16.msra.mxu0 0
  %1804 = vmatprep.subr.bf16.mxu0 0
  %1805 = vmatpush2.bf16.msra.mxu0 0
  %1806 = vmatprep.subr.bf16.mxu0 0
  %1807 = vmatpush2.bf16.msra.mxu0 0
  %1808 = vmatprep.subr.bf16.mxu0 0
  %1809 = vmatpush2.bf16.msra.mxu0 0
  %1810 = vmatprep.mubr.bf16.mxu0 0
  %1811 = vmatmul.mubr.bf16.gmra.mxu0 %v165
  %v1812 = vpop.f32.mrf.mxu0
  %v1813 = vadd.f32 0.0, %v1812
  %v1814 = vpop.f32.mrf.mxu0
  %v1815 = vadd.f32 0.0, %v1814
  %v1816 = vpop.f32.mrf.mxu0
  %v1817 = vpop.f32.mrf.mxu0
  %1818 = vdwg.mxu0
  %1819 = vmatprep.subr.bf16.mxu0 0
  %1820 = vmatpush1.bf16.msra.mxu0 0
  %1821 = vmatprep.subr.bf16.mxu0 0
  %1822 = vmatpush1.bf16.msra.mxu0 0
  %1823 = vmatprep.subr.bf16.mxu0 0
  %1824 = vmatpush1.bf16.msra.mxu0 0
  %1825 = vmatprep.subr.bf16.mxu0 0
  %1826 = vmatpush1.bf16.msra.mxu0 0
  %1827 = vmatprep.subr.bf16.mxu0 0
  %1828 = vmatpush1.bf16.msra.mxu0 0
  %1829 = vmatprep.subr.bf16.mxu0 0
  %1830 = vmatpush1.bf16.msra.mxu0 0
  %1831 = vmatprep.subr.bf16.mxu0 %v1644
  %1832 = vmatpush1.bf16.msra.mxu0 %v1641
  %1833 = vmatprep.subr.bf16.mxu0 %v1586
  %1834 = vmatpush1.bf16.msra.mxu0 %v1585
  %1835 = vmatprep.subr.bf16.mxu0 0
  %1836 = vmatpush2.bf16.msra.mxu0 0
  %1837 = vmatprep.subr.bf16.mxu0 0
  %1838 = vmatpush2.bf16.msra.mxu0 0
  %1839 = vmatprep.subr.bf16.mxu0 0
  %1840 = vmatpush2.bf16.msra.mxu0 0
  %1841 = vmatprep.subr.bf16.mxu0 0
  %1842 = vmatpush2.bf16.msra.mxu0 0
  %1843 = vmatprep.subr.bf16.mxu0 0
  %1844 = vmatpush2.bf16.msra.mxu0 0
  %1845 = vmatprep.subr.bf16.mxu0 0
  %1846 = vmatpush2.bf16.msra.mxu0 0
  %1847 = vmatprep.subr.bf16.mxu0 0
  %1848 = vmatpush2.bf16.msra.mxu0 0
  %1849 = vmatprep.subr.bf16.mxu0 0
  %1850 = vmatpush2.bf16.msra.mxu0 0
  %1851 = vmatprep.mubr.bf16.mxu0 0
  %1852 = vmatmul.mubr.bf16.gmra.mxu0 %v165
  %v1853 = vpop.f32.mrf.mxu0
  %v1854 = vadd.f32 0.0, %v1853
  %v1855 = vpop.f32.mrf.mxu0
  %v1856 = vadd.f32 0.0, %v1855
  %v1857 = vpop.f32.mrf.mxu0
  %v1858 = vpop.f32.mrf.mxu0
  %1859 = vdwg.mxu0
  %1860 = vmatprep.subr.bf16.mxu0 0
  %1861 = vmatpush1.bf16.msra.mxu0 0
  %1862 = vmatprep.subr.bf16.mxu0 0
  %1863 = vmatpush1.bf16.msra.mxu0 0
  %1864 = vmatprep.subr.bf16.mxu0 0
  %1865 = vmatpush1.bf16.msra.mxu0 0
  %1866 = vmatprep.subr.bf16.mxu0 0
  %1867 = vmatpush1.bf16.msra.mxu0 0
  %1868 = vmatprep.subr.bf16.mxu0 0
  %1869 = vmatpush1.bf16.msra.mxu0 0
  %1870 = vmatprep.subr.bf16.mxu0 0
  %1871 = vmatpush1.bf16.msra.mxu0 0
  %1872 = vmatprep.subr.bf16.mxu0 %v1650
  %1873 = vmatpush1.bf16.msra.mxu0 %v1647
  %1874 = vmatprep.subr.bf16.mxu0 %v1588
  %1875 = vmatpush1.bf16.msra.mxu0 %v1587
  %1876 = vmatprep.subr.bf16.mxu0 0
  %1877 = vmatpush2.bf16.msra.mxu0 0
  %1878 = vmatprep.subr.bf16.mxu0 0
  %1879 = vmatpush2.bf16.msra.mxu0 0
  %1880 = vmatprep.subr.bf16.mxu0 0
  %1881 = vmatpush2.bf16.msra.mxu0 0
  %1882 = vmatprep.subr.bf16.mxu0 0
  %1883 = vmatpush2.bf16.msra.mxu0 0
  %1884 = vmatprep.subr.bf16.mxu0 0
  %1885 = vmatpush2.bf16.msra.mxu0 0
  %1886 = vmatprep.subr.bf16.mxu0 0
  %1887 = vmatpush2.bf16.msra.mxu0 0
  %1888 = vmatprep.subr.bf16.mxu0 0
  %1889 = vmatpush2.bf16.msra.mxu0 0
  %1890 = vmatprep.subr.bf16.mxu0 0
  %1891 = vmatpush2.bf16.msra.mxu0 0
  %1892 = vmatprep.mubr.bf16.mxu0 0
  %1893 = vmatmul.mubr.bf16.gmra.mxu0 %v165
  %v1894 = vpop.f32.mrf.mxu0
  %v1895 = vadd.f32 0.0, %v1894
  %v1896 = vpop.f32.mrf.mxu0
  %v1897 = vadd.f32 0.0, %v1896
  %v1898 = vpop.f32.mrf.mxu0
  %v1899 = vpop.f32.mrf.mxu0
  %1900 = vdwg.mxu0
  %1901 = vmatprep.subr.bf16.mxu0 0
  %1902 = vmatpush1.bf16.msra.mxu0 0
  %1903 = vmatprep.subr.bf16.mxu0 0
  %1904 = vmatpush1.bf16.msra.mxu0 0
  %1905 = vmatprep.subr.bf16.mxu0 0
  %1906 = vmatpush1.bf16.msra.mxu0 0
  %1907 = vmatprep.subr.bf16.mxu0 0
  %1908 = vmatpush1.bf16.msra.mxu0 0
  %1909 = vmatprep.subr.bf16.mxu0 0
  %1910 = vmatpush1.bf16.msra.mxu0 0
  %1911 = vmatprep.subr.bf16.mxu0 0
  %1912 = vmatpush1.bf16.msra.mxu0 0
  %1913 = vmatprep.subr.bf16.mxu0 0
  %1914 = vmatpush1.bf16.msra.mxu0 %v1653
  %1915 = vmatprep.subr.bf16.mxu0 0
  %1916 = vmatpush1.bf16.msra.mxu0 %v1589
  %1917 = vmatprep.subr.bf16.mxu0 0
  %1918 = vmatpush2.bf16.msra.mxu0 0
  %1919 = vmatprep.subr.bf16.mxu0 0
  %1920 = vmatpush2.bf16.msra.mxu0 0
  %1921 = vmatprep.subr.bf16.mxu0 0
  %1922 = vmatpush2.bf16.msra.mxu0 0
  %1923 = vmatprep.subr.bf16.mxu0 0
  %1924 = vmatpush2.bf16.msra.mxu0 0
  %1925 = vmatprep.subr.bf16.mxu0 0
  %1926 = vmatpush2.bf16.msra.mxu0 0
  %1927 = vmatprep.subr.bf16.mxu0 0
  %1928 = vmatpush2.bf16.msra.mxu0 0
  %1929 = vmatprep.subr.bf16.mxu0 0
  %1930 = vmatpush2.bf16.msra.mxu0 0
  %1931 = vmatprep.subr.bf16.mxu0 0
  %1932 = vmatpush2.bf16.msra.mxu0 0
  %1933 = vmatprep.mubr.bf16.mxu0 0
  %1934 = vmatmul.mubr.bf16.gmra.mxu0 %v165
  %v1935 = vpop.f32.mrf.mxu0
  %v1936 = vadd.f32 0.0, %v1935
  %v1937 = vpop.f32.mrf.mxu0
  %v1938 = vpop.f32.mrf.mxu0
  %v1939 = vpop.f32.mrf.mxu0
  %1940 = vdwg.mxu0
  %v1941 = vmax.f32 %v1455, %v1690
  %v1942 = vmax.f32 %v1456, %v1692
  %v1943 = vmax.f32 %v1457, %v1731
  %v1944 = vmax.f32 %v1458, %v1733
  %v1945 = vmax.f32 %v1459, %v1772
  %v1946 = vmax.f32 %v1460, %v1774
  %v1947 = vmax.f32 %v1461, %v1813
  %v1948 = vmax.f32 %v1462, %v1815
  %v1949 = vmax.f32 %v1463, %v1854
  %v1950 = vmax.f32 %v1464, %v1856
  %v1951 = vmax.f32 %v1465, %v1895
  %v1952 = vmax.f32 %v1466, %v1897
  %v1953 = vmax.f32 %v1467, %v1936
  %v1954 = vld [vmem:[%s2] sm:$0x3f]
  %1956 = vset.pattern.permute.xlu0 0
  %1957 = vperm.xlu0 %1956, %v1954
  %v1958 = vpop.permute.xlu0 %1957
  %v1960 = vadd.f32 %v1941, %v1958
  %v1961 = vadd.f32 %v1942, %v1958
  %v1962 = vadd.f32 %v1943, %v1958
  %v1963 = vadd.f32 %v1944, %v1958
  %v1964 = vadd.f32 %v1945, %v1958
  %v1965 = vadd.f32 %v1946, %v1958
  %v1966 = vadd.f32 %v1947, %v1958
  %v1967 = vadd.f32 %v1948, %v1958
  %v1968 = vadd.f32 %v1949, %v1958
  %v1969 = vadd.f32 %v1950, %v1958
  %v1970 = vadd.f32 %v1951, %v1958
  %v1971 = vadd.f32 %v1952, %v1958
  %v1972 = vadd.f32 %v1953, %v1958
  %v1973 = vmax.f32 %v1960, 0.0
  %v1974 = vmax.f32 %v1961, 0.0
  %v1975 = vmax.f32 %v1962, 0.0
  %v1976 = vmax.f32 %v1963, 0.0
  %v1977 = vmax.f32 %v1964, 0.0
  %v1978 = vmax.f32 %v1965, 0.0
  %v1979 = vmax.f32 %v1966, 0.0
  %v1980 = vmax.f32 %v1967, 0.0
  %v1981 = vmax.f32 %v1968, 0.0
  %v1982 = vmax.f32 %v1969, 0.0
  %v1983 = vmax.f32 %v1970, 0.0
  %v1984 = vmax.f32 %v1971, 0.0
  %v1985 = vmax.f32 %v1972, 0.0
  %1986 = vst [vmem:[%s3] sm:$0x3f] %v1973
  %1987 = vst [vmem:[%s3 + $0x8] sm:$0x3f] %v1974
  %1988 = vst [vmem:[%s3 + $0x10] sm:$0x3f] %v1975
  %1989 = vst [vmem:[%s3 + $0x18] sm:$0x3f] %v1976
  %1990 = vst [vmem:[%s3 + $0x20] sm:$0x3f] %v1977
  %1991 = vst [vmem:[%s3 + $0x28] sm:$0x3f] %v1978
  %1992 = vst [vmem:[%s3 + $0x30] sm:$0x3f] %v1979
  %1993 = vst [vmem:[%s3 + $0x38] sm:$0x3f] %v1980
  %1994 = vst [vmem:[%s3 + $0x40] sm:$0x3f] %v1981
  %1995 = vst [vmem:[%s3 + $0x48] sm:$0x3f] %v1982
  %1996 = vst [vmem:[%s3 + $0x50] sm:$0x3f] %v1983
  %1997 = vst [vmem:[%s3 + $0x58] sm:$0x3f] %v1984
  %vm1998 = vcmask 259072
  %1999 = vst.msk [vmem:[%s3 + $0x60] sm:$0x3f] %vm1998, %v1985
  // Predicated region
  $region14: #{lenet5_forward.3} parent=0 // pred_check
    _
  $region15: #{lenet5_forward.3} parent=0 // pred_check_branch
    %2001 = sbr.rel (0) target = $region17
  $region16: #{lenet5_forward.3} parent=0 // pred_region
    _
  $region17: #{lenet5_forward.3} parent=0 // pred_fallthru
    _
  // Predicated region
  $region18: #{lenet5_forward.3} parent=0 // pred_check
    _
  $region19: #{lenet5_forward.3} parent=0 // pred_check_branch
    %2003 = sbr.rel (0) target = $region21
  $region20: #{lenet5_forward.3} parent=0 // pred_region
    _
  $region21: #{lenet5_forward.3} parent=0 // pred_fallthru
    _

// kernel: lenet5_forward.4
$region0: #{lenet5_forward.4}
  #allocation0 [shape = 'u32[]', space=smem, size = 0x4, offset = 0x4, fixed_abs, tag = 'smem constant byte address 0x4 - core index']
  #allocation1 [shape = 'u32[144,128]{1,0:T(1,128)}', space=vmem, size = 0x12000, scoped, tag = 'internal scratch']
  %s0 = inlined_call_operand.vmem [shape: bf16[1,4,150,200], index: 0, kind: input, shape index: {}]
  %s1 = inlined_call_operand.vmem [shape: bf16[16,150], index: 1, kind: input, shape index: {}]
  %s2 = inlined_call_operand.vmem [shape: f32[16,1], index: 2, kind: input, shape index: {}]
  %s3 = inlined_call_operand.vmem [shape: f32[1,16,200], index: 3, kind: output, shape index: {}]
  %s4 = sld [smem:[#allocation0]]
  $region22: #{lenet5_forward.4} parent=0
    _
  %s6 = ssub.s32 1, %s4
  %s7 = scalar_select 0, %s6, %s4
  // Predicated region
  $region2: #{lenet5_forward.4} parent=0 // pred_check
    _
  $region3: #{lenet5_forward.4} parent=0 // pred_check_branch
    %9 = sbr.rel (0) target = $region5
  $region4: #{lenet5_forward.4} parent=0 // pred_region
    _
  $region5: #{lenet5_forward.4} parent=0 // pred_fallthru
    _
  // Predicated region
  $region6: #{lenet5_forward.4} parent=0 // pred_check
    _
  $region7: #{lenet5_forward.4} parent=0 // pred_check_branch
    %11 = sbr.rel (0) target = $region9
  $region8: #{lenet5_forward.4} parent=0 // pred_region
    _
  $region9: #{lenet5_forward.4} parent=0 // pred_fallthru
    _
  // Predicated region
  $region10: #{lenet5_forward.4} parent=0 // pred_check
    _
  $region11: #{lenet5_forward.4} parent=0 // pred_check_branch
    %13 = sbr.rel (0) target = $region13
  $region12: #{lenet5_forward.4} parent=0 // pred_region
    _
  $region13: #{lenet5_forward.4} parent=0 // pred_fallthru
    _
  %v15 = vld [vmem:[%s1] sm:$0xff]
  %v16 = vld [vmem:[%s1 + $0x8] sm:$0xff]
  %v17 = vld [vmem:[%s0] sm:$0xff]
  %v18 = vld [vmem:[%s0 + $0x8] sm:$0xff]
  %v19 = vld [vmem:[%s0 + $0x10] sm:$0xff]
  %v20 = vld [vmem:[%s0 + $0x18] sm:$0xff]
  %v21 = vld [vmem:[%s0 + $0x20] sm:$0xff]
  %v22 = vld [vmem:[%s0 + $0x28] sm:$0xff]
  %v23 = vld [vmem:[%s0 + $0x30] sm:$0xff]
  %v24 = vld [vmem:[%s0 + $0x38] sm:$0xff]
  %v25 = vld [vmem:[%s0 + $0x40] sm:$0xff]
  %v26 = vld [vmem:[%s0 + $0x48] sm:$0xff]
  %v27 = vld [vmem:[%s0 + $0x50] sm:$0xff]
  %v28 = vld [vmem:[%s0 + $0x58] sm:$0xff]
  %v29 = vld [vmem:[%s0 + $0x60] sm:$0xff]
  %v30 = vld [vmem:[%s0 + $0x68] sm:$0xff]
  %v31 = vld [vmem:[%s0 + $0x70] sm:$0xff]
  %v32 = vld [vmem:[%s0 + $0x78] sm:$0xff]
  %v33 = vld [vmem:[%s0 + $0x80] sm:$0xff]
  %v34 = vld [vmem:[%s0 + $0x88] sm:$0xff]
  %v35 = vld [vmem:[%s0 + $0x90] sm:$0x77]
  %v38 = vunpack.c.l.b16 %v15
  %v39 = vunpack.c.h.b16 %v15
  %v40 = vunpack.c.l.b16 %v16
  %v41 = vunpack.c.h.b16 %v16
  %v42 = vpack.c.b16 %v40, %v38
  %v43 = vpack.c.b16 %v41, %v39
  %v64 = vunpack.c.l.b16 %v17
  %v65 = vunpack.c.h.b16 %v17
  %v66 = vunpack.c.l.b16 %v18
  %v67 = vunpack.c.h.b16 %v18
  %v68 = vunpack.c.l.b16 %v19
  %v69 = vunpack.c.h.b16 %v19
  %v70 = vunpack.c.l.b16 %v20
  %v71 = vunpack.c.h.b16 %v20
  %v72 = vunpack.c.l.b16 %v21
  %v73 = vunpack.c.h.b16 %v21
  %v74 = vunpack.c.l.b16 %v22
  %v75 = vunpack.c.h.b16 %v22
  %v76 = vunpack.c.l.b16 %v23
  %v77 = vunpack.c.h.b16 %v23
  %v78 = vunpack.c.l.b16 %v24
  %v79 = vunpack.c.h.b16 %v24
  %v80 = vunpack.c.l.b16 %v25
  %v81 = vunpack.c.h.b16 %v25
  %v82 = vunpack.c.l.b16 %v26
  %v83 = vunpack.c.h.b16 %v26
  %v84 = vunpack.c.l.b16 %v27
  %v85 = vunpack.c.h.b16 %v27
  %v86 = vunpack.c.l.b16 %v28
  %v87 = vunpack.c.h.b16 %v28
  %v88 = vunpack.c.l.b16 %v29
  %v89 = vunpack.c.h.b16 %v29
  %v90 = vunpack.c.l.b16 %v30
  %v91 = vunpack.c.h.b16 %v30
  %v92 = vunpack.c.l.b16 %v31
  %v93 = vunpack.c.h.b16 %v31
  %v94 = vunpack.c.l.b16 %v32
  %v95 = vunpack.c.h.b16 %v32
  %v96 = vunpack.c.l.b16 %v33
  %v97 = vunpack.c.h.b16 %v33
  %v98 = vunpack.c.l.b16 %v34
  %v99 = vunpack.c.h.b16 %v34
  %v100 = vunpack.c.l.b16 %v35
  %v101 = vunpack.c.h.b16 %v35
  %v102 = vpack.c.b16 %v66, %v64
  %v103 = vpack.c.b16 %v67, %v65
  %v104 = vpack.c.b16 %v70, %v68
  %v105 = vpack.c.b16 %v71, %v69
  %v106 = vpack.c.b16 %v74, %v72
  %v107 = vpack.c.b16 %v75, %v73
  %v108 = vpack.c.b16 %v78, %v76
  %v109 = vpack.c.b16 %v79, %v77
  %v110 = vpack.c.b16 %v82, %v80
  %v111 = vpack.c.b16 %v83, %v81
  %v112 = vpack.c.b16 %v86, %v84
  %v113 = vpack.c.b16 %v87, %v85
  %v114 = vpack.c.b16 %v90, %v88
  %v115 = vpack.c.b16 %v91, %v89
  %v116 = vpack.c.b16 %v94, %v92
  %v117 = vpack.c.b16 %v95, %v93
  %v118 = vpack.c.b16 %v98, %v96
  %v119 = vpack.c.b16 %v99, %v97
  %v120 = vpack.c.b16 %v100, %v100
  %v121 = vpack.c.b16 %v101, %v101
  %vm140 = vcmask 179200
  %v142 = vsel %vm140, %v43, 0
  %vm144 = vcmask 1042432
  %v146 = vsel %vm144, %v120, 0
  %v149 = vsel %vm144, %v121, 0
  %151 = vmatprep.subr.bf16.mxu0 %v117
  %152 = vmatpush1.bf16.msra.mxu0 %v116
  %153 = vmatprep.subr.bf16.mxu0 %v115
  %154 = vmatpush1.bf16.msra.mxu0 %v114
  %155 = vmatprep.subr.bf16.mxu0 %v113
  %156 = vmatpush1.bf16.msra.mxu0 %v112
  %157 = vmatprep.subr.bf16.mxu0 %v111
  %158 = vmatpush1.bf16.msra.mxu0 %v110
  %159 = vmatprep.subr.bf16.mxu0 %v109
  %160 = vmatpush1.bf16.msra.mxu0 %v108
  %161 = vmatprep.subr.bf16.mxu0 %v107
  %162 = vmatpush1.bf16.msra.mxu0 %v106
  %163 = vmatprep.subr.bf16.mxu0 %v105
  %164 = vmatpush1.bf16.msra.mxu0 %v104
  %165 = vmatprep.subr.bf16.mxu0 %v103
  %166 = vmatpush1.bf16.msra.mxu0 %v102
  %167 = vmatprep.subr.bf16.mxu0 0
  %168 = vmatpush2.bf16.msra.mxu0 0
  %169 = vmatprep.subr.bf16.mxu0 0
  %170 = vmatpush2.bf16.msra.mxu0 0
  %171 = vmatprep.subr.bf16.mxu0 0
  %172 = vmatpush2.bf16.msra.mxu0 0
  %173 = vmatprep.subr.bf16.mxu0 0
  %174 = vmatpush2.bf16.msra.mxu0 0
  %175 = vmatprep.subr.bf16.mxu0 0
  %176 = vmatpush2.bf16.msra.mxu0 0
  %177 = vmatprep.subr.bf16.mxu0 0
  %178 = vmatpush2.bf16.msra.mxu0 0
  %179 = vmatprep.subr.bf16.mxu0 %v149
  %180 = vmatpush2.bf16.msra.mxu0 %v146
  %181 = vmatprep.subr.bf16.mxu0 %v119
  %182 = vmatpush2.bf16.msra.mxu0 %v118
  %183 = vmatprep.mubr.bf16.mxu0 %v142
  %184 = vmatmul.mubr.bf16.gmra.mxu0 %v42
  %v185 = vpop.f32.mrf.mxu0
  %v186 = vadd.f32 0.0, %v185
  %v187 = vpop.f32.mrf.mxu0
  %v188 = vadd.f32 0.0, %v187
  %v189 = vpop.f32.mrf.mxu0
  %v190 = vadd.f32 0.0, %v189
  %v191 = vpop.f32.mrf.mxu0
  %v192 = vadd.f32 0.0, %v191
  %193 = vdwg.mxu0
  %s194 = scalar_lea.vmem %s0, 152
  %v195 = vld [vmem:[%s194] sm:$0xff]
  %v196 = vld [vmem:[%s194 + $0x8] sm:$0xff]
  %v197 = vld [vmem:[%s194 + $0x10] sm:$0xff]
  %v198 = vld [vmem:[%s194 + $0x18] sm:$0xff]
  %v199 = vld [vmem:[%s194 + $0x20] sm:$0xff]
  %v200 = vld [vmem:[%s194 + $0x28] sm:$0xff]
  %v201 = vld [vmem:[%s194 + $0x30] sm:$0xff]
  %v202 = vld [vmem:[%s194 + $0x38] sm:$0xff]
  %v203 = vld [vmem:[%s194 + $0x40] sm:$0xff]
  %v204 = vld [vmem:[%s194 + $0x48] sm:$0xff]
  %v205 = vld [vmem:[%s194 + $0x50] sm:$0xff]
  %v206 = vld [vmem:[%s194 + $0x58] sm:$0xff]
  %v207 = vld [vmem:[%s194 + $0x60] sm:$0xff]
  %v208 = vld [vmem:[%s194 + $0x68] sm:$0xff]
  %v209 = vld [vmem:[%s194 + $0x70] sm:$0xff]
  %v210 = vld [vmem:[%s194 + $0x78] sm:$0xff]
  %v211 = vld [vmem:[%s194 + $0x80] sm:$0xff]
  %v212 = vld [vmem:[%s194 + $0x88] sm:$0xff]
  %v213 = vld [vmem:[%s194 + $0x90] sm:$0x77]
  %v233 = vunpack.c.l.b16 %v195
  %v234 = vunpack.c.h.b16 %v195
  %v235 = vunpack.c.l.b16 %v196
  %v236 = vunpack.c.h.b16 %v196
  %v237 = vunpack.c.l.b16 %v197
  %v238 = vunpack.c.h.b16 %v197
  %v239 = vunpack.c.l.b16 %v198
  %v240 = vunpack.c.h.b16 %v198
  %v241 = vunpack.c.l.b16 %v199
  %v242 = vunpack.c.h.b16 %v199
  %v243 = vunpack.c.l.b16 %v200
  %v244 = vunpack.c.h.b16 %v200
  %v245 = vunpack.c.l.b16 %v201
  %v246 = vunpack.c.h.b16 %v201
  %v247 = vunpack.c.l.b16 %v202
  %v248 = vunpack.c.h.b16 %v202
  %v249 = vunpack.c.l.b16 %v203
  %v250 = vunpack.c.h.b16 %v203
  %v251 = vunpack.c.l.b16 %v204
  %v252 = vunpack.c.h.b16 %v204
  %v253 = vunpack.c.l.b16 %v205
  %v254 = vunpack.c.h.b16 %v205
  %v255 = vunpack.c.l.b16 %v206
  %v256 = vunpack.c.h.b16 %v206
  %v257 = vunpack.c.l.b16 %v207
  %v258 = vunpack.c.h.b16 %v207
  %v259 = vunpack.c.l.b16 %v208
  %v260 = vunpack.c.h.b16 %v208
  %v261 = vunpack.c.l.b16 %v209
  %v262 = vunpack.c.h.b16 %v209
  %v263 = vunpack.c.l.b16 %v210
  %v264 = vunpack.c.h.b16 %v210
  %v265 = vunpack.c.l.b16 %v211
  %v266 = vunpack.c.h.b16 %v211
  %v267 = vunpack.c.l.b16 %v212
  %v268 = vunpack.c.h.b16 %v212
  %v269 = vunpack.c.l.b16 %v213
  %v270 = vunpack.c.h.b16 %v213
  %v271 = vpack.c.b16 %v235, %v233
  %v272 = vpack.c.b16 %v236, %v234
  %v273 = vpack.c.b16 %v239, %v237
  %v274 = vpack.c.b16 %v240, %v238
  %v275 = vpack.c.b16 %v243, %v241
  %v276 = vpack.c.b16 %v244, %v242
  %v277 = vpack.c.b16 %v247, %v245
  %v278 = vpack.c.b16 %v248, %v246
  %v279 = vpack.c.b16 %v251, %v249
  %v280 = vpack.c.b16 %v252, %v250
  %v281 = vpack.c.b16 %v255, %v253
  %v282 = vpack.c.b16 %v256, %v254
  %v283 = vpack.c.b16 %v259, %v257
  %v284 = vpack.c.b16 %v260, %v258
  %v285 = vpack.c.b16 %v263, %v261
  %v286 = vpack.c.b16 %v264, %v262
  %v287 = vpack.c.b16 %v267, %v265
  %v288 = vpack.c.b16 %v268, %v266
  %v289 = vpack.c.b16 %v269, %v269
  %v290 = vpack.c.b16 %v270, %v270
  %v310 = vsel %vm144, %v289, 0
  %v313 = vsel %vm144, %v290, 0
  %315 = vmatprep.subr.bf16.mxu0 %v286
  %316 = vmatpush1.bf16.msra.mxu0 %v285
  %317 = vmatprep.subr.bf16.mxu0 %v284
  %318 = vmatpush1.bf16.msra.mxu0 %v283
  %319 = vmatprep.subr.bf16.mxu0 %v282
  %320 = vmatpush1.bf16.msra.mxu0 %v281
  %321 = vmatprep.subr.bf16.mxu0 %v280
  %322 = vmatpush1.bf16.msra.mxu0 %v279
  %323 = vmatprep.subr.bf16.mxu0 %v278
  %324 = vmatpush1.bf16.msra.mxu0 %v277
  %325 = vmatprep.subr.bf16.mxu0 %v276
  %326 = vmatpush1.bf16.msra.mxu0 %v275
  %327 = vmatprep.subr.bf16.mxu0 %v274
  %328 = vmatpush1.bf16.msra.mxu0 %v273
  %329 = vmatprep.subr.bf16.mxu0 %v272
  %330 = vmatpush1.bf16.msra.mxu0 %v271
  %331 = vmatprep.subr.bf16.mxu0 0
  %332 = vmatpush2.bf16.msra.mxu0 0
  %333 = vmatprep.subr.bf16.mxu0 0
  %334 = vmatpush2.bf16.msra.mxu0 0
  %335 = vmatprep.subr.bf16.mxu0 0
  %336 = vmatpush2.bf16.msra.mxu0 0
  %337 = vmatprep.subr.bf16.mxu0 0
  %338 = vmatpush2.bf16.msra.mxu0 0
  %339 = vmatprep.subr.bf16.mxu0 0
  %340 = vmatpush2.bf16.msra.mxu0 0
  %341 = vmatprep.subr.bf16.mxu0 0
  %342 = vmatpush2.bf16.msra.mxu0 0
  %343 = vmatprep.subr.bf16.mxu0 %v313
  %344 = vmatpush2.bf16.msra.mxu0 %v310
  %345 = vmatprep.subr.bf16.mxu0 %v288
  %346 = vmatpush2.bf16.msra.mxu0 %v287
  %347 = vmatprep.mubr.bf16.mxu0 %v142
  %348 = vmatmul.mubr.bf16.gmra.mxu0 %v42
  %v349 = vpop.f32.mrf.mxu0
  %v350 = vadd.f32 0.0, %v349
  %v351 = vpop.f32.mrf.mxu0
  %v352 = vadd.f32 0.0, %v351
  %v353 = vpop.f32.mrf.mxu0
  %v354 = vadd.f32 0.0, %v353
  %v355 = vpop.f32.mrf.mxu0
  %v356 = vadd.f32 0.0, %v355
  %357 = vdwg.mxu0
  %v358 = vmax.f32 %v186, %v350
  %v359 = vmax.f32 %v188, %v352
  %v360 = vmax.f32 %v190, %v354
  %v361 = vmax.f32 %v192, %v356
  %s362 = scalar_lea.vmem %s0, 304
  %v363 = vld [vmem:[%s362] sm:$0xff]
  %v364 = vld [vmem:[%s362 + $0x8] sm:$0xff]
  %v365 = vld [vmem:[%s362 + $0x10] sm:$0xff]
  %v366 = vld [vmem:[%s362 + $0x18] sm:$0xff]
  %v367 = vld [vmem:[%s362 + $0x20] sm:$0xff]
  %v368 = vld [vmem:[%s362 + $0x28] sm:$0xff]
  %v369 = vld [vmem:[%s362 + $0x30] sm:$0xff]
  %v370 = vld [vmem:[%s362 + $0x38] sm:$0xff]
  %v371 = vld [vmem:[%s362 + $0x40] sm:$0xff]
  %v372 = vld [vmem:[%s362 + $0x48] sm:$0xff]
  %v373 = vld [vmem:[%s362 + $0x50] sm:$0xff]
  %v374 = vld [vmem:[%s362 + $0x58] sm:$0xff]
  %v375 = vld [vmem:[%s362 + $0x60] sm:$0xff]
  %v376 = vld [vmem:[%s362 + $0x68] sm:$0xff]
  %v377 = vld [vmem:[%s362 + $0x70] sm:$0xff]
  %v378 = vld [vmem:[%s362 + $0x78] sm:$0xff]
  %v379 = vld [vmem:[%s362 + $0x80] sm:$0xff]
  %v380 = vld [vmem:[%s362 + $0x88] sm:$0xff]
  %v381 = vld [vmem:[%s362 + $0x90] sm:$0x77]
  %v401 = vunpack.c.l.b16 %v363
  %v402 = vunpack.c.h.b16 %v363
  %v403 = vunpack.c.l.b16 %v364
  %v404 = vunpack.c.h.b16 %v364
  %v405 = vunpack.c.l.b16 %v365
  %v406 = vunpack.c.h.b16 %v365
  %v407 = vunpack.c.l.b16 %v366
  %v408 = vunpack.c.h.b16 %v366
  %v409 = vunpack.c.l.b16 %v367
  %v410 = vunpack.c.h.b16 %v367
  %v411 = vunpack.c.l.b16 %v368
  %v412 = vunpack.c.h.b16 %v368
  %v413 = vunpack.c.l.b16 %v369
  %v414 = vunpack.c.h.b16 %v369
  %v415 = vunpack.c.l.b16 %v370
  %v416 = vunpack.c.h.b16 %v370
  %v417 = vunpack.c.l.b16 %v371
  %v418 = vunpack.c.h.b16 %v371
  %v419 = vunpack.c.l.b16 %v372
  %v420 = vunpack.c.h.b16 %v372
  %v421 = vunpack.c.l.b16 %v373
  %v422 = vunpack.c.h.b16 %v373
  %v423 = vunpack.c.l.b16 %v374
  %v424 = vunpack.c.h.b16 %v374
  %v425 = vunpack.c.l.b16 %v375
  %v426 = vunpack.c.h.b16 %v375
  %v427 = vunpack.c.l.b16 %v376
  %v428 = vunpack.c.h.b16 %v376
  %v429 = vunpack.c.l.b16 %v377
  %v430 = vunpack.c.h.b16 %v377
  %v431 = vunpack.c.l.b16 %v378
  %v432 = vunpack.c.h.b16 %v378
  %v433 = vunpack.c.l.b16 %v379
  %v434 = vunpack.c.h.b16 %v379
  %v435 = vunpack.c.l.b16 %v380
  %v436 = vunpack.c.h.b16 %v380
  %v437 = vunpack.c.l.b16 %v381
  %v438 = vunpack.c.h.b16 %v381
  %v439 = vpack.c.b16 %v403, %v401
  %v440 = vpack.c.b16 %v404, %v402
  %v441 = vpack.c.b16 %v407, %v405
  %v442 = vpack.c.b16 %v408, %v406
  %v443 = vpack.c.b16 %v411, %v409
  %v444 = vpack.c.b16 %v412, %v410
  %v445 = vpack.c.b16 %v415, %v413
  %v446 = vpack.c.b16 %v416, %v414
  %v447 = vpack.c.b16 %v419, %v417
  %v448 = vpack.c.b16 %v420, %v418
  %v449 = vpack.c.b16 %v423, %v421
  %v450 = vpack.c.b16 %v424, %v422
  %v451 = vpack.c.b16 %v427, %v425
  %v452 = vpack.c.b16 %v428, %v426
  %v453 = vpack.c.b16 %v431, %v429
  %v454 = vpack.c.b16 %v432, %v430
  %v455 = vpack.c.b16 %v435, %v433
  %v456 = vpack.c.b16 %v436, %v434
  %v457 = vpack.c.b16 %v437, %v437
  %v458 = vpack.c.b16 %v438, %v438
  %v478 = vsel %vm144, %v457, 0
  %v481 = vsel %vm144, %v458, 0
  %483 = vmatprep.subr.bf16.mxu0 %v454
  %484 = vmatpush1.bf16.msra.mxu0 %v453
  %485 = vmatprep.subr.bf16.mxu0 %v452
  %486 = vmatpush1.bf16.msra.mxu0 %v451
  %487 = vmatprep.subr.bf16.mxu0 %v450
  %488 = vmatpush1.bf16.msra.mxu0 %v449
  %489 = vmatprep.subr.bf16.mxu0 %v448
  %490 = vmatpush1.bf16.msra.mxu0 %v447
  %491 = vmatprep.subr.bf16.mxu0 %v446
  %492 = vmatpush1.bf16.msra.mxu0 %v445
  %493 = vmatprep.subr.bf16.mxu0 %v444
  %494 = vmatpush1.bf16.msra.mxu0 %v443
  %495 = vmatprep.subr.bf16.mxu0 %v442
  %496 = vmatpush1.bf16.msra.mxu0 %v441
  %497 = vmatprep.subr.bf16.mxu0 %v440
  %498 = vmatpush1.bf16.msra.mxu0 %v439
  %499 = vmatprep.subr.bf16.mxu0 0
  %500 = vmatpush2.bf16.msra.mxu0 0
  %501 = vmatprep.subr.bf16.mxu0 0
  %502 = vmatpush2.bf16.msra.mxu0 0
  %503 = vmatprep.subr.bf16.mxu0 0
  %504 = vmatpush2.bf16.msra.mxu0 0
  %505 = vmatprep.subr.bf16.mxu0 0
  %506 = vmatpush2.bf16.msra.mxu0 0
  %507 = vmatprep.subr.bf16.mxu0 0
  %508 = vmatpush2.bf16.msra.mxu0 0
  %509 = vmatprep.subr.bf16.mxu0 0
  %510 = vmatpush2.bf16.msra.mxu0 0
  %511 = vmatprep.subr.bf16.mxu0 %v481
  %512 = vmatpush2.bf16.msra.mxu0 %v478
  %513 = vmatprep.subr.bf16.mxu0 %v456
  %514 = vmatpush2.bf16.msra.mxu0 %v455
  %515 = vmatprep.mubr.bf16.mxu0 %v142
  %516 = vmatmul.mubr.bf16.gmra.mxu0 %v42
  %v517 = vpop.f32.mrf.mxu0
  %v518 = vadd.f32 0.0, %v517
  %v519 = vpop.f32.mrf.mxu0
  %v520 = vadd.f32 0.0, %v519
  %v521 = vpop.f32.mrf.mxu0
  %v522 = vadd.f32 0.0, %v521
  %v523 = vpop.f32.mrf.mxu0
  %v524 = vadd.f32 0.0, %v523
  %525 = vdwg.mxu0
  %v526 = vmax.f32 %v358, %v518
  %v527 = vmax.f32 %v359, %v520
  %v528 = vmax.f32 %v360, %v522
  %v529 = vmax.f32 %v361, %v524
  %s530 = scalar_lea.vmem %s0, 456
  %v531 = vld [vmem:[%s530] sm:$0xff]
  %v532 = vld [vmem:[%s530 + $0x8] sm:$0xff]
  %v533 = vld [vmem:[%s530 + $0x10] sm:$0xff]
  %v534 = vld [vmem:[%s530 + $0x18] sm:$0xff]
  %v535 = vld [vmem:[%s530 + $0x20] sm:$0xff]
  %v536 = vld [vmem:[%s530 + $0x28] sm:$0xff]
  %v537 = vld [vmem:[%s530 + $0x30] sm:$0xff]
  %v538 = vld [vmem:[%s530 + $0x38] sm:$0xff]
  %v539 = vld [vmem:[%s530 + $0x40] sm:$0xff]
  %v540 = vld [vmem:[%s530 + $0x48] sm:$0xff]
  %v541 = vld [vmem:[%s530 + $0x50] sm:$0xff]
  %v542 = vld [vmem:[%s530 + $0x58] sm:$0xff]
  %v543 = vld [vmem:[%s530 + $0x60] sm:$0xff]
  %v544 = vld [vmem:[%s530 + $0x68] sm:$0xff]
  %v545 = vld [vmem:[%s530 + $0x70] sm:$0xff]
  %v546 = vld [vmem:[%s530 + $0x78] sm:$0xff]
  %v547 = vld [vmem:[%s530 + $0x80] sm:$0xff]
  %v548 = vld [vmem:[%s530 + $0x88] sm:$0xff]
  %v549 = vld [vmem:[%s530 + $0x90] sm:$0x77]
  %v569 = vunpack.c.l.b16 %v531
  %v570 = vunpack.c.h.b16 %v531
  %v571 = vunpack.c.l.b16 %v532
  %v572 = vunpack.c.h.b16 %v532
  %v573 = vunpack.c.l.b16 %v533
  %v574 = vunpack.c.h.b16 %v533
  %v575 = vunpack.c.l.b16 %v534
  %v576 = vunpack.c.h.b16 %v534
  %v577 = vunpack.c.l.b16 %v535
  %v578 = vunpack.c.h.b16 %v535
  %v579 = vunpack.c.l.b16 %v536
  %v580 = vunpack.c.h.b16 %v536
  %v581 = vunpack.c.l.b16 %v537
  %v582 = vunpack.c.h.b16 %v537
  %v583 = vunpack.c.l.b16 %v538
  %v584 = vunpack.c.h.b16 %v538
  %v585 = vunpack.c.l.b16 %v539
  %v586 = vunpack.c.h.b16 %v539
  %v587 = vunpack.c.l.b16 %v540
  %v588 = vunpack.c.h.b16 %v540
  %v589 = vunpack.c.l.b16 %v541
  %v590 = vunpack.c.h.b16 %v541
  %v591 = vunpack.c.l.b16 %v542
  %v592 = vunpack.c.h.b16 %v542
  %v593 = vunpack.c.l.b16 %v543
  %v594 = vunpack.c.h.b16 %v543
  %v595 = vunpack.c.l.b16 %v544
  %v596 = vunpack.c.h.b16 %v544
  %v597 = vunpack.c.l.b16 %v545
  %v598 = vunpack.c.h.b16 %v545
  %v599 = vunpack.c.l.b16 %v546
  %v600 = vunpack.c.h.b16 %v546
  %v601 = vunpack.c.l.b16 %v547
  %v602 = vunpack.c.h.b16 %v547
  %v603 = vunpack.c.l.b16 %v548
  %v604 = vunpack.c.h.b16 %v548
  %v605 = vunpack.c.l.b16 %v549
  %v606 = vunpack.c.h.b16 %v549
  %v607 = vpack.c.b16 %v571, %v569
  %v608 = vpack.c.b16 %v572, %v570
  %v609 = vpack.c.b16 %v575, %v573
  %v610 = vpack.c.b16 %v576, %v574
  %v611 = vpack.c.b16 %v579, %v577
  %v612 = vpack.c.b16 %v580, %v578
  %v613 = vpack.c.b16 %v583, %v581
  %v614 = vpack.c.b16 %v584, %v582
  %v615 = vpack.c.b16 %v587, %v585
  %v616 = vpack.c.b16 %v588, %v586
  %v617 = vpack.c.b16 %v591, %v589
  %v618 = vpack.c.b16 %v592, %v590
  %v619 = vpack.c.b16 %v595, %v593
  %v620 = vpack.c.b16 %v596, %v594
  %v621 = vpack.c.b16 %v599, %v597
  %v622 = vpack.c.b16 %v600, %v598
  %v623 = vpack.c.b16 %v603, %v601
  %v624 = vpack.c.b16 %v604, %v602
  %v625 = vpack.c.b16 %v605, %v605
  %v626 = vpack.c.b16 %v606, %v606
  %v646 = vsel %vm144, %v625, 0
  %v649 = vsel %vm144, %v626, 0
  %651 = vmatprep.subr.bf16.mxu0 %v622
  %652 = vmatpush1.bf16.msra.mxu0 %v621
  %653 = vmatprep.subr.bf16.mxu0 %v620
  %654 = vmatpush1.bf16.msra.mxu0 %v619
  %655 = vmatprep.subr.bf16.mxu0 %v618
  %656 = vmatpush1.bf16.msra.mxu0 %v617
  %657 = vmatprep.subr.bf16.mxu0 %v616
  %658 = vmatpush1.bf16.msra.mxu0 %v615
  %659 = vmatprep.subr.bf16.mxu0 %v614
  %660 = vmatpush1.bf16.msra.mxu0 %v613
  %661 = vmatprep.subr.bf16.mxu0 %v612
  %662 = vmatpush1.bf16.msra.mxu0 %v611
  %663 = vmatprep.subr.bf16.mxu0 %v610
  %664 = vmatpush1.bf16.msra.mxu0 %v609
  %665 = vmatprep.subr.bf16.mxu0 %v608
  %666 = vmatpush1.bf16.msra.mxu0 %v607
  %667 = vmatprep.subr.bf16.mxu0 0
  %668 = vmatpush2.bf16.msra.mxu0 0
  %669 = vmatprep.subr.bf16.mxu0 0
  %670 = vmatpush2.bf16.msra.mxu0 0
  %671 = vmatprep.subr.bf16.mxu0 0
  %672 = vmatpush2.bf16.msra.mxu0 0
  %673 = vmatprep.subr.bf16.mxu0 0
  %674 = vmatpush2.bf16.msra.mxu0 0
  %675 = vmatprep.subr.bf16.mxu0 0
  %676 = vmatpush2.bf16.msra.mxu0 0
  %677 = vmatprep.subr.bf16.mxu0 0
  %678 = vmatpush2.bf16.msra.mxu0 0
  %679 = vmatprep.subr.bf16.mxu0 %v649
  %680 = vmatpush2.bf16.msra.mxu0 %v646
  %681 = vmatprep.subr.bf16.mxu0 %v624
  %682 = vmatpush2.bf16.msra.mxu0 %v623
  %683 = vmatprep.mubr.bf16.mxu0 %v142
  %684 = vmatmul.mubr.bf16.gmra.mxu0 %v42
  %v685 = vpop.f32.mrf.mxu0
  %v686 = vadd.f32 0.0, %v685
  %v687 = vpop.f32.mrf.mxu0
  %v688 = vadd.f32 0.0, %v687
  %v689 = vpop.f32.mrf.mxu0
  %v690 = vadd.f32 0.0, %v689
  %v691 = vpop.f32.mrf.mxu0
  %v692 = vadd.f32 0.0, %v691
  %693 = vdwg.mxu0
  %v694 = vmax.f32 %v526, %v686
  %v695 = vmax.f32 %v527, %v688
  %v696 = vmax.f32 %v528, %v690
  %v697 = vmax.f32 %v529, %v692
  %v698 = vld [vmem:[%s2] sm:$0xff]
  %v699 = vld [vmem:[%s2 + $0x8] sm:$0xff]
  %701 = vset.pattern.permute.xlu0 0
  %702 = vperm.xlu0 %701, %v698
  %v703 = vpop.permute.xlu0 %702
  %706 = vset.pattern.permute.xlu0 0
  %707 = vperm.xlu0 %706, %v699
  %v708 = vpop.permute.xlu0 %707
  %v710 = vadd.f32 %v694, %v703
  %v711 = vadd.f32 %v695, %v703
  %v712 = vadd.f32 %v696, %v708
  %v713 = vadd.f32 %v697, %v708
  %v714 = vmax.f32 %v710, 0.0
  %v715 = vmax.f32 %v711, 0.0
  %v716 = vmax.f32 %v712, 0.0
  %v717 = vmax.f32 %v713, 0.0
  %718 = vst [vmem:[%s3] sm:$0xff] %v714
  %vm719 = vcmask 588800
  %720 = vst.msk [vmem:[%s3 + $0x8] sm:$0xff] %vm719, %v715
  %721 = vst [vmem:[%s3 + $0x10] sm:$0xff] %v716
  %722 = vst.msk [vmem:[%s3 + $0x18] sm:$0xff] %vm719, %v717
  // Predicated region
  $region14: #{lenet5_forward.4} parent=0 // pred_check
    _
  $region15: #{lenet5_forward.4} parent=0 // pred_check_branch
    %724 = sbr.rel (0) target = $region17
  $region16: #{lenet5_forward.4} parent=0 // pred_region
    _
  $region17: #{lenet5_forward.4} parent=0 // pred_fallthru
    _
  // Predicated region
  $region18: #{lenet5_forward.4} parent=0 // pred_check
    _
  $region19: #{lenet5_forward.4} parent=0 // pred_check_branch
    %726 = sbr.rel (0) target = $region21
  $region20: #{lenet5_forward.4} parent=0 // pred_region
    _
  $region21: #{lenet5_forward.4} parent=0 // pred_fallthru
    _

// kernel: lenet5_forward.5
$region0: #{lenet5_forward.5}
  #allocation0 [shape = 'u32[]', space=smem, size = 0x4, offset = 0x4, fixed_abs, tag = 'smem constant byte address 0x4 - core index']
  #allocation1 [shape = 'u32[144,128]{1,0:T(1,128)}', space=vmem, size = 0x12000, scoped, tag = 'internal scratch']
  %s0 = inlined_call_operand.vmem [shape: f32[8,400], index: 0, kind: input, shape index: {}]
  %s1 = inlined_call_operand.vmem [shape: f32[400,128], index: 1, kind: input, shape index: {}]
  %s2 = inlined_call_operand.vmem [shape: f32[1,128], index: 2, kind: input, shape index: {}]
  %s3 = inlined_call_operand.vmem [shape: f32[128,128], index: 3, kind: input, shape index: {}]
  %s4 = inlined_call_operand.vmem [shape: f32[1,128], index: 4, kind: input, shape index: {}]
  %s5 = inlined_call_operand.vmem [shape: f32[128,128], index: 5, kind: input, shape index: {}]
  %s6 = inlined_call_operand.vmem [shape: f32[1,128], index: 6, kind: input, shape index: {}]
  %s7 = inlined_call_operand.vmem [shape: f32[8,128], index: 7, kind: output, shape index: {}]
  %s8 = sld [smem:[#allocation0]]
  $region38: #{lenet5_forward.5} parent=0
    _
  %s10 = ssub.s32 1, %s8
  %s11 = scalar_select 0, %s10, %s8
  // Predicated region
  $region2: #{lenet5_forward.5} parent=0 // pred_check
    _
  $region3: #{lenet5_forward.5} parent=0 // pred_check_branch
    %13 = sbr.rel (0) target = $region5
  $region4: #{lenet5_forward.5} parent=0 // pred_region
    _
  $region5: #{lenet5_forward.5} parent=0 // pred_fallthru
    _
  // Predicated region
  $region6: #{lenet5_forward.5} parent=0 // pred_check
    _
  $region7: #{lenet5_forward.5} parent=0 // pred_check_branch
    %15 = sbr.rel (0) target = $region9
  $region8: #{lenet5_forward.5} parent=0 // pred_region
    _
  $region9: #{lenet5_forward.5} parent=0 // pred_fallthru
    _
  // Predicated region
  $region10: #{lenet5_forward.5} parent=0 // pred_check
    _
  $region11: #{lenet5_forward.5} parent=0 // pred_check_branch
    %17 = sbr.rel (0) target = $region13
  $region12: #{lenet5_forward.5} parent=0 // pred_region
    _
  $region13: #{lenet5_forward.5} parent=0 // pred_fallthru
    _
  // Predicated region
  $region14: #{lenet5_forward.5} parent=0 // pred_check
    _
  $region15: #{lenet5_forward.5} parent=0 // pred_check_branch
    %19 = sbr.rel (0) target = $region17
  $region16: #{lenet5_forward.5} parent=0 // pred_region
    _
  $region17: #{lenet5_forward.5} parent=0 // pred_fallthru
    _
  // Predicated region
  $region18: #{lenet5_forward.5} parent=0 // pred_check
    _
  $region19: #{lenet5_forward.5} parent=0 // pred_check_branch
    %21 = sbr.rel (0) target = $region21
  $region20: #{lenet5_forward.5} parent=0 // pred_region
    _
  $region21: #{lenet5_forward.5} parent=0 // pred_fallthru
    _
  // Predicated region
  $region22: #{lenet5_forward.5} parent=0 // pred_check
    _
  $region23: #{lenet5_forward.5} parent=0 // pred_check_branch
    %23 = sbr.rel (0) target = $region25
  $region24: #{lenet5_forward.5} parent=0 // pred_region
    _
  $region25: #{lenet5_forward.5} parent=0 // pred_fallthru
    _
  // Predicated region
  $region26: #{lenet5_forward.5} parent=0 // pred_check
    _
  $region27: #{lenet5_forward.5} parent=0 // pred_check_branch
    %25 = sbr.rel (0) target = $region29
  $region28: #{lenet5_forward.5} parent=0 // pred_region
    _
  $region29: #{lenet5_forward.5} parent=0 // pred_fallthru
    _
  %v26 = vld [vmem:[%s0] sm:$0xff]
  %v27 = vld [vmem:[%s0 + $0x8] sm:$0xff]
  %v28 = vld [vmem:[%s0 + $0x10] sm:$0xff]
  %v29 = vld [vmem:[%s0 + $0x18] sm:$0xff]
  %v30 = vld [vmem:[%s1] sm:$0xff]
  %v31 = vld [vmem:[%s1 + $0x8] sm:$0xff]
  %v32 = vld [vmem:[%s1 + $0x10] sm:$0xff]
  %v33 = vld [vmem:[%s1 + $0x18] sm:$0xff]
  %v34 = vld [vmem:[%s1 + $0x20] sm:$0xff]
  %v35 = vld [vmem:[%s1 + $0x28] sm:$0xff]
  %v36 = vld [vmem:[%s1 + $0x30] sm:$0xff]
  %v37 = vld [vmem:[%s1 + $0x38] sm:$0xff]
  %v38 = vld [vmem:[%s1 + $0x40] sm:$0xff]
  %v39 = vld [vmem:[%s1 + $0x48] sm:$0xff]
  %v40 = vld [vmem:[%s1 + $0x50] sm:$0xff]
  %v41 = vld [vmem:[%s1 + $0x58] sm:$0xff]
  %v42 = vld [vmem:[%s1 + $0x60] sm:$0xff]
  %v43 = vld [vmem:[%s1 + $0x68] sm:$0xff]
  %v44 = vld [vmem:[%s1 + $0x70] sm:$0xff]
  %v45 = vld [vmem:[%s1 + $0x78] sm:$0xff]
  %v46 = vld [vmem:[%s1 + $0x80] sm:$0xff]
  %v47 = vld [vmem:[%s1 + $0x88] sm:$0xff]
  %v48 = vld [vmem:[%s1 + $0x90] sm:$0xff]
  %v49 = vld [vmem:[%s1 + $0x98] sm:$0xff]
  %v50 = vld [vmem:[%s1 + $0xa0] sm:$0xff]
  %v51 = vld [vmem:[%s1 + $0xa8] sm:$0xff]
  %v52 = vld [vmem:[%s1 + $0xb0] sm:$0xff]
  %v53 = vld [vmem:[%s1 + $0xb8] sm:$0xff]
  %v54 = vld [vmem:[%s1 + $0xc0] sm:$0xff]
  %v55 = vld [vmem:[%s1 + $0xc8] sm:$0xff]
  %v56 = vld [vmem:[%s1 + $0xd0] sm:$0xff]
  %v57 = vld [vmem:[%s1 + $0xd8] sm:$0xff]
  %v58 = vld [vmem:[%s1 + $0xe0] sm:$0xff]
  %v59 = vld [vmem:[%s1 + $0xe8] sm:$0xff]
  %v60 = vld [vmem:[%s1 + $0xf0] sm:$0xff]
  %v61 = vld [vmem:[%s1 + $0xf8] sm:$0xff]
  %v62 = vld [vmem:[%s1 + $0x100] sm:$0xff]
  %v63 = vld [vmem:[%s1 + $0x108] sm:$0xff]
  %v64 = vld [vmem:[%s1 + $0x110] sm:$0xff]
  %v65 = vld [vmem:[%s1 + $0x118] sm:$0xff]
  %v66 = vld [vmem:[%s1 + $0x120] sm:$0xff]
  %v67 = vld [vmem:[%s1 + $0x128] sm:$0xff]
  %v68 = vld [vmem:[%s1 + $0x130] sm:$0xff]
  %v69 = vld [vmem:[%s1 + $0x138] sm:$0xff]
  %v70 = vld [vmem:[%s1 + $0x140] sm:$0xff]
  %v71 = vld [vmem:[%s1 + $0x148] sm:$0xff]
  %v72 = vld [vmem:[%s1 + $0x150] sm:$0xff]
  %v73 = vld [vmem:[%s1 + $0x158] sm:$0xff]
  %v74 = vld [vmem:[%s1 + $0x160] sm:$0xff]
  %v75 = vld [vmem:[%s1 + $0x168] sm:$0xff]
  %v76 = vld [vmem:[%s1 + $0x170] sm:$0xff]
  %v77 = vld [vmem:[%s1 + $0x178] sm:$0xff]
  %v78 = vld [vmem:[%s1 + $0x180] sm:$0xff]
  %v79 = vld [vmem:[%s1 + $0x188] sm:$0xff]
  %v80 = vld [vmem:[%s2] sm:$0x1]
  %v82 = vlaneseq
  %v83 = vshrl.u32 %v82, 7
  %v84 = vsub.s32 0, %v83
  %v85 = vrot.slane %v80, %v84
  %vm87 = vcmask 130048
  %v89 = vsel %vm87, %v29, 0
  %91 = vmatprep.subr.mxu0 0.0
  %92 = vmatpush1.msra.mxu0 %v45
  %93 = vmatprep.subr.mxu0 0.0
  %94 = vmatpush1.msra.mxu0 %v44
  %95 = vmatprep.subr.mxu0 0.0
  %96 = vmatpush1.msra.mxu0 %v43
  %97 = vmatprep.subr.mxu0 0.0
  %98 = vmatpush1.msra.mxu0 %v42
  %99 = vmatprep.subr.mxu0 0.0
  %100 = vmatpush1.msra.mxu0 %v41
  %101 = vmatprep.subr.mxu0 0.0
  %102 = vmatpush1.msra.mxu0 %v40
  %103 = vmatprep.subr.mxu0 0.0
  %104 = vmatpush1.msra.mxu0 %v39
  %105 = vmatprep.subr.mxu0 0.0
  %106 = vmatpush1.msra.mxu0 %v38
  %107 = vmatprep.subr.mxu0 0.0
  %108 = vmatpush1.msra.mxu0 %v37
  %109 = vmatprep.subr.mxu0 0.0
  %110 = vmatpush1.msra.mxu0 %v36
  %111 = vmatprep.subr.mxu0 0.0
  %112 = vmatpush1.msra.mxu0 %v35
  %113 = vmatprep.subr.mxu0 0.0
  %114 = vmatpush1.msra.mxu0 %v34
  %115 = vmatprep.subr.mxu0 0.0
  %116 = vmatpush1.msra.mxu0 %v33
  %117 = vmatprep.subr.mxu0 0.0
  %118 = vmatpush1.msra.mxu0 %v32
  %119 = vmatprep.subr.mxu0 0.0
  %120 = vmatpush1.msra.mxu0 %v31
  %121 = vmatprep.subr.mxu0 0.0
  %122 = vmatpush1.msra.mxu0 %v30
  %123 = vmatprep.subr.mxu0 0.0
  %124 = vmatpush2.msra.mxu0 %v61
  %125 = vmatprep.subr.mxu0 0.0
  %126 = vmatpush2.msra.mxu0 %v60
  %127 = vmatprep.subr.mxu0 0.0
  %128 = vmatpush2.msra.mxu0 %v59
  %129 = vmatprep.subr.mxu0 0.0
  %130 = vmatpush2.msra.mxu0 %v58
  %131 = vmatprep.subr.mxu0 0.0
  %132 = vmatpush2.msra.mxu0 %v57
  %133 = vmatprep.subr.mxu0 0.0
  %134 = vmatpush2.msra.mxu0 %v56
  %135 = vmatprep.subr.mxu0 0.0
  %136 = vmatpush2.msra.mxu0 %v55
  %137 = vmatprep.subr.mxu0 0.0
  %138 = vmatpush2.msra.mxu0 %v54
  %139 = vmatprep.subr.mxu0 0.0
  %140 = vmatpush2.msra.mxu0 %v53
  %141 = vmatprep.subr.mxu0 0.0
  %142 = vmatpush2.msra.mxu0 %v52
  %143 = vmatprep.subr.mxu0 0.0
  %144 = vmatpush2.msra.mxu0 %v51
  %145 = vmatprep.subr.mxu0 0.0
  %146 = vmatpush2.msra.mxu0 %v50
  %147 = vmatprep.subr.mxu0 0.0
  %148 = vmatpush2.msra.mxu0 %v49
  %149 = vmatprep.subr.mxu0 0.0
  %150 = vmatpush2.msra.mxu0 %v48
  %151 = vmatprep.subr.mxu0 0.0
  %152 = vmatpush2.msra.mxu0 %v47
  %153 = vmatprep.subr.mxu0 0.0
  %154 = vmatpush2.msra.mxu0 %v46
  %155 = vmatprep.mubr.f32.mxu0 %v27
  %156 = vmatmul.mubr.f32.gmra.mxu0 %v26
  %v157 = vpop.f32.mrf.mxu0
  %v158 = vadd.f32 %v85, %v157
  %v159 = vpop.f32.mrf.mxu0
  %160 = vdwg.mxu0
  %161 = vmatprep.subr.mxu0 0.0
  %162 = vmatpush1.msra.mxu0 %v77
  %163 = vmatprep.subr.mxu0 0.0
  %164 = vmatpush1.msra.mxu0 %v76
  %165 = vmatprep.subr.mxu0 0.0
  %166 = vmatpush1.msra.mxu0 %v75
  %167 = vmatprep.subr.mxu0 0.0
  %168 = vmatpush1.msra.mxu0 %v74
  %169 = vmatprep.subr.mxu0 0.0
  %170 = vmatpush1.msra.mxu0 %v73
  %171 = vmatprep.subr.mxu0 0.0
  %172 = vmatpush1.msra.mxu0 %v72
  %173 = vmatprep.subr.mxu0 0.0
  %174 = vmatpush1.msra.mxu0 %v71
  %175 = vmatprep.subr.mxu0 0.0
  %176 = vmatpush1.msra.mxu0 %v70
  %177 = vmatprep.subr.mxu0 0.0
  %178 = vmatpush1.msra.mxu0 %v69
  %179 = vmatprep.subr.mxu0 0.0
  %180 = vmatpush1.msra.mxu0 %v68
  %181 = vmatprep.subr.mxu0 0.0
  %182 = vmatpush1.msra.mxu0 %v67
  %183 = vmatprep.subr.mxu0 0.0
  %184 = vmatpush1.msra.mxu0 %v66
  %185 = vmatprep.subr.mxu0 0.0
  %186 = vmatpush1.msra.mxu0 %v65
  %187 = vmatprep.subr.mxu0 0.0
  %188 = vmatpush1.msra.mxu0 %v64
  %189 = vmatprep.subr.mxu0 0.0
  %190 = vmatpush1.msra.mxu0 %v63
  %191 = vmatprep.subr.mxu0 0.0
  %192 = vmatpush1.msra.mxu0 %v62
  %193 = vmatprep.subr.mxu0 0.0
  %194 = vmatpush2.msra.mxu0 0.0
  %195 = vmatprep.subr.mxu0 0.0
  %196 = vmatpush2.msra.mxu0 0.0
  %197 = vmatprep.subr.mxu0 0.0
  %198 = vmatpush2.msra.mxu0 0.0
  %199 = vmatprep.subr.mxu0 0.0
  %200 = vmatpush2.msra.mxu0 0.0
  %201 = vmatprep.subr.mxu0 0.0
  %202 = vmatpush2.msra.mxu0 0.0
  %203 = vmatprep.subr.mxu0 0.0
  %204 = vmatpush2.msra.mxu0 0.0
  %205 = vmatprep.subr.mxu0 0.0
  %206 = vmatpush2.msra.mxu0 0.0
  %207 = vmatprep.subr.mxu0 0.0
  %208 = vmatpush2.msra.mxu0 0.0
  %209 = vmatprep.subr.mxu0 0.0
  %210 = vmatpush2.msra.mxu0 0.0
  %211 = vmatprep.subr.mxu0 0.0
  %212 = vmatpush2.msra.mxu0 0.0
  %213 = vmatprep.subr.mxu0 0.0
  %214 = vmatpush2.msra.mxu0 0.0
  %215 = vmatprep.subr.mxu0 0.0
  %216 = vmatpush2.msra.mxu0 0.0
  %217 = vmatprep.subr.mxu0 0.0
  %218 = vmatpush2.msra.mxu0 0.0
  %219 = vmatprep.subr.mxu0 0.0
  %220 = vmatpush2.msra.mxu0 0.0
  %221 = vmatprep.subr.mxu0 0.0
  %222 = vmatpush2.msra.mxu0 %v79
  %223 = vmatprep.subr.mxu0 0.0
  %224 = vmatpush2.msra.mxu0 %v78
  %225 = vmatprep.mubr.f32.mxu0 %v89
  %226 = vmatmul.mubr.f32.gmra.mxu0 %v28
  %v227 = vpop.f32.mrf.mxu0
  %v228 = vadd.f32 %v158, %v227
  %v229 = vpop.f32.mrf.mxu0
  %230 = vdwg.mxu0
  %v231 = vmax.f32 %v228, 0.0
  %v232 = vld [vmem:[%s3] sm:$0xff]
  %v233 = vld [vmem:[%s3 + $0x8] sm:$0xff]
  %v234 = vld [vmem:[%s3 + $0x10] sm:$0xff]
  %v235 = vld [vmem:[%s3 + $0x18] sm:$0xff]
  %v236 = vld [vmem:[%s3 + $0x20] sm:$0xff]
  %v237 = vld [vmem:[%s3 + $0x28] sm:$0xff]
  %v238 = vld [vmem:[%s3 + $0x30] sm:$0xff]
  %v239 = vld [vmem:[%s3 + $0x38] sm:$0xff]
  %v240 = vld [vmem:[%s3 + $0x40] sm:$0xff]
  %v241 = vld [vmem:[%s3 + $0x48] sm:$0xff]
  %v242 = vld [vmem:[%s3 + $0x50] sm:$0xff]
  %v243 = vld [vmem:[%s3 + $0x58] sm:$0xff]
  %v244 = vld [vmem:[%s3 + $0x60] sm:$0xff]
  %v245 = vld [vmem:[%s3 + $0x68] sm:$0xff]
  %v246 = vld [vmem:[%s3 + $0x70] sm:$0xff]
  %v247 = vld [vmem:[%s3 + $0x78] sm:$0xff]
  %v248 = vld [vmem:[%s4] sm:$0x1]
  %v250 = vlaneseq
  %v251 = vshrl.u32 %v250, 7
  %v252 = vsub.s32 0, %v251
  %v253 = vrot.slane %v248, %v252
  %255 = vmatprep.subr.mxu0 0.0
  %256 = vmatpush1.msra.mxu0 %v247
  %257 = vmatprep.subr.mxu0 0.0
  %258 = vmatpush1.msra.mxu0 %v246
  %259 = vmatprep.subr.mxu0 0.0
  %260 = vmatpush1.msra.mxu0 %v245
  %261 = vmatprep.subr.mxu0 0.0
  %262 = vmatpush1.msra.mxu0 %v244
  %263 = vmatprep.subr.mxu0 0.0
  %264 = vmatpush1.msra.mxu0 %v243
  %265 = vmatprep.subr.mxu0 0.0
  %266 = vmatpush1.msra.mxu0 %v242
  %267 = vmatprep.subr.mxu0 0.0
  %268 = vmatpush1.msra.mxu0 %v241
  %269 = vmatprep.subr.mxu0 0.0
  %270 = vmatpush1.msra.mxu0 %v240
  %271 = vmatprep.subr.mxu0 0.0
  %272 = vmatpush1.msra.mxu0 %v239
  %273 = vmatprep.subr.mxu0 0.0
  %274 = vmatpush1.msra.mxu0 %v238
  %275 = vmatprep.subr.mxu0 0.0
  %276 = vmatpush1.msra.mxu0 %v237
  %277 = vmatprep.subr.mxu0 0.0
  %278 = vmatpush1.msra.mxu0 %v236
  %279 = vmatprep.subr.mxu0 0.0
  %280 = vmatpush1.msra.mxu0 %v235
  %281 = vmatprep.subr.mxu0 0.0
  %282 = vmatpush1.msra.mxu0 %v234
  %283 = vmatprep.subr.mxu0 0.0
  %284 = vmatpush1.msra.mxu0 %v233
  %285 = vmatprep.subr.mxu0 0.0
  %286 = vmatpush1.msra.mxu0 %v232
  %287 = vmatprep.subr.mxu0 0.0
  %288 = vmatpush2.msra.mxu0 0.0
  %289 = vmatprep.subr.mxu0 0.0
  %290 = vmatpush2.msra.mxu0 0.0
  %291 = vmatprep.subr.mxu0 0.0
  %292 = vmatpush2.msra.mxu0 0.0
  %293 = vmatprep.subr.mxu0 0.0
  %294 = vmatpush2.msra.mxu0 0.0
  %295 = vmatprep.subr.mxu0 0.0
  %296 = vmatpush2.msra.mxu0 0.0
  %297 = vmatprep.subr.mxu0 0.0
  %298 = vmatpush2.msra.mxu0 0.0
  %299 = vmatprep.subr.mxu0 0.0
  %300 = vmatpush2.msra.mxu0 0.0
  %301 = vmatprep.subr.mxu0 0.0
  %302 = vmatpush2.msra.mxu0 0.0
  %303 = vmatprep.subr.mxu0 0.0
  %304 = vmatpush2.msra.mxu0 0.0
  %305 = vmatprep.subr.mxu0 0.0
  %306 = vmatpush2.msra.mxu0 0.0
  %307 = vmatprep.subr.mxu0 0.0
  %308 = vmatpush2.msra.mxu0 0.0
  %309 = vmatprep.subr.mxu0 0.0
  %310 = vmatpush2.msra.mxu0 0.0
  %311 = vmatprep.subr.mxu0 0.0
  %312 = vmatpush2.msra.mxu0 0.0
  %313 = vmatprep.subr.mxu0 0.0
  %314 = vmatpush2.msra.mxu0 0.0
  %315 = vmatprep.subr.mxu0 0.0
  %316 = vmatpush2.msra.mxu0 0.0
  %317 = vmatprep.subr.mxu0 0.0
  %318 = vmatpush2.msra.mxu0 0.0
  %319 = vmatprep.mubr.f32.mxu0 0.0
  %320 = vmatmul.mubr.f32.gmra.mxu0 %v231
  %v321 = vpop.f32.mrf.mxu0
  %v322 = vadd.f32 %v253, %v321
  %v323 = vpop.f32.mrf.mxu0
  %324 = vdwg.mxu0
  %v325 = vmax.f32 %v322, 0.0
  %v326 = vld [vmem:[%s5] sm:$0xff]
  %v327 = vld [vmem:[%s5 + $0x8] sm:$0xff]
  %v328 = vld [vmem:[%s5 + $0x10] sm:$0xff]
  %v329 = vld [vmem:[%s5 + $0x18] sm:$0xff]
  %v330 = vld [vmem:[%s5 + $0x20] sm:$0xff]
  %v331 = vld [vmem:[%s5 + $0x28] sm:$0xff]
  %v332 = vld [vmem:[%s5 + $0x30] sm:$0xff]
  %v333 = vld [vmem:[%s5 + $0x38] sm:$0xff]
  %v334 = vld [vmem:[%s5 + $0x40] sm:$0xff]
  %v335 = vld [vmem:[%s5 + $0x48] sm:$0xff]
  %v336 = vld [vmem:[%s5 + $0x50] sm:$0xff]
  %v337 = vld [vmem:[%s5 + $0x58] sm:$0xff]
  %v338 = vld [vmem:[%s5 + $0x60] sm:$0xff]
  %v339 = vld [vmem:[%s5 + $0x68] sm:$0xff]
  %v340 = vld [vmem:[%s5 + $0x70] sm:$0xff]
  %v341 = vld [vmem:[%s5 + $0x78] sm:$0xff]
  %v342 = vld [vmem:[%s6] sm:$0x1]
  %v344 = vlaneseq
  %v345 = vshrl.u32 %v344, 7
  %v346 = vsub.s32 0, %v345
  %v347 = vrot.slane %v342, %v346
  %349 = vmatprep.subr.mxu0 0.0
  %350 = vmatpush1.msra.mxu0 %v341
  %351 = vmatprep.subr.mxu0 0.0
  %352 = vmatpush1.msra.mxu0 %v340
  %353 = vmatprep.subr.mxu0 0.0
  %354 = vmatpush1.msra.mxu0 %v339
  %355 = vmatprep.subr.mxu0 0.0
  %356 = vmatpush1.msra.mxu0 %v338
  %357 = vmatprep.subr.mxu0 0.0
  %358 = vmatpush1.msra.mxu0 %v337
  %359 = vmatprep.subr.mxu0 0.0
  %360 = vmatpush1.msra.mxu0 %v336
  %361 = vmatprep.subr.mxu0 0.0
  %362 = vmatpush1.msra.mxu0 %v335
  %363 = vmatprep.subr.mxu0 0.0
  %364 = vmatpush1.msra.mxu0 %v334
  %365 = vmatprep.subr.mxu0 0.0
  %366 = vmatpush1.msra.mxu0 %v333
  %367 = vmatprep.subr.mxu0 0.0
  %368 = vmatpush1.msra.mxu0 %v332
  %369 = vmatprep.subr.mxu0 0.0
  %370 = vmatpush1.msra.mxu0 %v331
  %371 = vmatprep.subr.mxu0 0.0
  %372 = vmatpush1.msra.mxu0 %v330
  %373 = vmatprep.subr.mxu0 0.0
  %374 = vmatpush1.msra.mxu0 %v329
  %375 = vmatprep.subr.mxu0 0.0
  %376 = vmatpush1.msra.mxu0 %v328
  %377 = vmatprep.subr.mxu0 0.0
  %378 = vmatpush1.msra.mxu0 %v327
  %379 = vmatprep.subr.mxu0 0.0
  %380 = vmatpush1.msra.mxu0 %v326
  %381 = vmatprep.subr.mxu0 0.0
  %382 = vmatpush2.msra.mxu0 0.0
  %383 = vmatprep.subr.mxu0 0.0
  %384 = vmatpush2.msra.mxu0 0.0
  %385 = vmatprep.subr.mxu0 0.0
  %386 = vmatpush2.msra.mxu0 0.0
  %387 = vmatprep.subr.mxu0 0.0
  %388 = vmatpush2.msra.mxu0 0.0
  %389 = vmatprep.subr.mxu0 0.0
  %390 = vmatpush2.msra.mxu0 0.0
  %391 = vmatprep.subr.mxu0 0.0
  %392 = vmatpush2.msra.mxu0 0.0
  %393 = vmatprep.subr.mxu0 0.0
  %394 = vmatpush2.msra.mxu0 0.0
  %395 = vmatprep.subr.mxu0 0.0
  %396 = vmatpush2.msra.mxu0 0.0
  %397 = vmatprep.subr.mxu0 0.0
  %398 = vmatpush2.msra.mxu0 0.0
  %399 = vmatprep.subr.mxu0 0.0
  %400 = vmatpush2.msra.mxu0 0.0
  %401 = vmatprep.subr.mxu0 0.0
  %402 = vmatpush2.msra.mxu0 0.0
  %403 = vmatprep.subr.mxu0 0.0
  %404 = vmatpush2.msra.mxu0 0.0
  %405 = vmatprep.subr.mxu0 0.0
  %406 = vmatpush2.msra.mxu0 0.0
  %407 = vmatprep.subr.mxu0 0.0
  %408 = vmatpush2.msra.mxu0 0.0
  %409 = vmatprep.subr.mxu0 0.0
  %410 = vmatpush2.msra.mxu0 0.0
  %411 = vmatprep.subr.mxu0 0.0
  %412 = vmatpush2.msra.mxu0 0.0
  %413 = vmatprep.mubr.f32.mxu0 0.0
  %414 = vmatmul.mubr.f32.gmra.mxu0 %v325
  %v415 = vpop.f32.mrf.mxu0
  %v416 = vadd.f32 %v347, %v415
  %v417 = vpop.f32.mrf.mxu0
  %418 = vdwg.mxu0
  %419 = vmax.xlane.f32.xlu0 %v416
  %v420 = vpop.xlane.xlu0 %419
  %v421 = vsub.f32 %v416, %v420
  %v422 = vmul.f32 %v421, 1.442695
  %v423 = vpow.pop %v422
  %424 = vadd.xlane.f32.xlu0 %v423
  %v425 = vpop.xlane.xlu0 %424
  %v426 = vlog2.pop %v425
  %v427 = vmul.f32 %v426, 0.6931472
  %v428 = vsub.f32 %v421, %v427
  %429 = vst [vmem:[%s7] sm:$0xff] %v428
  // Predicated region
  $region30: #{lenet5_forward.5} parent=0 // pred_check
    _
  $region31: #{lenet5_forward.5} parent=0 // pred_check_branch
    %431 = sbr.rel (0) target = $region33
  $region32: #{lenet5_forward.5} parent=0 // pred_region
    _
  $region33: #{lenet5_forward.5} parent=0 // pred_fallthru
    _
  // Predicated region
  $region34: #{lenet5_forward.5} parent=0 // pred_check
    _
  $region35: #{lenet5_forward.5} parent=0 // pred_check_branch
    %433 = sbr.rel (0) target = $region37
  $region36: #{lenet5_forward.5} parent=0 // pred_region
    _
  $region37: #{lenet5_forward.5} parent=0 // pred_fallthru
    _

</llo_original>
